<compile_context>
chip_gen: v5e
topology: v5e:2x2
jax: 0.10.0
libtpu: 0.0.40
codegen_flags: <defaults>
</compile_context>

<pallas_src>
import math

import jax
import jax.numpy as jnp
from jax.experimental import pallas as pl

# ---------------- config (small, consistent with the module) ----------------
IMAGE_SIZE = 16
PATCH_SIZE = 4
NUM_CHANNELS = 4
HIDDEN = 32
NUM_HEADS = 4
HEAD_DIM = HIDDEN // NUM_HEADS
INTERMEDIATE = 64
NUM_LAYERS = 2
NUM_LABELS = 8
LN_EPS = 1e-12
NUM_PATCHES = (IMAGE_SIZE // PATCH_SIZE) * (IMAGE_SIZE // PATCH_SIZE)  # 16
SEQ = NUM_PATCHES + 1                                                  # 17
BATCH = 2
NEG_INF = -1e9          # additive mask value (exp underflows to exactly 0 in f32)
LANES = 128
CPP = NUM_CHANNELS * PATCH_SIZE * PATCH_SIZE                           # 64
ROWS_PAD = ((BATCH * SEQ + 7) // 8) * 8                                # 40

assert HIDDEN % NUM_HEADS == 0

# Row indices inside the per-layer vector block / final vector block.
VEC_LN1G, VEC_LN1B, VEC_BQKV, VEC_BO, VEC_LN2G, VEC_LN2B, VEC_B1, VEC_B2 = range(8)
FIN_G, FIN_B, FIN_CLSB = 0, 1, 2


# ---------------- weight-slab layout (static, 8-row aligned blocks) ----------
def _build_slab_layout():
    layout = {}
    rows = 0

    def alloc(name, nrows, ncols):
        nonlocal rows
        layout[name] = (rows, nrows, ncols)
        rows += ((nrows + 7) // 8) * 8

    alloc("patch_w", CPP, HIDDEN)          # conv-as-matmul weight
    alloc("add", ROWS_PAD, HIDDEN)         # cls/conv-bias/pos-emb additive table
    for l in range(NUM_LAYERS):
        alloc(f"vec{l}", 8, LANES)         # LN vectors + biases (one row each)
        alloc(f"wqkv{l}", HIDDEN, 3 * HIDDEN)
        alloc(f"wo{l}", HIDDEN, HIDDEN)
        alloc(f"w1{l}", HIDDEN, INTERMEDIATE)
        alloc(f"w2{l}", INTERMEDIATE, HIDDEN)
    alloc("finvec", 8, LANES)              # final LN g/b + classifier bias
    alloc("cls_w", HIDDEN, LANES)          # classifier weight padded to 128 lanes
    return layout, rows


SLAB_LAYOUT, SLAB_ROWS = _build_slab_layout()


# ---------------- shared math helpers (pure jnp; usable inside kernels) -----
def _layernorm(v, g, b):
    mu = jnp.mean(v, axis=-1, keepdims=True)
    var = jnp.mean((v - mu) ** 2, axis=-1, keepdims=True)
    return (v - mu) * jax.lax.rsqrt(var + LN_EPS) * g + b


# ---------------- the single fused forward kernel ----------------------------
def fused_vit_kernel(patches_ref, slab_ref, o_ref):
    f32 = jnp.float32

    def blk(name):
        r0, nrows, ncols = SLAB_LAYOUT[name]
        return slab_ref[r0:r0 + nrows, 0:ncols]

    def vec(name, row, ncols):
        r0, _, _ = SLAB_LAYOUT[name]
        return slab_ref[r0 + row:r0 + row + 1, 0:ncols]

    # Patch embedding (conv-as-matmul) + fused cls/conv-bias/position add.
    x = jnp.dot(patches_ref[...], blk("patch_w"),
                preferred_element_type=f32) + blk("add")             # (R, H)

    # Block-diagonal attention mask generated in-kernel (no DMA, no int div).
    rid = jax.lax.broadcasted_iota(jnp.int32, (ROWS_PAD, ROWS_PAD), 0)
    cid = jax.lax.broadcasted_iota(jnp.int32, (ROWS_PAD, ROWS_PAD), 1)
    rg = jnp.zeros_like(rid)
    cg = jnp.zeros_like(cid)
    for b in range(1, (ROWS_PAD + SEQ - 1) // SEQ):                   # static, tiny
        rg = rg + (rid >= b * SEQ).astype(jnp.int32)
        cg = cg + (cid >= b * SEQ).astype(jnp.int32)
    same = rg == cg                                                   # (R, R) bool

    for l in range(NUM_LAYERS):                                       # unrolled (2)
        # --- self-attention (pre-LN); attention scale pre-folded into Wq/bq ---
        h = _layernorm(x, vec(f"vec{l}", VEC_LN1G, HIDDEN),
                       vec(f"vec{l}", VEC_LN1B, HIDDEN))
        qkv = jnp.dot(h, blk(f"wqkv{l}"),
                      preferred_element_type=f32) + vec(f"vec{l}", VEC_BQKV, 3 * HIDDEN)

        ctx_heads = []
        for head in range(NUM_HEADS):                                 # unrolled (4)
            lo = head * HEAD_DIM
            qh = qkv[:, lo:lo + HEAD_DIM]
            kh = qkv[:, HIDDEN + lo:HIDDEN + lo + HEAD_DIM]
            vh = qkv[:, 2 * HIDDEN + lo:2 * HIDDEN + lo + HEAD_DIM]

            scores = jax.lax.dot_general(qh, kh, (((1,), (1,)), ((), ())),
                                         preferred_element_type=f32)  # (R, R)
            scores = jnp.where(same, scores, NEG_INF)

            # hand-rolled softmax (EUP approximate reciprocal, no divide)
            m = jnp.max(scores, axis=-1, keepdims=True)
            e = jnp.exp(scores - m)
            p = e * pl.reciprocal(jnp.sum(e, axis=-1, keepdims=True), approx=True)

            ctx_heads.append(jnp.dot(p, vh, preferred_element_type=f32))

        # lane-concat heads once, then a single K=32 output projection
        ctx = jnp.concatenate(ctx_heads, axis=-1)                     # (R, H)
        x = x + jnp.dot(ctx, blk(f"wo{l}"),
                        preferred_element_type=f32) + vec(f"vec{l}", VEC_BO, HIDDEN)

        # --- MLP (pre-LN), tanh-GELU on the EUP ---
        h2 = _layernorm(x, vec(f"vec{l}", VEC_LN2G, HIDDEN),
                        vec(f"vec{l}", VEC_LN2B, HIDDEN))
        inter = jax.nn.gelu(
            jnp.dot(h2, blk(f"w1{l}"),
                    preferred_element_type=f32) + vec(f"vec{l}", VEC_B1, INTERMEDIATE),
            approximate=True)
        x = x + jnp.dot(inter, blk(f"w2{l}"),
                        preferred_element_type=f32) + vec(f"vec{l}", VEC_B2, HIDDEN)

    # --- final LayerNorm + classifier (lane-dense 128-wide output) ---
    h = _layernorm(x, vec("finvec", FIN_G, HIDDEN), vec("finvec", FIN_B, HIDDEN))
    o_ref[...] = jnp.dot(h, blk("cls_w"),
                         preferred_element_type=jnp.float32) + vec("finvec", FIN_CLSB, LANES)


# ---------------- host-side glue ---------------------------------------------
def extract_patches(pixel_values):
    """NCHW -> (B, P, C*ph*pw), patch flattened in (C, ph, pw) row-major order."""
    B, C, Hh, Ww = pixel_values.shape
    p = PATCH_SIZE
    x = pixel_values.reshape(B, C, Hh // p, p, Ww // p, p)
    x = jnp.transpose(x, (0, 2, 4, 1, 3, 5))  # (B, H/p, W/p, C, p, p)
    return x.reshape(B, NUM_PATCHES, C * p * p)


def pack_params(params):
    """Pack every weight into one tile-aligned (SLAB_ROWS, 128) f32 slab."""
    inv_scale = 1.0 / math.sqrt(HEAD_DIM)

    def row128(v):
        v = jnp.asarray(v, jnp.float32).reshape(1, -1)
        return jnp.pad(v, ((0, 0), (0, LANES - v.shape[1])))

    def place(slab, name, arr):
        r0, _, _ = SLAB_LAYOUT[name]
        arr = jnp.asarray(arr, jnp.float32)
        return slab.at[r0:r0 + arr.shape[0], 0:arr.shape[1]].set(arr)

    slab = jnp.zeros((SLAB_ROWS, LANES), jnp.float32)
    slab = place(slab, "patch_w", params["patch_w"])

    # cls_token+pos[0] on CLS rows, conv_bias+pos[1+p] on patch rows, 0 on pad rows.
    add_seq = jnp.concatenate(
        [params["cls_token"].reshape(1, HIDDEN),
         jnp.broadcast_to(params["patch_b"], (NUM_PATCHES, HIDDEN))],
        axis=0) + params["pos_emb"][0]                               # (S, H)
    add_all = jnp.tile(add_seq, (BATCH, 1))                          # (B*S, H)
    add_all = jnp.pad(add_all, ((0, ROWS_PAD - BATCH * SEQ), (0, 0)))
    slab = place(slab, "add", add_all)

    for l, lp in enumerate(params["layers"]):
        # fold 1/sqrt(HEAD_DIM) into the Q columns of the fused QKV weight/bias
        wqkv = jnp.concatenate([lp["wq"] * inv_scale, lp["wk"], lp["wv"]], axis=1)
        bqkv = jnp.concatenate([lp["bq"] * inv_scale, lp["bk"], lp["bv"]], axis=1)
        vec_block = jnp.concatenate(
            [row128(lp["ln1_g"]), row128(lp["ln1_b"]), row128(bqkv), row128(lp["bo"]),
             row128(lp["ln2_g"]), row128(lp["ln2_b"]), row128(lp["b1"]), row128(lp["b2"])],
            axis=0)                                                  # (8, 128)
        slab = place(slab, f"vec{l}", vec_block)
        slab = place(slab, f"wqkv{l}", wqkv)
        slab = place(slab, f"wo{l}", lp["wo"])
        slab = place(slab, f"w1{l}", lp["w1"])
        slab = place(slab, f"w2{l}", lp["w2"])

    finvec = jnp.concatenate(
        [row128(params["final_ln_g"]), row128(params["final_ln_b"]),
         row128(params["cls_b"]), jnp.zeros((5, LANES), jnp.float32)], axis=0)
    slab = place(slab, "finvec", finvec)
    cls_w_pad = jnp.pad(params["cls_w"], ((0, 0), (0, LANES - NUM_LABELS)))
    slab = place(slab, "cls_w", cls_w_pad)
    return slab


def deepspeed_vit_forward(pixel_values, slab):
    B = pixel_values.shape[0]
    assert B == BATCH, "weight slab was packed for BATCH; repack for other sizes"
    patches = extract_patches(pixel_values)                          # (B, P, Cpp)
    cpp = patches.shape[-1]
    # Zero row at every CLS position so one matmul covers the whole slab; pad
    # rows to a multiple of 8 (they form their own mask group in the kernel).
    patches_pad = jnp.concatenate(
        [jnp.zeros((B, 1, cpp), patches.dtype), patches], axis=1
    ).reshape(B * SEQ, cpp)
    patches_pad = jnp.pad(patches_pad, ((0, ROWS_PAD - B * SEQ), (0, 0)))

    out = pl.pallas_call(
        fused_vit_kernel,
        out_shape=jax.ShapeDtypeStruct((ROWS_PAD, LANES), jnp.float32),
    )(patches_pad, slab)
    return out[:B * SEQ, :NUM_LABELS].reshape(B, SEQ, NUM_LABELS)


# ---------------- parameter init (deterministic, linears stored (in, out)) ---
def init_params(key):
    scale = 0.02
    n_rand = 6 + 12 * NUM_LAYERS
    keys = iter(jax.random.split(key, n_rand))

    def nrm(shape):
        return scale * jax.random.normal(next(keys), shape, dtype=jnp.float32)

    params = {
        "patch_w": nrm((CPP, HIDDEN)),
        "patch_b": nrm((1, HIDDEN)),
        "cls_token": nrm((1, 1, HIDDEN)),
        "pos_emb": nrm((1, SEQ, HIDDEN)),
        "final_ln_g": jnp.ones((1, HIDDEN), jnp.float32),
        "final_ln_b": jnp.zeros((1, HIDDEN), jnp.float32),
        "cls_w": nrm((HIDDEN, NUM_LABELS)),
        "cls_b": nrm((1, NUM_LABELS)),
        "layers": [],
    }
    for _ in range(NUM_LAYERS):
        lp = {
            "ln1_g": jnp.ones((1, HIDDEN), jnp.float32),
            "ln1_b": jnp.zeros((1, HIDDEN), jnp.float32),
            "wq": nrm((HIDDEN, HIDDEN)), "bq": nrm((1, HIDDEN)),
            "wk": nrm((HIDDEN, HIDDEN)), "bk": nrm((1, HIDDEN)),
            "wv": nrm((HIDDEN, HIDDEN)), "bv": nrm((1, HIDDEN)),
            "wo": nrm((HIDDEN, HIDDEN)), "bo": nrm((1, HIDDEN)),
            "ln2_g": jnp.ones((1, HIDDEN), jnp.float32),
            "ln2_b": jnp.zeros((1, HIDDEN), jnp.float32),
            "w1": nrm((HIDDEN, INTERMEDIATE)), "b1": nrm((1, INTERMEDIATE)),
            "w2": nrm((INTERMEDIATE, HIDDEN)), "b2": nrm((1, HIDDEN)),
        }
        params["layers"].append(lp)
    return params


# ---------------- plain-JAX reference (exact GELU / exact softmax) ----------
def reference_forward(pixel_values, params):
    B = pixel_values.shape[0]
    patches = extract_patches(pixel_values)
    emb = patches @ params["patch_w"] + params["patch_b"]
    cls = jnp.broadcast_to(params["cls_token"], (B, 1, HIDDEN))
    x = jnp.concatenate([cls, emb], axis=1) + params["pos_emb"]
    for lp in params["layers"]:
        h = _layernorm(x, lp["ln1_g"], lp["ln1_b"])
        q = h @ lp["wq"] + lp["bq"]
        k = h @ lp["wk"] + lp["bk"]
        v = h @ lp["wv"] + lp["bv"]
        q = q.reshape(B, SEQ, NUM_HEADS, HEAD_DIM).transpose(0, 2, 1, 3)
        k = k.reshape(B, SEQ, NUM_HEADS, HEAD_DIM).transpose(0, 2, 1, 3)
        v = v.reshape(B, SEQ, NUM_HEADS, HEAD_DIM).transpose(0, 2, 1, 3)
        scores = jnp.einsum("bhqd,bhkd->bhqk", q, k) / math.sqrt(HEAD_DIM)
        probs = jax.nn.softmax(scores, axis=-1)
        ctx = jnp.einsum("bhqk,bhkd->bhqd", probs, v)
        ctx = ctx.transpose(0, 2, 1, 3).reshape(B, SEQ, HIDDEN)
        x = x + (ctx @ lp["wo"] + lp["bo"])
        h2 = _layernorm(x, lp["ln2_g"], lp["ln2_b"])
        inter = jax.nn.gelu(h2 @ lp["w1"] + lp["b1"], approximate=False)
        x = x + (inter @ lp["w2"] + lp["b2"])
    h = _layernorm(x, params["final_ln_g"], params["final_ln_b"])
    return h @ params["cls_w"] + params["cls_b"]


if __name__ == "__main__":
    key = jax.random.PRNGKey(0)
    pkey, xkey = jax.random.split(key)
    params = init_params(pkey)
    slab = pack_params(params)
    pixel_values = jax.random.normal(
        xkey, (BATCH, NUM_CHANNELS, IMAGE_SIZE, IMAGE_SIZE), dtype=jnp.float32
    )

    fwd = jax.jit(deepspeed_vit_forward)
    out = jax.block_until_ready(fwd(pixel_values, slab))
    assert out.shape == (BATCH, SEQ, NUM_LABELS), out.shape

    ref = jax.block_until_ready(reference_forward(pixel_values, params))
    max_err = float(jnp.max(jnp.abs(out - ref)))
    assert jnp.allclose(out, ref, atol=2e-3, rtol=2e-3), max_err
    print("KERNEL_OK")
</pallas_src>

<mosaic_0001>
module attributes {stable_mosaic.version = 11 : i64} {
  func.func @fused_vit_kernel(%arg0: memref<40x64xf32, #tpu.memory_space<vmem>>, %arg1: memref<480x128xf32, #tpu.memory_space<vmem>>, %arg2: memref<40x128xf32, #tpu.memory_space<vmem>>) attributes {dimension_semantics = [], scalar_prefetch = 0 : i64, scratch_operands = 0 : i64, tpu.core_type = #tpu.core_type<tc>} {
    %c0 = arith.constant 0 : index
    %c0_0 = arith.constant 0 : index
    %0 = vector.load %arg0[%c0, %c0_0] : memref<40x64xf32, #tpu.memory_space<vmem>>, vector<40x64xf32>
    %c0_1 = arith.constant 0 : index
    %c0_2 = arith.constant 0 : index
    %1 = vector.load %arg1[%c0_1, %c0_2] : memref<480x128xf32, #tpu.memory_space<vmem>>, vector<64x32xf32>
    %cst = arith.constant dense<0.000000e+00> : vector<40x32xf32>
    %2 = tpu.matmul %0, %1, %cst {dimension_numbers = #tpu.dot_dimension_numbers<[1], [0], [0], [1], [0, 0, 1, 1], [], []>} : vector<40x64xf32>, vector<64x32xf32>, vector<40x32xf32> -> vector<40x32xf32>
    %c64 = arith.constant 64 : index
    %c0_3 = arith.constant 0 : index
    %3 = vector.load %arg1[%c64, %c0_3] : memref<480x128xf32, #tpu.memory_space<vmem>>, vector<40x32xf32>
    %4 = arith.addf %2, %3 : vector<40x32xf32>
    %5 = tpu.iota {dimensions = array<i32: 0>} : vector<40x40xi32>
    %6 = tpu.iota {dimensions = array<i32: 1>} : vector<40x40xi32>
    %c0_i32 = arith.constant 0 : i32
    %7 = vector.broadcast %c0_i32 : i32 to vector<40x40xi32>
    %c0_i32_4 = arith.constant 0 : i32
    %8 = vector.broadcast %c0_i32_4 : i32 to vector<40x40xi32>
    %c17_i32 = arith.constant 17 : i32
    %9 = vector.broadcast %c17_i32 : i32 to vector<40x40xi32>
    %10 = arith.cmpi sge, %5, %9 : vector<40x40xi32>
    %11 = arith.extui %10 : vector<40x40xi1> to vector<40x40xi32>
    %12 = arith.addi %7, %11 : vector<40x40xi32>
    %c17_i32_5 = arith.constant 17 : i32
    %13 = vector.broadcast %c17_i32_5 : i32 to vector<40x40xi32>
    %14 = arith.cmpi sge, %6, %13 : vector<40x40xi32>
    %15 = arith.extui %14 : vector<40x40xi1> to vector<40x40xi32>
    %16 = arith.addi %8, %15 : vector<40x40xi32>
    %c34_i32 = arith.constant 34 : i32
    %17 = vector.broadcast %c34_i32 : i32 to vector<40x40xi32>
    %18 = arith.cmpi sge, %5, %17 : vector<40x40xi32>
    %19 = arith.extui %18 : vector<40x40xi1> to vector<40x40xi32>
    %20 = arith.addi %12, %19 : vector<40x40xi32>
    %c34_i32_6 = arith.constant 34 : i32
    %21 = vector.broadcast %c34_i32_6 : i32 to vector<40x40xi32>
    %22 = arith.cmpi sge, %6, %21 : vector<40x40xi32>
    %23 = arith.extui %22 : vector<40x40xi1> to vector<40x40xi32>
    %24 = arith.addi %16, %23 : vector<40x40xi32>
    %25 = arith.cmpi eq, %20, %24 : vector<40x40xi32>
    %c104 = arith.constant 104 : index
    %c0_7 = arith.constant 0 : index
    %26 = vector.load %arg1[%c104, %c0_7] : memref<480x128xf32, #tpu.memory_space<vmem>>, vector<1x32xf32>
    %c105 = arith.constant 105 : index
    %c0_8 = arith.constant 0 : index
    %27 = vector.load %arg1[%c105, %c0_8] : memref<480x128xf32, #tpu.memory_space<vmem>>, vector<1x32xf32>
    %cst_9 = arith.constant dense<0.000000e+00> : vector<40xf32>
    %28 = vector.multi_reduction <add>, %4, %cst_9 [1] : vector<40x32xf32> to vector<40xf32>
    %29 = vector.shape_cast %28 : vector<40xf32> to vector<40x1xf32>
    %cst_10 = arith.constant 3.200000e+01 : f32
    %30 = vector.broadcast %cst_10 : f32 to vector<40x1xf32>
    %31 = arith.divf %29, %30 : vector<40x1xf32>
    %32 = vector.broadcast %31 : vector<40x1xf32> to vector<40x32xf32>
    %33 = arith.subf %4, %32 : vector<40x32xf32>
    %34 = arith.mulf %33, %33 : vector<40x32xf32>
    %cst_11 = arith.constant dense<0.000000e+00> : vector<40xf32>
    %35 = vector.multi_reduction <add>, %34, %cst_11 [1] : vector<40x32xf32> to vector<40xf32>
    %36 = vector.shape_cast %35 : vector<40xf32> to vector<40x1xf32>
    %cst_12 = arith.constant 3.200000e+01 : f32
    %37 = vector.broadcast %cst_12 : f32 to vector<40x1xf32>
    %38 = arith.divf %36, %37 : vector<40x1xf32>
    %39 = vector.broadcast %31 : vector<40x1xf32> to vector<40x32xf32>
    %40 = arith.subf %4, %39 : vector<40x32xf32>
    %cst_13 = arith.constant 9.99999996E-13 : f32
    %41 = vector.broadcast %cst_13 : f32 to vector<40x1xf32>
    %42 = arith.addf %38, %41 : vector<40x1xf32>
    %43 = math.rsqrt %42 : vector<40x1xf32>
    %44 = vector.broadcast %43 : vector<40x1xf32> to vector<40x32xf32>
    %45 = arith.mulf %40, %44 : vector<40x32xf32>
    %46 = vector.broadcast %26 : vector<1x32xf32> to vector<40x32xf32>
    %47 = arith.mulf %45, %46 : vector<40x32xf32>
    %48 = vector.broadcast %27 : vector<1x32xf32> to vector<40x32xf32>
    %49 = arith.addf %47, %48 : vector<40x32xf32>
    %c112 = arith.constant 112 : index
    %c0_14 = arith.constant 0 : index
    %50 = vector.load %arg1[%c112, %c0_14] : memref<480x128xf32, #tpu.memory_space<vmem>>, vector<32x96xf32>
    %cst_15 = arith.constant dense<0.000000e+00> : vector<40x96xf32>
    %51 = tpu.matmul %49, %50, %cst_15 {dimension_numbers = #tpu.dot_dimension_numbers<[1], [0], [0], [1], [0, 0, 1, 1], [], []>} : vector<40x32xf32>, vector<32x96xf32>, vector<40x96xf32> -> vector<40x96xf32>
    %c106 = arith.constant 106 : index
    %c0_16 = arith.constant 0 : index
    %52 = vector.load %arg1[%c106, %c0_16] : memref<480x128xf32, #tpu.memory_space<vmem>>, vector<1x96xf32>
    %53 = vector.broadcast %52 : vector<1x96xf32> to vector<40x96xf32>
    %54 = arith.addf %51, %53 : vector<40x96xf32>
    %55 = vector.extract_strided_slice %54 {offsets = [0, 0], sizes = [40, 8], strides = [1, 1]} : vector<40x96xf32> to vector<40x8xf32>
    %56 = vector.extract_strided_slice %54 {offsets = [0, 32], sizes = [40, 8], strides = [1, 1]} : vector<40x96xf32> to vector<40x8xf32>
    %57 = vector.extract_strided_slice %54 {offsets = [0, 64], sizes = [40, 8], strides = [1, 1]} : vector<40x96xf32> to vector<40x8xf32>
    %cst_17 = arith.constant dense<0.000000e+00> : vector<40x40xf32>
    %58 = tpu.matmul %55, %56, %cst_17 {dimension_numbers = #tpu.dot_dimension_numbers<[1], [1], [0], [0], [0, 0, 1, 0], [], []>} : vector<40x8xf32>, vector<40x8xf32>, vector<40x40xf32> -> vector<40x40xf32>
    %cst_18 = arith.constant -1.000000e+09 : f32
    %59 = vector.broadcast %cst_18 : f32 to vector<40x40xf32>
    %60 = arith.select %25, %58, %59 : vector<40x40xi1>, vector<40x40xf32>
    %cst_19 = arith.constant dense<0xFF800000> : vector<40xf32>
    %61 = vector.multi_reduction <maximumf>, %60, %cst_19 [1] : vector<40x40xf32> to vector<40xf32>
    %62 = vector.shape_cast %61 : vector<40xf32> to vector<40x1xf32>
    %63 = vector.broadcast %62 : vector<40x1xf32> to vector<40x40xf32>
    %64 = arith.subf %60, %63 : vector<40x40xf32>
    %65 = math.exp %64 : vector<40x40xf32>
    %cst_20 = arith.constant dense<0.000000e+00> : vector<40xf32>
    %66 = vector.multi_reduction <add>, %65, %cst_20 [1] : vector<40x40xf32> to vector<40xf32>
    %67 = vector.shape_cast %66 : vector<40xf32> to vector<40x1xf32>
    %68 = tpu.reciprocal %67 {approx = true} : vector<40x1xf32> -> vector<40x1xf32>
    %69 = vector.broadcast %68 : vector<40x1xf32> to vector<40x40xf32>
    %70 = arith.mulf %65, %69 : vector<40x40xf32>
    %cst_21 = arith.constant dense<0.000000e+00> : vector<40x8xf32>
    %71 = tpu.matmul %70, %57, %cst_21 {dimension_numbers = #tpu.dot_dimension_numbers<[1], [0], [0], [1], [0, 0, 1, 1], [], []>} : vector<40x40xf32>, vector<40x8xf32>, vector<40x8xf32> -> vector<40x8xf32>
    %72 = vector.extract_strided_slice %54 {offsets = [0, 8], sizes = [40, 8], strides = [1, 1]} : vector<40x96xf32> to vector<40x8xf32>
    %73 = vector.extract_strided_slice %54 {offsets = [0, 40], sizes = [40, 8], strides = [1, 1]} : vector<40x96xf32> to vector<40x8xf32>
    %74 = vector.extract_strided_slice %54 {offsets = [0, 72], sizes = [40, 8], strides = [1, 1]} : vector<40x96xf32> to vector<40x8xf32>
    %cst_22 = arith.constant dense<0.000000e+00> : vector<40x40xf32>
    %75 = tpu.matmul %72, %73, %cst_22 {dimension_numbers = #tpu.dot_dimension_numbers<[1], [1], [0], [0], [0, 0, 1, 0], [], []>} : vector<40x8xf32>, vector<40x8xf32>, vector<40x40xf32> -> vector<40x40xf32>
    %cst_23 = arith.constant -1.000000e+09 : f32
    %76 = vector.broadcast %cst_23 : f32 to vector<40x40xf32>
    %77 = arith.select %25, %75, %76 : vector<40x40xi1>, vector<40x40xf32>
    %cst_24 = arith.constant dense<0xFF800000> : vector<40xf32>
    %78 = vector.multi_reduction <maximumf>, %77, %cst_24 [1] : vector<40x40xf32> to vector<40xf32>
    %79 = vector.shape_cast %78 : vector<40xf32> to vector<40x1xf32>
    %80 = vector.broadcast %79 : vector<40x1xf32> to vector<40x40xf32>
    %81 = arith.subf %77, %80 : vector<40x40xf32>
    %82 = math.exp %81 : vector<40x40xf32>
    %cst_25 = arith.constant dense<0.000000e+00> : vector<40xf32>
    %83 = vector.multi_reduction <add>, %82, %cst_25 [1] : vector<40x40xf32> to vector<40xf32>
    %84 = vector.shape_cast %83 : vector<40xf32> to vector<40x1xf32>
    %85 = tpu.reciprocal %84 {approx = true} : vector<40x1xf32> -> vector<40x1xf32>
    %86 = vector.broadcast %85 : vector<40x1xf32> to vector<40x40xf32>
    %87 = arith.mulf %82, %86 : vector<40x40xf32>
    %cst_26 = arith.constant dense<0.000000e+00> : vector<40x8xf32>
    %88 = tpu.matmul %87, %74, %cst_26 {dimension_numbers = #tpu.dot_dimension_numbers<[1], [0], [0], [1], [0, 0, 1, 1], [], []>} : vector<40x40xf32>, vector<40x8xf32>, vector<40x8xf32> -> vector<40x8xf32>
    %89 = vector.extract_strided_slice %54 {offsets = [0, 16], sizes = [40, 8], strides = [1, 1]} : vector<40x96xf32> to vector<40x8xf32>
    %90 = vector.extract_strided_slice %54 {offsets = [0, 48], sizes = [40, 8], strides = [1, 1]} : vector<40x96xf32> to vector<40x8xf32>
    %91 = vector.extract_strided_slice %54 {offsets = [0, 80], sizes = [40, 8], strides = [1, 1]} : vector<40x96xf32> to vector<40x8xf32>
    %cst_27 = arith.constant dense<0.000000e+00> : vector<40x40xf32>
    %92 = tpu.matmul %89, %90, %cst_27 {dimension_numbers = #tpu.dot_dimension_numbers<[1], [1], [0], [0], [0, 0, 1, 0], [], []>} : vector<40x8xf32>, vector<40x8xf32>, vector<40x40xf32> -> vector<40x40xf32>
    %cst_28 = arith.constant -1.000000e+09 : f32
    %93 = vector.broadcast %cst_28 : f32 to vector<40x40xf32>
    %94 = arith.select %25, %92, %93 : vector<40x40xi1>, vector<40x40xf32>
    %cst_29 = arith.constant dense<0xFF800000> : vector<40xf32>
    %95 = vector.multi_reduction <maximumf>, %94, %cst_29 [1] : vector<40x40xf32> to vector<40xf32>
    %96 = vector.shape_cast %95 : vector<40xf32> to vector<40x1xf32>
    %97 = vector.broadcast %96 : vector<40x1xf32> to vector<40x40xf32>
    %98 = arith.subf %94, %97 : vector<40x40xf32>
    %99 = math.exp %98 : vector<40x40xf32>
    %cst_30 = arith.constant dense<0.000000e+00> : vector<40xf32>
    %100 = vector.multi_reduction <add>, %99, %cst_30 [1] : vector<40x40xf32> to vector<40xf32>
    %101 = vector.shape_cast %100 : vector<40xf32> to vector<40x1xf32>
    %102 = tpu.reciprocal %101 {approx = true} : vector<40x1xf32> -> vector<40x1xf32>
    %103 = vector.broadcast %102 : vector<40x1xf32> to vector<40x40xf32>
    %104 = arith.mulf %99, %103 : vector<40x40xf32>
    %cst_31 = arith.constant dense<0.000000e+00> : vector<40x8xf32>
    %105 = tpu.matmul %104, %91, %cst_31 {dimension_numbers = #tpu.dot_dimension_numbers<[1], [0], [0], [1], [0, 0, 1, 1], [], []>} : vector<40x40xf32>, vector<40x8xf32>, vector<40x8xf32> -> vector<40x8xf32>
    %106 = vector.extract_strided_slice %54 {offsets = [0, 24], sizes = [40, 8], strides = [1, 1]} : vector<40x96xf32> to vector<40x8xf32>
    %107 = vector.extract_strided_slice %54 {offsets = [0, 56], sizes = [40, 8], strides = [1, 1]} : vector<40x96xf32> to vector<40x8xf32>
    %108 = vector.extract_strided_slice %54 {offsets = [0, 88], sizes = [40, 8], strides = [1, 1]} : vector<40x96xf32> to vector<40x8xf32>
    %cst_32 = arith.constant dense<0.000000e+00> : vector<40x40xf32>
    %109 = tpu.matmul %106, %107, %cst_32 {dimension_numbers = #tpu.dot_dimension_numbers<[1], [1], [0], [0], [0, 0, 1, 0], [], []>} : vector<40x8xf32>, vector<40x8xf32>, vector<40x40xf32> -> vector<40x40xf32>
    %cst_33 = arith.constant -1.000000e+09 : f32
    %110 = vector.broadcast %cst_33 : f32 to vector<40x40xf32>
    %111 = arith.select %25, %109, %110 : vector<40x40xi1>, vector<40x40xf32>
    %cst_34 = arith.constant dense<0xFF800000> : vector<40xf32>
    %112 = vector.multi_reduction <maximumf>, %111, %cst_34 [1] : vector<40x40xf32> to vector<40xf32>
    %113 = vector.shape_cast %112 : vector<40xf32> to vector<40x1xf32>
    %114 = vector.broadcast %113 : vector<40x1xf32> to vector<40x40xf32>
    %115 = arith.subf %111, %114 : vector<40x40xf32>
    %116 = math.exp %115 : vector<40x40xf32>
    %cst_35 = arith.constant dense<0.000000e+00> : vector<40xf32>
    %117 = vector.multi_reduction <add>, %116, %cst_35 [1] : vector<40x40xf32> to vector<40xf32>
    %118 = vector.shape_cast %117 : vector<40xf32> to vector<40x1xf32>
    %119 = tpu.reciprocal %118 {approx = true} : vector<40x1xf32> -> vector<40x1xf32>
    %120 = vector.broadcast %119 : vector<40x1xf32> to vector<40x40xf32>
    %121 = arith.mulf %116, %120 : vector<40x40xf32>
    %cst_36 = arith.constant dense<0.000000e+00> : vector<40x8xf32>
    %122 = tpu.matmul %121, %108, %cst_36 {dimension_numbers = #tpu.dot_dimension_numbers<[1], [0], [0], [1], [0, 0, 1, 1], [], []>} : vector<40x40xf32>, vector<40x8xf32>, vector<40x8xf32> -> vector<40x8xf32>
    %123 = tpu.concatenate %71, %88, %105, %122 in 1 : vector<40x8xf32>, vector<40x8xf32>, vector<40x8xf32>, vector<40x8xf32> -> vector<40x32xf32>
    %c144 = arith.constant 144 : index
    %c0_37 = arith.constant 0 : index
    %124 = vector.load %arg1[%c144, %c0_37] : memref<480x128xf32, #tpu.memory_space<vmem>>, vector<32x32xf32>
    %cst_38 = arith.constant dense<0.000000e+00> : vector<40x32xf32>
    %125 = tpu.matmul %123, %124, %cst_38 {dimension_numbers = #tpu.dot_dimension_numbers<[1], [0], [0], [1], [0, 0, 1, 1], [], []>} : vector<40x32xf32>, vector<32x32xf32>, vector<40x32xf32> -> vector<40x32xf32>
    %126 = arith.addf %4, %125 : vector<40x32xf32>
    %c107 = arith.constant 107 : index
    %c0_39 = arith.constant 0 : index
    %127 = vector.load %arg1[%c107, %c0_39] : memref<480x128xf32, #tpu.memory_space<vmem>>, vector<1x32xf32>
    %128 = vector.broadcast %127 : vector<1x32xf32> to vector<40x32xf32>
    %129 = arith.addf %126, %128 : vector<40x32xf32>
    %c108 = arith.constant 108 : index
    %c0_40 = arith.constant 0 : index
    %130 = vector.load %arg1[%c108, %c0_40] : memref<480x128xf32, #tpu.memory_space<vmem>>, vector<1x32xf32>
    %c109 = arith.constant 109 : index
    %c0_41 = arith.constant 0 : index
    %131 = vector.load %arg1[%c109, %c0_41] : memref<480x128xf32, #tpu.memory_space<vmem>>, vector<1x32xf32>
    %cst_42 = arith.constant dense<0.000000e+00> : vector<40xf32>
    %132 = vector.multi_reduction <add>, %129, %cst_42 [1] : vector<40x32xf32> to vector<40xf32>
    %133 = vector.shape_cast %132 : vector<40xf32> to vector<40x1xf32>
    %cst_43 = arith.constant 3.200000e+01 : f32
    %134 = vector.broadcast %cst_43 : f32 to vector<40x1xf32>
    %135 = arith.divf %133, %134 : vector<40x1xf32>
    %136 = vector.broadcast %135 : vector<40x1xf32> to vector<40x32xf32>
    %137 = arith.subf %129, %136 : vector<40x32xf32>
    %138 = arith.mulf %137, %137 : vector<40x32xf32>
    %cst_44 = arith.constant dense<0.000000e+00> : vector<40xf32>
    %139 = vector.multi_reduction <add>, %138, %cst_44 [1] : vector<40x32xf32> to vector<40xf32>
    %140 = vector.shape_cast %139 : vector<40xf32> to vector<40x1xf32>
    %cst_45 = arith.constant 3.200000e+01 : f32
    %141 = vector.broadcast %cst_45 : f32 to vector<40x1xf32>
    %142 = arith.divf %140, %141 : vector<40x1xf32>
    %143 = vector.broadcast %135 : vector<40x1xf32> to vector<40x32xf32>
    %144 = arith.subf %129, %143 : vector<40x32xf32>
    %cst_46 = arith.constant 9.99999996E-13 : f32
    %145 = vector.broadcast %cst_46 : f32 to vector<40x1xf32>
    %146 = arith.addf %142, %145 : vector<40x1xf32>
    %147 = math.rsqrt %146 : vector<40x1xf32>
    %148 = vector.broadcast %147 : vector<40x1xf32> to vector<40x32xf32>
    %149 = arith.mulf %144, %148 : vector<40x32xf32>
    %150 = vector.broadcast %130 : vector<1x32xf32> to vector<40x32xf32>
    %151 = arith.mulf %149, %150 : vector<40x32xf32>
    %152 = vector.broadcast %131 : vector<1x32xf32> to vector<40x32xf32>
    %153 = arith.addf %151, %152 : vector<40x32xf32>
    %c176 = arith.constant 176 : index
    %c0_47 = arith.constant 0 : index
    %154 = vector.load %arg1[%c176, %c0_47] : memref<480x128xf32, #tpu.memory_space<vmem>>, vector<32x64xf32>
    %cst_48 = arith.constant dense<0.000000e+00> : vector<40x64xf32>
    %155 = tpu.matmul %153, %154, %cst_48 {dimension_numbers = #tpu.dot_dimension_numbers<[1], [0], [0], [1], [0, 0, 1, 1], [], []>} : vector<40x32xf32>, vector<32x64xf32>, vector<40x64xf32> -> vector<40x64xf32>
    %c110 = arith.constant 110 : index
    %c0_49 = arith.constant 0 : index
    %156 = vector.load %arg1[%c110, %c0_49] : memref<480x128xf32, #tpu.memory_space<vmem>>, vector<1x64xf32>
    %157 = vector.broadcast %156 : vector<1x64xf32> to vector<40x64xf32>
    %158 = arith.addf %155, %157 : vector<40x64xf32>
    %159 = arith.mulf %158, %158 : vector<40x64xf32>
    %160 = arith.mulf %158, %159 : vector<40x64xf32>
    %cst_50 = arith.constant 4.471500e-02 : f32
    %161 = vector.broadcast %cst_50 : f32 to vector<40x64xf32>
    %162 = arith.mulf %161, %160 : vector<40x64xf32>
    %163 = arith.addf %158, %162 : vector<40x64xf32>
    %cst_51 = arith.constant 0.797884583 : f32
    %164 = vector.broadcast %cst_51 : f32 to vector<40x64xf32>
    %165 = arith.mulf %164, %163 : vector<40x64xf32>
    %166 = math.tanh %165 : vector<40x64xf32>
    %cst_52 = arith.constant 1.000000e+00 : f32
    %167 = vector.broadcast %cst_52 : f32 to vector<40x64xf32>
    %168 = arith.addf %167, %166 : vector<40x64xf32>
    %cst_53 = arith.constant 5.000000e-01 : f32
    %169 = vector.broadcast %cst_53 : f32 to vector<40x64xf32>
    %170 = arith.mulf %169, %168 : vector<40x64xf32>
    %171 = arith.mulf %158, %170 : vector<40x64xf32>
    %c208 = arith.constant 208 : index
    %c0_54 = arith.constant 0 : index
    %172 = vector.load %arg1[%c208, %c0_54] : memref<480x128xf32, #tpu.memory_space<vmem>>, vector<64x32xf32>
    %cst_55 = arith.constant dense<0.000000e+00> : vector<40x32xf32>
    %173 = tpu.matmul %171, %172, %cst_55 {dimension_numbers = #tpu.dot_dimension_numbers<[1], [0], [0], [1], [0, 0, 1, 1], [], []>} : vector<40x64xf32>, vector<64x32xf32>, vector<40x32xf32> -> vector<40x32xf32>
    %174 = arith.addf %129, %173 : vector<40x32xf32>
    %c111 = arith.constant 111 : index
    %c0_56 = arith.constant 0 : index
    %175 = vector.load %arg1[%c111, %c0_56] : memref<480x128xf32, #tpu.memory_space<vmem>>, vector<1x32xf32>
    %176 = vector.broadcast %175 : vector<1x32xf32> to vector<40x32xf32>
    %177 = arith.addf %174, %176 : vector<40x32xf32>
    %c272 = arith.constant 272 : index
    %c0_57 = arith.constant 0 : index
    %178 = vector.load %arg1[%c272, %c0_57] : memref<480x128xf32, #tpu.memory_space<vmem>>, vector<1x32xf32>
    %c273 = arith.constant 273 : index
    %c0_58 = arith.constant 0 : index
    %179 = vector.load %arg1[%c273, %c0_58] : memref<480x128xf32, #tpu.memory_space<vmem>>, vector<1x32xf32>
    %cst_59 = arith.constant dense<0.000000e+00> : vector<40xf32>
    %180 = vector.multi_reduction <add>, %177, %cst_59 [1] : vector<40x32xf32> to vector<40xf32>
    %181 = vector.shape_cast %180 : vector<40xf32> to vector<40x1xf32>
    %cst_60 = arith.constant 3.200000e+01 : f32
    %182 = vector.broadcast %cst_60 : f32 to vector<40x1xf32>
    %183 = arith.divf %181, %182 : vector<40x1xf32>
    %184 = vector.broadcast %183 : vector<40x1xf32> to vector<40x32xf32>
    %185 = arith.subf %177, %184 : vector<40x32xf32>
    %186 = arith.mulf %185, %185 : vector<40x32xf32>
    %cst_61 = arith.constant dense<0.000000e+00> : vector<40xf32>
    %187 = vector.multi_reduction <add>, %186, %cst_61 [1] : vector<40x32xf32> to vector<40xf32>
    %188 = vector.shape_cast %187 : vector<40xf32> to vector<40x1xf32>
    %cst_62 = arith.constant 3.200000e+01 : f32
    %189 = vector.broadcast %cst_62 : f32 to vector<40x1xf32>
    %190 = arith.divf %188, %189 : vector<40x1xf32>
    %191 = vector.broadcast %183 : vector<40x1xf32> to vector<40x32xf32>
    %192 = arith.subf %177, %191 : vector<40x32xf32>
    %cst_63 = arith.constant 9.99999996E-13 : f32
    %193 = vector.broadcast %cst_63 : f32 to vector<40x1xf32>
    %194 = arith.addf %190, %193 : vector<40x1xf32>
    %195 = math.rsqrt %194 : vector<40x1xf32>
    %196 = vector.broadcast %195 : vector<40x1xf32> to vector<40x32xf32>
    %197 = arith.mulf %192, %196 : vector<40x32xf32>
    %198 = vector.broadcast %178 : vector<1x32xf32> to vector<40x32xf32>
    %199 = arith.mulf %197, %198 : vector<40x32xf32>
    %200 = vector.broadcast %179 : vector<1x32xf32> to vector<40x32xf32>
    %201 = arith.addf %199, %200 : vector<40x32xf32>
    %c280 = arith.constant 280 : index
    %c0_64 = arith.constant 0 : index
    %202 = vector.load %arg1[%c280, %c0_64] : memref<480x128xf32, #tpu.memory_space<vmem>>, vector<32x96xf32>
    %cst_65 = arith.constant dense<0.000000e+00> : vector<40x96xf32>
    %203 = tpu.matmul %201, %202, %cst_65 {dimension_numbers = #tpu.dot_dimension_numbers<[1], [0], [0], [1], [0, 0, 1, 1], [], []>} : vector<40x32xf32>, vector<32x96xf32>, vector<40x96xf32> -> vector<40x96xf32>
    %c274 = arith.constant 274 : index
    %c0_66 = arith.constant 0 : index
    %204 = vector.load %arg1[%c274, %c0_66] : memref<480x128xf32, #tpu.memory_space<vmem>>, vector<1x96xf32>
    %205 = vector.broadcast %204 : vector<1x96xf32> to vector<40x96xf32>
    %206 = arith.addf %203, %205 : vector<40x96xf32>
    %207 = vector.extract_strided_slice %206 {offsets = [0, 0], sizes = [40, 8], strides = [1, 1]} : vector<40x96xf32> to vector<40x8xf32>
    %208 = vector.extract_strided_slice %206 {offsets = [0, 32], sizes = [40, 8], strides = [1, 1]} : vector<40x96xf32> to vector<40x8xf32>
    %209 = vector.extract_strided_slice %206 {offsets = [0, 64], sizes = [40, 8], strides = [1, 1]} : vector<40x96xf32> to vector<40x8xf32>
    %cst_67 = arith.constant dense<0.000000e+00> : vector<40x40xf32>
    %210 = tpu.matmul %207, %208, %cst_67 {dimension_numbers = #tpu.dot_dimension_numbers<[1], [1], [0], [0], [0, 0, 1, 0], [], []>} : vector<40x8xf32>, vector<40x8xf32>, vector<40x40xf32> -> vector<40x40xf32>
    %cst_68 = arith.constant -1.000000e+09 : f32
    %211 = vector.broadcast %cst_68 : f32 to vector<40x40xf32>
    %212 = arith.select %25, %210, %211 : vector<40x40xi1>, vector<40x40xf32>
    %cst_69 = arith.constant dense<0xFF800000> : vector<40xf32>
    %213 = vector.multi_reduction <maximumf>, %212, %cst_69 [1] : vector<40x40xf32> to vector<40xf32>
    %214 = vector.shape_cast %213 : vector<40xf32> to vector<40x1xf32>
    %215 = vector.broadcast %214 : vector<40x1xf32> to vector<40x40xf32>
    %216 = arith.subf %212, %215 : vector<40x40xf32>
    %217 = math.exp %216 : vector<40x40xf32>
    %cst_70 = arith.constant dense<0.000000e+00> : vector<40xf32>
    %218 = vector.multi_reduction <add>, %217, %cst_70 [1] : vector<40x40xf32> to vector<40xf32>
    %219 = vector.shape_cast %218 : vector<40xf32> to vector<40x1xf32>
    %220 = tpu.reciprocal %219 {approx = true} : vector<40x1xf32> -> vector<40x1xf32>
    %221 = vector.broadcast %220 : vector<40x1xf32> to vector<40x40xf32>
    %222 = arith.mulf %217, %221 : vector<40x40xf32>
    %cst_71 = arith.constant dense<0.000000e+00> : vector<40x8xf32>
    %223 = tpu.matmul %222, %209, %cst_71 {dimension_numbers = #tpu.dot_dimension_numbers<[1], [0], [0], [1], [0, 0, 1, 1], [], []>} : vector<40x40xf32>, vector<40x8xf32>, vector<40x8xf32> -> vector<40x8xf32>
    %224 = vector.extract_strided_slice %206 {offsets = [0, 8], sizes = [40, 8], strides = [1, 1]} : vector<40x96xf32> to vector<40x8xf32>
    %225 = vector.extract_strided_slice %206 {offsets = [0, 40], sizes = [40, 8], strides = [1, 1]} : vector<40x96xf32> to vector<40x8xf32>
    %226 = vector.extract_strided_slice %206 {offsets = [0, 72], sizes = [40, 8], strides = [1, 1]} : vector<40x96xf32> to vector<40x8xf32>
    %cst_72 = arith.constant dense<0.000000e+00> : vector<40x40xf32>
    %227 = tpu.matmul %224, %225, %cst_72 {dimension_numbers = #tpu.dot_dimension_numbers<[1], [1], [0], [0], [0, 0, 1, 0], [], []>} : vector<40x8xf32>, vector<40x8xf32>, vector<40x40xf32> -> vector<40x40xf32>
    %cst_73 = arith.constant -1.000000e+09 : f32
    %228 = vector.broadcast %cst_73 : f32 to vector<40x40xf32>
    %229 = arith.select %25, %227, %228 : vector<40x40xi1>, vector<40x40xf32>
    %cst_74 = arith.constant dense<0xFF800000> : vector<40xf32>
    %230 = vector.multi_reduction <maximumf>, %229, %cst_74 [1] : vector<40x40xf32> to vector<40xf32>
    %231 = vector.shape_cast %230 : vector<40xf32> to vector<40x1xf32>
    %232 = vector.broadcast %231 : vector<40x1xf32> to vector<40x40xf32>
    %233 = arith.subf %229, %232 : vector<40x40xf32>
    %234 = math.exp %233 : vector<40x40xf32>
    %cst_75 = arith.constant dense<0.000000e+00> : vector<40xf32>
    %235 = vector.multi_reduction <add>, %234, %cst_75 [1] : vector<40x40xf32> to vector<40xf32>
    %236 = vector.shape_cast %235 : vector<40xf32> to vector<40x1xf32>
    %237 = tpu.reciprocal %236 {approx = true} : vector<40x1xf32> -> vector<40x1xf32>
    %238 = vector.broadcast %237 : vector<40x1xf32> to vector<40x40xf32>
    %239 = arith.mulf %234, %238 : vector<40x40xf32>
    %cst_76 = arith.constant dense<0.000000e+00> : vector<40x8xf32>
    %240 = tpu.matmul %239, %226, %cst_76 {dimension_numbers = #tpu.dot_dimension_numbers<[1], [0], [0], [1], [0, 0, 1, 1], [], []>} : vector<40x40xf32>, vector<40x8xf32>, vector<40x8xf32> -> vector<40x8xf32>
    %241 = vector.extract_strided_slice %206 {offsets = [0, 16], sizes = [40, 8], strides = [1, 1]} : vector<40x96xf32> to vector<40x8xf32>
    %242 = vector.extract_strided_slice %206 {offsets = [0, 48], sizes = [40, 8], strides = [1, 1]} : vector<40x96xf32> to vector<40x8xf32>
    %243 = vector.extract_strided_slice %206 {offsets = [0, 80], sizes = [40, 8], strides = [1, 1]} : vector<40x96xf32> to vector<40x8xf32>
    %cst_77 = arith.constant dense<0.000000e+00> : vector<40x40xf32>
    %244 = tpu.matmul %241, %242, %cst_77 {dimension_numbers = #tpu.dot_dimension_numbers<[1], [1], [0], [0], [0, 0, 1, 0], [], []>} : vector<40x8xf32>, vector<40x8xf32>, vector<40x40xf32> -> vector<40x40xf32>
    %cst_78 = arith.constant -1.000000e+09 : f32
    %245 = vector.broadcast %cst_78 : f32 to vector<40x40xf32>
    %246 = arith.select %25, %244, %245 : vector<40x40xi1>, vector<40x40xf32>
    %cst_79 = arith.constant dense<0xFF800000> : vector<40xf32>
    %247 = vector.multi_reduction <maximumf>, %246, %cst_79 [1] : vector<40x40xf32> to vector<40xf32>
    %248 = vector.shape_cast %247 : vector<40xf32> to vector<40x1xf32>
    %249 = vector.broadcast %248 : vector<40x1xf32> to vector<40x40xf32>
    %250 = arith.subf %246, %249 : vector<40x40xf32>
    %251 = math.exp %250 : vector<40x40xf32>
    %cst_80 = arith.constant dense<0.000000e+00> : vector<40xf32>
    %252 = vector.multi_reduction <add>, %251, %cst_80 [1] : vector<40x40xf32> to vector<40xf32>
    %253 = vector.shape_cast %252 : vector<40xf32> to vector<40x1xf32>
    %254 = tpu.reciprocal %253 {approx = true} : vector<40x1xf32> -> vector<40x1xf32>
    %255 = vector.broadcast %254 : vector<40x1xf32> to vector<40x40xf32>
    %256 = arith.mulf %251, %255 : vector<40x40xf32>
    %cst_81 = arith.constant dense<0.000000e+00> : vector<40x8xf32>
    %257 = tpu.matmul %256, %243, %cst_81 {dimension_numbers = #tpu.dot_dimension_numbers<[1], [0], [0], [1], [0, 0, 1, 1], [], []>} : vector<40x40xf32>, vector<40x8xf32>, vector<40x8xf32> -> vector<40x8xf32>
    %258 = vector.extract_strided_slice %206 {offsets = [0, 24], sizes = [40, 8], strides = [1, 1]} : vector<40x96xf32> to vector<40x8xf32>
    %259 = vector.extract_strided_slice %206 {offsets = [0, 56], sizes = [40, 8], strides = [1, 1]} : vector<40x96xf32> to vector<40x8xf32>
    %260 = vector.extract_strided_slice %206 {offsets = [0, 88], sizes = [40, 8], strides = [1, 1]} : vector<40x96xf32> to vector<40x8xf32>
    %cst_82 = arith.constant dense<0.000000e+00> : vector<40x40xf32>
    %261 = tpu.matmul %258, %259, %cst_82 {dimension_numbers = #tpu.dot_dimension_numbers<[1], [1], [0], [0], [0, 0, 1, 0], [], []>} : vector<40x8xf32>, vector<40x8xf32>, vector<40x40xf32> -> vector<40x40xf32>
    %cst_83 = arith.constant -1.000000e+09 : f32
    %262 = vector.broadcast %cst_83 : f32 to vector<40x40xf32>
    %263 = arith.select %25, %261, %262 : vector<40x40xi1>, vector<40x40xf32>
    %cst_84 = arith.constant dense<0xFF800000> : vector<40xf32>
    %264 = vector.multi_reduction <maximumf>, %263, %cst_84 [1] : vector<40x40xf32> to vector<40xf32>
    %265 = vector.shape_cast %264 : vector<40xf32> to vector<40x1xf32>
    %266 = vector.broadcast %265 : vector<40x1xf32> to vector<40x40xf32>
    %267 = arith.subf %263, %266 : vector<40x40xf32>
    %268 = math.exp %267 : vector<40x40xf32>
    %cst_85 = arith.constant dense<0.000000e+00> : vector<40xf32>
    %269 = vector.multi_reduction <add>, %268, %cst_85 [1] : vector<40x40xf32> to vector<40xf32>
    %270 = vector.shape_cast %269 : vector<40xf32> to vector<40x1xf32>
    %271 = tpu.reciprocal %270 {approx = true} : vector<40x1xf32> -> vector<40x1xf32>
    %272 = vector.broadcast %271 : vector<40x1xf32> to vector<40x40xf32>
    %273 = arith.mulf %268, %272 : vector<40x40xf32>
    %cst_86 = arith.constant dense<0.000000e+00> : vector<40x8xf32>
    %274 = tpu.matmul %273, %260, %cst_86 {dimension_numbers = #tpu.dot_dimension_numbers<[1], [0], [0], [1], [0, 0, 1, 1], [], []>} : vector<40x40xf32>, vector<40x8xf32>, vector<40x8xf32> -> vector<40x8xf32>
    %275 = tpu.concatenate %223, %240, %257, %274 in 1 : vector<40x8xf32>, vector<40x8xf32>, vector<40x8xf32>, vector<40x8xf32> -> vector<40x32xf32>
    %c312 = arith.constant 312 : index
    %c0_87 = arith.constant 0 : index
    %276 = vector.load %arg1[%c312, %c0_87] : memref<480x128xf32, #tpu.memory_space<vmem>>, vector<32x32xf32>
    %cst_88 = arith.constant dense<0.000000e+00> : vector<40x32xf32>
    %277 = tpu.matmul %275, %276, %cst_88 {dimension_numbers = #tpu.dot_dimension_numbers<[1], [0], [0], [1], [0, 0, 1, 1], [], []>} : vector<40x32xf32>, vector<32x32xf32>, vector<40x32xf32> -> vector<40x32xf32>
    %278 = arith.addf %177, %277 : vector<40x32xf32>
    %c275 = arith.constant 275 : index
    %c0_89 = arith.constant 0 : index
    %279 = vector.load %arg1[%c275, %c0_89] : memref<480x128xf32, #tpu.memory_space<vmem>>, vector<1x32xf32>
    %280 = vector.broadcast %279 : vector<1x32xf32> to vector<40x32xf32>
    %281 = arith.addf %278, %280 : vector<40x32xf32>
    %c276 = arith.constant 276 : index
    %c0_90 = arith.constant 0 : index
    %282 = vector.load %arg1[%c276, %c0_90] : memref<480x128xf32, #tpu.memory_space<vmem>>, vector<1x32xf32>
    %c277 = arith.constant 277 : index
    %c0_91 = arith.constant 0 : index
    %283 = vector.load %arg1[%c277, %c0_91] : memref<480x128xf32, #tpu.memory_space<vmem>>, vector<1x32xf32>
    %cst_92 = arith.constant dense<0.000000e+00> : vector<40xf32>
    %284 = vector.multi_reduction <add>, %281, %cst_92 [1] : vector<40x32xf32> to vector<40xf32>
    %285 = vector.shape_cast %284 : vector<40xf32> to vector<40x1xf32>
    %cst_93 = arith.constant 3.200000e+01 : f32
    %286 = vector.broadcast %cst_93 : f32 to vector<40x1xf32>
    %287 = arith.divf %285, %286 : vector<40x1xf32>
    %288 = vector.broadcast %287 : vector<40x1xf32> to vector<40x32xf32>
    %289 = arith.subf %281, %288 : vector<40x32xf32>
    %290 = arith.mulf %289, %289 : vector<40x32xf32>
    %cst_94 = arith.constant dense<0.000000e+00> : vector<40xf32>
    %291 = vector.multi_reduction <add>, %290, %cst_94 [1] : vector<40x32xf32> to vector<40xf32>
    %292 = vector.shape_cast %291 : vector<40xf32> to vector<40x1xf32>
    %cst_95 = arith.constant 3.200000e+01 : f32
    %293 = vector.broadcast %cst_95 : f32 to vector<40x1xf32>
    %294 = arith.divf %292, %293 : vector<40x1xf32>
    %295 = vector.broadcast %287 : vector<40x1xf32> to vector<40x32xf32>
    %296 = arith.subf %281, %295 : vector<40x32xf32>
    %cst_96 = arith.constant 9.99999996E-13 : f32
    %297 = vector.broadcast %cst_96 : f32 to vector<40x1xf32>
    %298 = arith.addf %294, %297 : vector<40x1xf32>
    %299 = math.rsqrt %298 : vector<40x1xf32>
    %300 = vector.broadcast %299 : vector<40x1xf32> to vector<40x32xf32>
    %301 = arith.mulf %296, %300 : vector<40x32xf32>
    %302 = vector.broadcast %282 : vector<1x32xf32> to vector<40x32xf32>
    %303 = arith.mulf %301, %302 : vector<40x32xf32>
    %304 = vector.broadcast %283 : vector<1x32xf32> to vector<40x32xf32>
    %305 = arith.addf %303, %304 : vector<40x32xf32>
    %c344 = arith.constant 344 : index
    %c0_97 = arith.constant 0 : index
    %306 = vector.load %arg1[%c344, %c0_97] : memref<480x128xf32, #tpu.memory_space<vmem>>, vector<32x64xf32>
    %cst_98 = arith.constant dense<0.000000e+00> : vector<40x64xf32>
    %307 = tpu.matmul %305, %306, %cst_98 {dimension_numbers = #tpu.dot_dimension_numbers<[1], [0], [0], [1], [0, 0, 1, 1], [], []>} : vector<40x32xf32>, vector<32x64xf32>, vector<40x64xf32> -> vector<40x64xf32>
    %c278 = arith.constant 278 : index
    %c0_99 = arith.constant 0 : index
    %308 = vector.load %arg1[%c278, %c0_99] : memref<480x128xf32, #tpu.memory_space<vmem>>, vector<1x64xf32>
    %309 = vector.broadcast %308 : vector<1x64xf32> to vector<40x64xf32>
    %310 = arith.addf %307, %309 : vector<40x64xf32>
    %311 = arith.mulf %310, %310 : vector<40x64xf32>
    %312 = arith.mulf %310, %311 : vector<40x64xf32>
    %cst_100 = arith.constant 4.471500e-02 : f32
    %313 = vector.broadcast %cst_100 : f32 to vector<40x64xf32>
    %314 = arith.mulf %313, %312 : vector<40x64xf32>
    %315 = arith.addf %310, %314 : vector<40x64xf32>
    %cst_101 = arith.constant 0.797884583 : f32
    %316 = vector.broadcast %cst_101 : f32 to vector<40x64xf32>
    %317 = arith.mulf %316, %315 : vector<40x64xf32>
    %318 = math.tanh %317 : vector<40x64xf32>
    %cst_102 = arith.constant 1.000000e+00 : f32
    %319 = vector.broadcast %cst_102 : f32 to vector<40x64xf32>
    %320 = arith.addf %319, %318 : vector<40x64xf32>
    %cst_103 = arith.constant 5.000000e-01 : f32
    %321 = vector.broadcast %cst_103 : f32 to vector<40x64xf32>
    %322 = arith.mulf %321, %320 : vector<40x64xf32>
    %323 = arith.mulf %310, %322 : vector<40x64xf32>
    %c376 = arith.constant 376 : index
    %c0_104 = arith.constant 0 : index
    %324 = vector.load %arg1[%c376, %c0_104] : memref<480x128xf32, #tpu.memory_space<vmem>>, vector<64x32xf32>
    %cst_105 = arith.constant dense<0.000000e+00> : vector<40x32xf32>
    %325 = tpu.matmul %323, %324, %cst_105 {dimension_numbers = #tpu.dot_dimension_numbers<[1], [0], [0], [1], [0, 0, 1, 1], [], []>} : vector<40x64xf32>, vector<64x32xf32>, vector<40x32xf32> -> vector<40x32xf32>
    %326 = arith.addf %281, %325 : vector<40x32xf32>
    %c279 = arith.constant 279 : index
    %c0_106 = arith.constant 0 : index
    %327 = vector.load %arg1[%c279, %c0_106] : memref<480x128xf32, #tpu.memory_space<vmem>>, vector<1x32xf32>
    %328 = vector.broadcast %327 : vector<1x32xf32> to vector<40x32xf32>
    %329 = arith.addf %326, %328 : vector<40x32xf32>
    %c440 = arith.constant 440 : index
    %c0_107 = arith.constant 0 : index
    %330 = vector.load %arg1[%c440, %c0_107] : memref<480x128xf32, #tpu.memory_space<vmem>>, vector<1x32xf32>
    %c441 = arith.constant 441 : index
    %c0_108 = arith.constant 0 : index
    %331 = vector.load %arg1[%c441, %c0_108] : memref<480x128xf32, #tpu.memory_space<vmem>>, vector<1x32xf32>
    %cst_109 = arith.constant dense<0.000000e+00> : vector<40xf32>
    %332 = vector.multi_reduction <add>, %329, %cst_109 [1] : vector<40x32xf32> to vector<40xf32>
    %333 = vector.shape_cast %332 : vector<40xf32> to vector<40x1xf32>
    %cst_110 = arith.constant 3.200000e+01 : f32
    %334 = vector.broadcast %cst_110 : f32 to vector<40x1xf32>
    %335 = arith.divf %333, %334 : vector<40x1xf32>
    %336 = vector.broadcast %335 : vector<40x1xf32> to vector<40x32xf32>
    %337 = arith.subf %329, %336 : vector<40x32xf32>
    %338 = arith.mulf %337, %337 : vector<40x32xf32>
    %cst_111 = arith.constant dense<0.000000e+00> : vector<40xf32>
    %339 = vector.multi_reduction <add>, %338, %cst_111 [1] : vector<40x32xf32> to vector<40xf32>
    %340 = vector.shape_cast %339 : vector<40xf32> to vector<40x1xf32>
    %cst_112 = arith.constant 3.200000e+01 : f32
    %341 = vector.broadcast %cst_112 : f32 to vector<40x1xf32>
    %342 = arith.divf %340, %341 : vector<40x1xf32>
    %343 = vector.broadcast %335 : vector<40x1xf32> to vector<40x32xf32>
    %344 = arith.subf %329, %343 : vector<40x32xf32>
    %cst_113 = arith.constant 9.99999996E-13 : f32
    %345 = vector.broadcast %cst_113 : f32 to vector<40x1xf32>
    %346 = arith.addf %342, %345 : vector<40x1xf32>
    %347 = math.rsqrt %346 : vector<40x1xf32>
    %348 = vector.broadcast %347 : vector<40x1xf32> to vector<40x32xf32>
    %349 = arith.mulf %344, %348 : vector<40x32xf32>
    %350 = vector.broadcast %330 : vector<1x32xf32> to vector<40x32xf32>
    %351 = arith.mulf %349, %350 : vector<40x32xf32>
    %352 = vector.broadcast %331 : vector<1x32xf32> to vector<40x32xf32>
    %353 = arith.addf %351, %352 : vector<40x32xf32>
    %c448 = arith.constant 448 : index
    %c0_114 = arith.constant 0 : index
    %354 = vector.load %arg1[%c448, %c0_114] : memref<480x128xf32, #tpu.memory_space<vmem>>, vector<32x128xf32>
    %cst_115 = arith.constant dense<0.000000e+00> : vector<40x128xf32>
    %355 = tpu.matmul %353, %354, %cst_115 {dimension_numbers = #tpu.dot_dimension_numbers<[1], [0], [0], [1], [0, 0, 1, 1], [], []>} : vector<40x32xf32>, vector<32x128xf32>, vector<40x128xf32> -> vector<40x128xf32>
    %c442 = arith.constant 442 : index
    %c0_116 = arith.constant 0 : index
    %356 = vector.load %arg1[%c442, %c0_116] : memref<480x128xf32, #tpu.memory_space<vmem>>, vector<1x128xf32>
    %357 = vector.broadcast %356 : vector<1x128xf32> to vector<40x128xf32>
    %358 = arith.addf %355, %357 : vector<40x128xf32>
    %c0_117 = arith.constant 0 : index
    %c0_118 = arith.constant 0 : index
    %359 = vector.load %arg2[%c0_117, %c0_118] : memref<40x128xf32, #tpu.memory_space<vmem>>, vector<40x128xf32>
    tpu.vector_store %arg2[%c0_117, %c0_118], %358 {strides = array<i32>} : memref<40x128xf32, #tpu.memory_space<vmem>>, vector<40x128xf32>,
    return
  }
}

</mosaic_0001>

<llo_original>
// kernel: deepspeed_vit_forward.1
$region0: #{deepspeed_vit_forward.1}
  #allocation0 [shape = 'u32[]', space=smem, size = 0x4, offset = 0x4, fixed_abs, tag = 'smem constant byte address 0x4 - core index']
  #allocation1 [shape = 'u32[72,128]{1,0:T(1,128)}', space=vmem, size = 0x9000, scoped, tag = 'internal scratch']
  %s0 = inlined_call_operand.vmem [shape: f32[40,64], index: 0, kind: input, shape index: {}]
  %s1 = inlined_call_operand.vmem [shape: f32[480,128], index: 1, kind: input, shape index: {}]
  %s2 = inlined_call_operand.vmem [shape: f32[40,128], index: 2, kind: output, shape index: {}]
  %s3 = sld [smem:[#allocation0]]
  $region18: #{deepspeed_vit_forward.1} parent=0
    _
  %s5 = ssub.s32 1, %s3
  %s6 = scalar_select 0, %s5, %s3
  // Predicated region
  $region2: #{deepspeed_vit_forward.1} parent=0 // pred_check
    _
  $region3: #{deepspeed_vit_forward.1} parent=0 // pred_check_branch
    %8 = sbr.rel (0) target = $region5
  $region4: #{deepspeed_vit_forward.1} parent=0 // pred_region
    _
  $region5: #{deepspeed_vit_forward.1} parent=0 // pred_fallthru
    _
  // Predicated region
  $region6: #{deepspeed_vit_forward.1} parent=0 // pred_check
    _
  $region7: #{deepspeed_vit_forward.1} parent=0 // pred_check_branch
    %10 = sbr.rel (0) target = $region9
  $region8: #{deepspeed_vit_forward.1} parent=0 // pred_region
    _
  $region9: #{deepspeed_vit_forward.1} parent=0 // pred_fallthru
    _
  %v11 = vld [vmem:[%s0] sm:$0xff]
  %v12 = vld [vmem:[%s0 + $0x8] sm:$0xff]
  %v13 = vld [vmem:[%s0 + $0x10] sm:$0xff]
  %v14 = vld [vmem:[%s0 + $0x18] sm:$0xff]
  %v15 = vld [vmem:[%s0 + $0x20] sm:$0xff]
  %v16 = vld [vmem:[%s1] sm:$0xff]
  %v17 = vld [vmem:[%s1 + $0x8] sm:$0xff]
  %v18 = vld [vmem:[%s1 + $0x10] sm:$0xff]
  %v19 = vld [vmem:[%s1 + $0x18] sm:$0xff]
  %v20 = vld [vmem:[%s1 + $0x20] sm:$0xff]
  %v21 = vld [vmem:[%s1 + $0x28] sm:$0xff]
  %v22 = vld [vmem:[%s1 + $0x30] sm:$0xff]
  %v23 = vld [vmem:[%s1 + $0x38] sm:$0xff]
  %v24 = vld [vmem:[%s1 + $0x40] sm:$0xff]
  %v25 = vld [vmem:[%s1 + $0x48] sm:$0xff]
  %v26 = vld [vmem:[%s1 + $0x50] sm:$0xff]
  %v27 = vld [vmem:[%s1 + $0x58] sm:$0xff]
  %v28 = vld [vmem:[%s1 + $0x60] sm:$0xff]
  %vm29 = vcmask 523264
  %v31 = vsel %vm29, %v11, 0
  %v34 = vsel %vm29, %v12, 0
  %v37 = vsel %vm29, %v13, 0
  %v40 = vsel %vm29, %v14, 0
  %v43 = vsel %vm29, %v15, 0
  %45 = vmatpush.msra.mxu0 0.0
  %46 = vmatpush.msra.mxu0 0.0
  %47 = vmatpush.msra.mxu0 0.0
  %48 = vmatpush.msra.mxu0 0.0
  %49 = vmatpush.msra.mxu0 0.0
  %50 = vmatpush.msra.mxu0 0.0
  %51 = vmatpush.msra.mxu0 0.0
  %52 = vmatpush.msra.mxu0 0.0
  %53 = vmatpush.msra.mxu0 %v23
  %54 = vmatpush.msra.mxu0 %v22
  %55 = vmatpush.msra.mxu0 %v21
  %56 = vmatpush.msra.mxu0 %v20
  %57 = vmatpush.msra.mxu0 %v19
  %58 = vmatpush.msra.mxu0 %v18
  %59 = vmatpush.msra.mxu0 %v17
  %60 = vmatpush.msra.mxu0 %v16
  %61 = vmatmul.f32.gmra.mxu0 %v31
  %v62 = vpop.f32.mrf.mxu0
  %v63 = vadd.f32 %v24, %v62
  %64 = vmatmul.f32.gmra.mxu0 %v34
  %v65 = vpop.f32.mrf.mxu0
  %v66 = vadd.f32 %v25, %v65
  %67 = vmatmul.f32.gmra.mxu0 %v37
  %v68 = vpop.f32.mrf.mxu0
  %v69 = vadd.f32 %v26, %v68
  %70 = vmatmul.f32.gmra.mxu0 %v40
  %v71 = vpop.f32.mrf.mxu0
  %v72 = vadd.f32 %v27, %v71
  %73 = vmatmul.f32.gmra.mxu0 %v43
  %v74 = vpop.f32.mrf.mxu0
  %v75 = vadd.f32 %v28, %v74
  %76 = vdwg.mxu0
  %v77 = vlaneseq
  %v78 = vshrl.u32 %v77, 7
  %v79 = vadd.s32 %v78, 8
  %v80 = vadd.s32 %v78, 16
  %v81 = vadd.s32 %v78, 24
  %v82 = vadd.s32 %v78, 32
  %v83 = vlaneseq
  %v84 = vand.u32 %v83, 127
  %vm85 = vcmp.ge.s32.totalorder %v78, 17
  %vm86 = vcmp.ge.s32.totalorder %v79, 17
  %vm87 = vcmp.ge.s32.totalorder %v80, 17
  %vm88 = vcmp.ge.s32.totalorder %v81, 17
  %vm89 = vcmp.ge.s32.totalorder %v82, 17
  %v90 = vsel %vm85, 1, 0
  %v91 = vsel %vm86, 1, 0
  %v92 = vsel %vm87, 1, 0
  %v93 = vsel %vm88, 1, 0
  %v94 = vsel %vm89, 1, 0
  %vm95 = vcmp.ge.s32.totalorder %v84, 17
  %v96 = vsel %vm95, 1, 0
  %vm97 = vcmp.ge.s32.totalorder %v78, 34
  %vm98 = vcmp.ge.s32.totalorder %v79, 34
  %vm99 = vcmp.ge.s32.totalorder %v80, 34
  %vm100 = vcmp.ge.s32.totalorder %v81, 34
  %vm101 = vcmp.ge.s32.totalorder %v82, 34
  %v102 = vsel %vm97, 1, 0
  %v103 = vsel %vm98, 1, 0
  %v104 = vsel %vm99, 1, 0
  %v105 = vsel %vm100, 1, 0
  %v106 = vsel %vm101, 1, 0
  %v107 = vadd.s32 %v90, %v102
  %v108 = vadd.s32 %v91, %v103
  %v109 = vadd.s32 %v92, %v104
  %v110 = vadd.s32 %v93, %v105
  %v111 = vadd.s32 %v94, %v106
  %vm112 = vcmp.ge.s32.totalorder %v84, 34
  %v113 = vsel %vm112, 1, 0
  %v114 = vadd.s32 %v96, %v113
  %vm115 = vcmp.eq.s32.totalorder %v107, %v114
  %vm116 = vcmp.eq.s32.totalorder %v108, %v114
  %vm117 = vcmp.eq.s32.totalorder %v109, %v114
  %vm118 = vcmp.eq.s32.totalorder %v110, %v114
  %vm119 = vcmp.eq.s32.totalorder %v111, %v114
  %v120 = vld [vmem:[%s1 + $0x68] sm:$0x1]
  %v121 = vld [vmem:[%s1 + $0x69] sm:$0x1]
  %vm122 = vcmask 261120
  %v123 = vsel %vm122, %v63, 0.0
  %124 = vadd.xlane.f32.xlu0 %v123
  %v125 = vpop.xlane.xlu0 %124
  %v126 = vsel %vm122, %v66, 0.0
  %127 = vadd.xlane.f32.xlu0 %v126
  %v128 = vpop.xlane.xlu0 %127
  %v129 = vsel %vm122, %v69, 0.0
  %130 = vadd.xlane.f32.xlu0 %v129
  %v131 = vpop.xlane.xlu0 %130
  %v132 = vsel %vm122, %v72, 0.0
  %133 = vadd.xlane.f32.xlu0 %v132
  %v134 = vpop.xlane.xlu0 %133
  %v135 = vsel %vm122, %v75, 0.0
  %136 = vadd.xlane.f32.xlu0 %v135
  %v137 = vpop.xlane.xlu0 %136
  %v138 = vrcp.pop 32.0
  %v139 = vmul.f32 32.0, %v138
  %v140 = vsub.f32 1.0, %v139
  %v141 = vmul.f32 %v138, %v140
  %v142 = vadd.f32 %v138, %v141
  %vm143 = vweird.f32 %v138
  %v144 = vsel %vm143, %v138, %v142
  %v145 = vmul.f32 %v125, %v144
  %v146 = vmul.f32 %v128, %v144
  %v147 = vmul.f32 %v131, %v144
  %v148 = vmul.f32 %v134, %v144
  %v149 = vmul.f32 %v137, %v144
  %v150 = vsub.f32 %v63, %v145
  %v151 = vsub.f32 %v66, %v146
  %v152 = vsub.f32 %v69, %v147
  %v153 = vsub.f32 %v72, %v148
  %v154 = vsub.f32 %v75, %v149
  %v155 = vmul.f32 %v150, %v150
  %v156 = vmul.f32 %v151, %v151
  %v157 = vmul.f32 %v152, %v152
  %v158 = vmul.f32 %v153, %v153
  %v159 = vmul.f32 %v154, %v154
  %v160 = vsel %vm122, %v155, 0.0
  %161 = vadd.xlane.f32.xlu0 %v160
  %v162 = vpop.xlane.xlu0 %161
  %v163 = vsel %vm122, %v156, 0.0
  %164 = vadd.xlane.f32.xlu0 %v163
  %v165 = vpop.xlane.xlu0 %164
  %v166 = vsel %vm122, %v157, 0.0
  %167 = vadd.xlane.f32.xlu0 %v166
  %v168 = vpop.xlane.xlu0 %167
  %v169 = vsel %vm122, %v158, 0.0
  %170 = vadd.xlane.f32.xlu0 %v169
  %v171 = vpop.xlane.xlu0 %170
  %v172 = vsel %vm122, %v159, 0.0
  %173 = vadd.xlane.f32.xlu0 %v172
  %v174 = vpop.xlane.xlu0 %173
  %v175 = vmul.f32 %v162, %v144
  %v176 = vmul.f32 %v165, %v144
  %v177 = vmul.f32 %v168, %v144
  %v178 = vmul.f32 %v171, %v144
  %v179 = vmul.f32 %v174, %v144
  %v180 = vadd.f32 %v175, 1e-12
  %v181 = vadd.f32 %v176, 1e-12
  %v182 = vadd.f32 %v177, 1e-12
  %v183 = vadd.f32 %v178, 1e-12
  %v184 = vadd.f32 %v179, 1e-12
  %v185 = vrsqrt.pop %v180
  %v186 = vmul.f32 %v185, %v180
  %v187 = vmul.f32 %v186, %v185
  %v188 = vmul.f32 0.5, %v187
  %v189 = vsub.f32 1.5, %v188
  %v190 = vmul.f32 %v185, %v189
  %vm191 = vweird.f32 %v180
  %vm192 = vweird.f32 %v185
  %vm193 = vmor %vm191, %vm192
  %v194 = vsel %vm193, %v185, %v190
  %v195 = vrsqrt.pop %v181
  %v196 = vmul.f32 %v195, %v181
  %v197 = vmul.f32 %v196, %v195
  %v198 = vmul.f32 0.5, %v197
  %v199 = vsub.f32 1.5, %v198
  %v200 = vmul.f32 %v195, %v199
  %vm201 = vweird.f32 %v181
  %vm202 = vweird.f32 %v195
  %vm203 = vmor %vm201, %vm202
  %v204 = vsel %vm203, %v195, %v200
  %v205 = vrsqrt.pop %v182
  %v206 = vmul.f32 %v205, %v182
  %v207 = vmul.f32 %v206, %v205
  %v208 = vmul.f32 0.5, %v207
  %v209 = vsub.f32 1.5, %v208
  %v210 = vmul.f32 %v205, %v209
  %vm211 = vweird.f32 %v182
  %vm212 = vweird.f32 %v205
  %vm213 = vmor %vm211, %vm212
  %v214 = vsel %vm213, %v205, %v210
  %v215 = vrsqrt.pop %v183
  %v216 = vmul.f32 %v215, %v183
  %v217 = vmul.f32 %v216, %v215
  %v218 = vmul.f32 0.5, %v217
  %v219 = vsub.f32 1.5, %v218
  %v220 = vmul.f32 %v215, %v219
  %vm221 = vweird.f32 %v183
  %vm222 = vweird.f32 %v215
  %vm223 = vmor %vm221, %vm222
  %v224 = vsel %vm223, %v215, %v220
  %v225 = vrsqrt.pop %v184
  %v226 = vmul.f32 %v225, %v184
  %v227 = vmul.f32 %v226, %v225
  %v228 = vmul.f32 0.5, %v227
  %v229 = vsub.f32 1.5, %v228
  %v230 = vmul.f32 %v225, %v229
  %vm231 = vweird.f32 %v184
  %vm232 = vweird.f32 %v225
  %vm233 = vmor %vm231, %vm232
  %v234 = vsel %vm233, %v225, %v230
  %v235 = vmul.f32 %v150, %v194
  %v236 = vmul.f32 %v151, %v204
  %v237 = vmul.f32 %v152, %v214
  %v238 = vmul.f32 %v153, %v224
  %v239 = vmul.f32 %v154, %v234
  %v240 = vperm.slane %v120, 0
  %v241 = vmul.f32 %v235, %v240
  %v242 = vmul.f32 %v236, %v240
  %v243 = vmul.f32 %v237, %v240
  %v244 = vmul.f32 %v238, %v240
  %v245 = vmul.f32 %v239, %v240
  %v246 = vperm.slane %v121, 0
  %v247 = vadd.f32 %v241, %v246
  %v248 = vadd.f32 %v242, %v246
  %v249 = vadd.f32 %v243, %v246
  %v250 = vadd.f32 %v244, %v246
  %v251 = vadd.f32 %v245, %v246
  %v252 = vld [vmem:[%s1 + $0x70] sm:$0xff]
  %v253 = vld [vmem:[%s1 + $0x78] sm:$0xff]
  %v254 = vld [vmem:[%s1 + $0x80] sm:$0xff]
  %v255 = vld [vmem:[%s1 + $0x88] sm:$0xff]
  %v256 = vld [vmem:[%s1 + $0x6a] sm:$0x1]
  %v257 = vperm.slane %v256, 0
  %v259 = vsel %vm122, %v247, 0
  %v262 = vsel %vm122, %v248, 0
  %v265 = vsel %vm122, %v249, 0
  %v268 = vsel %vm122, %v250, 0
  %v271 = vsel %vm122, %v251, 0
  %273 = vmatpush.msra.mxu0 0.0
  %274 = vmatpush.msra.mxu0 0.0
  %275 = vmatpush.msra.mxu0 0.0
  %276 = vmatpush.msra.mxu0 0.0
  %277 = vmatpush.msra.mxu0 0.0
  %278 = vmatpush.msra.mxu0 0.0
  %279 = vmatpush.msra.mxu0 0.0
  %280 = vmatpush.msra.mxu0 0.0
  %281 = vmatpush.msra.mxu0 0.0
  %282 = vmatpush.msra.mxu0 0.0
  %283 = vmatpush.msra.mxu0 0.0
  %284 = vmatpush.msra.mxu0 0.0
  %285 = vmatpush.msra.mxu0 %v255
  %286 = vmatpush.msra.mxu0 %v254
  %287 = vmatpush.msra.mxu0 %v253
  %288 = vmatpush.msra.mxu0 %v252
  %289 = vmatmul.f32.gmra.mxu0 %v259
  %v290 = vpop.f32.mrf.mxu0
  %v291 = vadd.f32 %v257, %v290
  %292 = vmatmul.f32.gmra.mxu0 %v262
  %v293 = vpop.f32.mrf.mxu0
  %v294 = vadd.f32 %v257, %v293
  %295 = vmatmul.f32.gmra.mxu0 %v265
  %v296 = vpop.f32.mrf.mxu0
  %v297 = vadd.f32 %v257, %v296
  %298 = vmatmul.f32.gmra.mxu0 %v268
  %v299 = vpop.f32.mrf.mxu0
  %v300 = vadd.f32 %v257, %v299
  %301 = vmatmul.f32.gmra.mxu0 %v271
  %v302 = vpop.f32.mrf.mxu0
  %v303 = vadd.f32 %v257, %v302
  %304 = vdwg.mxu0
  %310 = vrot.lane.b32.xlu0 %v291, 96
  %v311 = vpop.permute.xlu0 %310
  %312 = vrot.lane.b32.xlu0 %v294, 96
  %v313 = vpop.permute.xlu0 %312
  %314 = vrot.lane.b32.xlu0 %v297, 96
  %v315 = vpop.permute.xlu0 %314
  %316 = vrot.lane.b32.xlu0 %v300, 96
  %v317 = vpop.permute.xlu0 %316
  %318 = vrot.lane.b32.xlu0 %v303, 96
  %v319 = vpop.permute.xlu0 %318
  %vm320 = vcmask 64512
  %v321 = vsel %vm320, %v291, 0
  %v323 = vsel %vm320, %v294, 0
  %v325 = vsel %vm320, %v297, 0
  %v327 = vsel %vm320, %v300, 0
  %v329 = vsel %vm320, %v303, 0
  %v331 = vsel %vm320, %v311, 0
  %v333 = vsel %vm320, %v313, 0
  %v335 = vsel %vm320, %v315, 0
  %v337 = vsel %vm320, %v317, 0
  %v339 = vsel %vm320, %v319, 0
  %341 = vmatpush.xpose.msra.mxu0 0.0
  %342 = vmatpush.xpose.msra.mxu0 0.0
  %343 = vmatpush.xpose.msra.mxu0 0.0
  %344 = vmatpush.xpose.msra.mxu0 0.0
  %345 = vmatpush.xpose.msra.mxu0 0.0
  %346 = vmatpush.xpose.msra.mxu0 0.0
  %347 = vmatpush.xpose.msra.mxu0 0.0
  %348 = vmatpush.xpose.msra.mxu0 0.0
  %349 = vmatpush.xpose.msra.mxu0 0.0
  %350 = vmatpush.xpose.msra.mxu0 0.0
  %351 = vmatpush.xpose.msra.mxu0 0.0
  %352 = vmatpush.xpose.msra.mxu0 %v339
  %353 = vmatpush.xpose.msra.mxu0 %v337
  %354 = vmatpush.xpose.msra.mxu0 %v335
  %355 = vmatpush.xpose.msra.mxu0 %v333
  %356 = vmatpush.xpose.msra.mxu0 %v331
  %357 = vmatmul.f32.gmra.mxu0 %v321
  %v358 = vpop.f32.mrf.mxu0
  %v359 = vadd.f32 0.0, %v358
  %360 = vmatmul.f32.gmra.mxu0 %v323
  %v361 = vpop.f32.mrf.mxu0
  %v362 = vadd.f32 0.0, %v361
  %363 = vmatmul.f32.gmra.mxu0 %v325
  %v364 = vpop.f32.mrf.mxu0
  %v365 = vadd.f32 0.0, %v364
  %366 = vmatmul.f32.gmra.mxu0 %v327
  %v367 = vpop.f32.mrf.mxu0
  %v368 = vadd.f32 0.0, %v367
  %369 = vmatmul.f32.gmra.mxu0 %v329
  %v370 = vpop.f32.mrf.mxu0
  %v371 = vadd.f32 0.0, %v370
  %372 = vdwg.mxu0
  %v373 = vsel %vm115, %v359, -1e+09
  %v374 = vsel %vm116, %v362, -1e+09
  %v375 = vsel %vm117, %v365, -1e+09
  %v376 = vsel %vm118, %v368, -1e+09
  %v377 = vsel %vm119, %v371, -1e+09
  %vm378 = vcmask 326656
  %v379 = vsel %vm378, %v373, -inf
  %380 = vmax.xlane.f32.xlu0 %v379
  %v381 = vpop.xlane.xlu0 %380
  %v382 = vsel %vm378, %v374, -inf
  %383 = vmax.xlane.f32.xlu0 %v382
  %v384 = vpop.xlane.xlu0 %383
  %v385 = vsel %vm378, %v375, -inf
  %386 = vmax.xlane.f32.xlu0 %v385
  %v387 = vpop.xlane.xlu0 %386
  %v388 = vsel %vm378, %v376, -inf
  %389 = vmax.xlane.f32.xlu0 %v388
  %v390 = vpop.xlane.xlu0 %389
  %v391 = vsel %vm378, %v377, -inf
  %392 = vmax.xlane.f32.xlu0 %v391
  %v393 = vpop.xlane.xlu0 %392
  %v394 = vsub.f32 %v373, %v381
  %v395 = vsub.f32 %v374, %v384
  %v396 = vsub.f32 %v375, %v387
  %v397 = vsub.f32 %v376, %v390
  %v398 = vsub.f32 %v377, %v393
  %v399 = vmul.f32 %v394, 1.442695
  %v400 = vpow.pop %v399
  %v401 = vmul.f32 %v395, 1.442695
  %v402 = vpow.pop %v401
  %v403 = vmul.f32 %v396, 1.442695
  %v404 = vpow.pop %v403
  %v405 = vmul.f32 %v397, 1.442695
  %v406 = vpow.pop %v405
  %v407 = vmul.f32 %v398, 1.442695
  %v408 = vpow.pop %v407
  %v409 = vsel %vm378, %v400, 0.0
  %410 = vadd.xlane.f32.xlu0 %v409
  %v411 = vpop.xlane.xlu0 %410
  %v412 = vsel %vm378, %v402, 0.0
  %413 = vadd.xlane.f32.xlu0 %v412
  %v414 = vpop.xlane.xlu0 %413
  %v415 = vsel %vm378, %v404, 0.0
  %416 = vadd.xlane.f32.xlu0 %v415
  %v417 = vpop.xlane.xlu0 %416
  %v418 = vsel %vm378, %v406, 0.0
  %419 = vadd.xlane.f32.xlu0 %v418
  %v420 = vpop.xlane.xlu0 %419
  %v421 = vsel %vm378, %v408, 0.0
  %422 = vadd.xlane.f32.xlu0 %v421
  %v423 = vpop.xlane.xlu0 %422
  %v424 = vrcp.pop %v411
  %v425 = vrcp.pop %v414
  %v426 = vrcp.pop %v417
  %v427 = vrcp.pop %v420
  %v428 = vrcp.pop %v423
  %v429 = vmul.f32 %v400, %v424
  %v430 = vmul.f32 %v402, %v425
  %v431 = vmul.f32 %v404, %v426
  %v432 = vmul.f32 %v406, %v427
  %v433 = vmul.f32 %v408, %v428
  %434 = vrot.lane.b32.xlu0 %v291, 64
  %v435 = vpop.permute.xlu0 %434
  %436 = vrot.lane.b32.xlu0 %v294, 64
  %v437 = vpop.permute.xlu0 %436
  %438 = vrot.lane.b32.xlu0 %v297, 64
  %v439 = vpop.permute.xlu0 %438
  %440 = vrot.lane.b32.xlu0 %v300, 64
  %v441 = vpop.permute.xlu0 %440
  %442 = vrot.lane.b32.xlu0 %v303, 64
  %v443 = vpop.permute.xlu0 %442
  %v450 = vsel %vm378, %v429, 0
  %v453 = vsel %vm378, %v430, 0
  %v456 = vsel %vm378, %v431, 0
  %v459 = vsel %vm378, %v432, 0
  %v462 = vsel %vm378, %v433, 0
  %464 = vmatpush.msra.mxu0 0.0
  %465 = vmatpush.msra.mxu0 0.0
  %466 = vmatpush.msra.mxu0 0.0
  %467 = vmatpush.msra.mxu0 0.0
  %468 = vmatpush.msra.mxu0 0.0
  %469 = vmatpush.msra.mxu0 0.0
  %470 = vmatpush.msra.mxu0 0.0
  %471 = vmatpush.msra.mxu0 0.0
  %472 = vmatpush.msra.mxu0 0.0
  %473 = vmatpush.msra.mxu0 0.0
  %474 = vmatpush.msra.mxu0 0.0
  %475 = vmatpush.msra.mxu0 %v443
  %476 = vmatpush.msra.mxu0 %v441
  %477 = vmatpush.msra.mxu0 %v439
  %478 = vmatpush.msra.mxu0 %v437
  %479 = vmatpush.msra.mxu0 %v435
  %480 = vmatmul.f32.gmra.mxu0 %v450
  %v481 = vpop.f32.mrf.mxu0
  %v482 = vadd.f32 0.0, %v481
  %483 = vmatmul.f32.gmra.mxu0 %v453
  %v484 = vpop.f32.mrf.mxu0
  %v485 = vadd.f32 0.0, %v484
  %486 = vmatmul.f32.gmra.mxu0 %v456
  %v487 = vpop.f32.mrf.mxu0
  %v488 = vadd.f32 0.0, %v487
  %489 = vmatmul.f32.gmra.mxu0 %v459
  %v490 = vpop.f32.mrf.mxu0
  %v491 = vadd.f32 0.0, %v490
  %492 = vmatmul.f32.gmra.mxu0 %v462
  %v493 = vpop.f32.mrf.mxu0
  %v494 = vadd.f32 0.0, %v493
  %495 = vdwg.mxu0
  %496 = vrot.lane.b32.xlu0 %v291, 120
  %v497 = vpop.permute.xlu0 %496
  %498 = vrot.lane.b32.xlu0 %v294, 120
  %v499 = vpop.permute.xlu0 %498
  %500 = vrot.lane.b32.xlu0 %v297, 120
  %v501 = vpop.permute.xlu0 %500
  %502 = vrot.lane.b32.xlu0 %v300, 120
  %v503 = vpop.permute.xlu0 %502
  %504 = vrot.lane.b32.xlu0 %v303, 120
  %v505 = vpop.permute.xlu0 %504
  %506 = vrot.lane.b32.xlu0 %v291, 88
  %v507 = vpop.permute.xlu0 %506
  %508 = vrot.lane.b32.xlu0 %v294, 88
  %v509 = vpop.permute.xlu0 %508
  %510 = vrot.lane.b32.xlu0 %v297, 88
  %v511 = vpop.permute.xlu0 %510
  %512 = vrot.lane.b32.xlu0 %v300, 88
  %v513 = vpop.permute.xlu0 %512
  %514 = vrot.lane.b32.xlu0 %v303, 88
  %v515 = vpop.permute.xlu0 %514
  %v516 = vsel %vm320, %v497, 0
  %v518 = vsel %vm320, %v499, 0
  %v520 = vsel %vm320, %v501, 0
  %v522 = vsel %vm320, %v503, 0
  %v524 = vsel %vm320, %v505, 0
  %v526 = vsel %vm320, %v507, 0
  %v528 = vsel %vm320, %v509, 0
  %v530 = vsel %vm320, %v511, 0
  %v532 = vsel %vm320, %v513, 0
  %v534 = vsel %vm320, %v515, 0
  %536 = vmatpush.xpose.msra.mxu0 0.0
  %537 = vmatpush.xpose.msra.mxu0 0.0
  %538 = vmatpush.xpose.msra.mxu0 0.0
  %539 = vmatpush.xpose.msra.mxu0 0.0
  %540 = vmatpush.xpose.msra.mxu0 0.0
  %541 = vmatpush.xpose.msra.mxu0 0.0
  %542 = vmatpush.xpose.msra.mxu0 0.0
  %543 = vmatpush.xpose.msra.mxu0 0.0
  %544 = vmatpush.xpose.msra.mxu0 0.0
  %545 = vmatpush.xpose.msra.mxu0 0.0
  %546 = vmatpush.xpose.msra.mxu0 0.0
  %547 = vmatpush.xpose.msra.mxu0 %v534
  %548 = vmatpush.xpose.msra.mxu0 %v532
  %549 = vmatpush.xpose.msra.mxu0 %v530
  %550 = vmatpush.xpose.msra.mxu0 %v528
  %551 = vmatpush.xpose.msra.mxu0 %v526
  %552 = vmatmul.f32.gmra.mxu0 %v516
  %v553 = vpop.f32.mrf.mxu0
  %v554 = vadd.f32 0.0, %v553
  %555 = vmatmul.f32.gmra.mxu0 %v518
  %v556 = vpop.f32.mrf.mxu0
  %v557 = vadd.f32 0.0, %v556
  %558 = vmatmul.f32.gmra.mxu0 %v520
  %v559 = vpop.f32.mrf.mxu0
  %v560 = vadd.f32 0.0, %v559
  %561 = vmatmul.f32.gmra.mxu0 %v522
  %v562 = vpop.f32.mrf.mxu0
  %v563 = vadd.f32 0.0, %v562
  %564 = vmatmul.f32.gmra.mxu0 %v524
  %v565 = vpop.f32.mrf.mxu0
  %v566 = vadd.f32 0.0, %v565
  %567 = vdwg.mxu0
  %v568 = vsel %vm115, %v554, -1e+09
  %v569 = vsel %vm116, %v557, -1e+09
  %v570 = vsel %vm117, %v560, -1e+09
  %v571 = vsel %vm118, %v563, -1e+09
  %v572 = vsel %vm119, %v566, -1e+09
  %v573 = vsel %vm378, %v568, -inf
  %574 = vmax.xlane.f32.xlu0 %v573
  %v575 = vpop.xlane.xlu0 %574
  %v576 = vsel %vm378, %v569, -inf
  %577 = vmax.xlane.f32.xlu0 %v576
  %v578 = vpop.xlane.xlu0 %577
  %v579 = vsel %vm378, %v570, -inf
  %580 = vmax.xlane.f32.xlu0 %v579
  %v581 = vpop.xlane.xlu0 %580
  %v582 = vsel %vm378, %v571, -inf
  %583 = vmax.xlane.f32.xlu0 %v582
  %v584 = vpop.xlane.xlu0 %583
  %v585 = vsel %vm378, %v572, -inf
  %586 = vmax.xlane.f32.xlu0 %v585
  %v587 = vpop.xlane.xlu0 %586
  %v588 = vsub.f32 %v568, %v575
  %v589 = vsub.f32 %v569, %v578
  %v590 = vsub.f32 %v570, %v581
  %v591 = vsub.f32 %v571, %v584
  %v592 = vsub.f32 %v572, %v587
  %v593 = vmul.f32 %v588, 1.442695
  %v594 = vpow.pop %v593
  %v595 = vmul.f32 %v589, 1.442695
  %v596 = vpow.pop %v595
  %v597 = vmul.f32 %v590, 1.442695
  %v598 = vpow.pop %v597
  %v599 = vmul.f32 %v591, 1.442695
  %v600 = vpow.pop %v599
  %v601 = vmul.f32 %v592, 1.442695
  %v602 = vpow.pop %v601
  %v603 = vsel %vm378, %v594, 0.0
  %604 = vadd.xlane.f32.xlu0 %v603
  %v605 = vpop.xlane.xlu0 %604
  %v606 = vsel %vm378, %v596, 0.0
  %607 = vadd.xlane.f32.xlu0 %v606
  %v608 = vpop.xlane.xlu0 %607
  %v609 = vsel %vm378, %v598, 0.0
  %610 = vadd.xlane.f32.xlu0 %v609
  %v611 = vpop.xlane.xlu0 %610
  %v612 = vsel %vm378, %v600, 0.0
  %613 = vadd.xlane.f32.xlu0 %v612
  %v614 = vpop.xlane.xlu0 %613
  %v615 = vsel %vm378, %v602, 0.0
  %616 = vadd.xlane.f32.xlu0 %v615
  %v617 = vpop.xlane.xlu0 %616
  %v618 = vrcp.pop %v605
  %v619 = vrcp.pop %v608
  %v620 = vrcp.pop %v611
  %v621 = vrcp.pop %v614
  %v622 = vrcp.pop %v617
  %v623 = vmul.f32 %v594, %v618
  %v624 = vmul.f32 %v596, %v619
  %v625 = vmul.f32 %v598, %v620
  %v626 = vmul.f32 %v600, %v621
  %v627 = vmul.f32 %v602, %v622
  %628 = vrot.lane.b32.xlu0 %v291, 56
  %v629 = vpop.permute.xlu0 %628
  %630 = vrot.lane.b32.xlu0 %v294, 56
  %v631 = vpop.permute.xlu0 %630
  %632 = vrot.lane.b32.xlu0 %v297, 56
  %v633 = vpop.permute.xlu0 %632
  %634 = vrot.lane.b32.xlu0 %v300, 56
  %v635 = vpop.permute.xlu0 %634
  %636 = vrot.lane.b32.xlu0 %v303, 56
  %v637 = vpop.permute.xlu0 %636
  %v644 = vsel %vm378, %v623, 0
  %v647 = vsel %vm378, %v624, 0
  %v650 = vsel %vm378, %v625, 0
  %v653 = vsel %vm378, %v626, 0
  %v656 = vsel %vm378, %v627, 0
  %658 = vmatpush.msra.mxu0 0.0
  %659 = vmatpush.msra.mxu0 0.0
  %660 = vmatpush.msra.mxu0 0.0
  %661 = vmatpush.msra.mxu0 0.0
  %662 = vmatpush.msra.mxu0 0.0
  %663 = vmatpush.msra.mxu0 0.0
  %664 = vmatpush.msra.mxu0 0.0
  %665 = vmatpush.msra.mxu0 0.0
  %666 = vmatpush.msra.mxu0 0.0
  %667 = vmatpush.msra.mxu0 0.0
  %668 = vmatpush.msra.mxu0 0.0
  %669 = vmatpush.msra.mxu0 %v637
  %670 = vmatpush.msra.mxu0 %v635
  %671 = vmatpush.msra.mxu0 %v633
  %672 = vmatpush.msra.mxu0 %v631
  %673 = vmatpush.msra.mxu0 %v629
  %674 = vmatmul.f32.gmra.mxu0 %v644
  %v675 = vpop.f32.mrf.mxu0
  %v676 = vadd.f32 0.0, %v675
  %677 = vmatmul.f32.gmra.mxu0 %v647
  %v678 = vpop.f32.mrf.mxu0
  %v679 = vadd.f32 0.0, %v678
  %680 = vmatmul.f32.gmra.mxu0 %v650
  %v681 = vpop.f32.mrf.mxu0
  %v682 = vadd.f32 0.0, %v681
  %683 = vmatmul.f32.gmra.mxu0 %v653
  %v684 = vpop.f32.mrf.mxu0
  %v685 = vadd.f32 0.0, %v684
  %686 = vmatmul.f32.gmra.mxu0 %v656
  %v687 = vpop.f32.mrf.mxu0
  %v688 = vadd.f32 0.0, %v687
  %689 = vdwg.mxu0
  %690 = vrot.lane.b32.xlu0 %v291, 112
  %v691 = vpop.permute.xlu0 %690
  %692 = vrot.lane.b32.xlu0 %v294, 112
  %v693 = vpop.permute.xlu0 %692
  %694 = vrot.lane.b32.xlu0 %v297, 112
  %v695 = vpop.permute.xlu0 %694
  %696 = vrot.lane.b32.xlu0 %v300, 112
  %v697 = vpop.permute.xlu0 %696
  %698 = vrot.lane.b32.xlu0 %v303, 112
  %v699 = vpop.permute.xlu0 %698
  %700 = vrot.lane.b32.xlu0 %v291, 80
  %v701 = vpop.permute.xlu0 %700
  %702 = vrot.lane.b32.xlu0 %v294, 80
  %v703 = vpop.permute.xlu0 %702
  %704 = vrot.lane.b32.xlu0 %v297, 80
  %v705 = vpop.permute.xlu0 %704
  %706 = vrot.lane.b32.xlu0 %v300, 80
  %v707 = vpop.permute.xlu0 %706
  %708 = vrot.lane.b32.xlu0 %v303, 80
  %v709 = vpop.permute.xlu0 %708
  %v710 = vsel %vm320, %v691, 0
  %v712 = vsel %vm320, %v693, 0
  %v714 = vsel %vm320, %v695, 0
  %v716 = vsel %vm320, %v697, 0
  %v718 = vsel %vm320, %v699, 0
  %v720 = vsel %vm320, %v701, 0
  %v722 = vsel %vm320, %v703, 0
  %v724 = vsel %vm320, %v705, 0
  %v726 = vsel %vm320, %v707, 0
  %v728 = vsel %vm320, %v709, 0
  %730 = vmatpush.xpose.msra.mxu0 0.0
  %731 = vmatpush.xpose.msra.mxu0 0.0
  %732 = vmatpush.xpose.msra.mxu0 0.0
  %733 = vmatpush.xpose.msra.mxu0 0.0
  %734 = vmatpush.xpose.msra.mxu0 0.0
  %735 = vmatpush.xpose.msra.mxu0 0.0
  %736 = vmatpush.xpose.msra.mxu0 0.0
  %737 = vmatpush.xpose.msra.mxu0 0.0
  %738 = vmatpush.xpose.msra.mxu0 0.0
  %739 = vmatpush.xpose.msra.mxu0 0.0
  %740 = vmatpush.xpose.msra.mxu0 0.0
  %741 = vmatpush.xpose.msra.mxu0 %v728
  %742 = vmatpush.xpose.msra.mxu0 %v726
  %743 = vmatpush.xpose.msra.mxu0 %v724
  %744 = vmatpush.xpose.msra.mxu0 %v722
  %745 = vmatpush.xpose.msra.mxu0 %v720
  %746 = vmatmul.f32.gmra.mxu0 %v710
  %v747 = vpop.f32.mrf.mxu0
  %v748 = vadd.f32 0.0, %v747
  %749 = vmatmul.f32.gmra.mxu0 %v712
  %v750 = vpop.f32.mrf.mxu0
  %v751 = vadd.f32 0.0, %v750
  %752 = vmatmul.f32.gmra.mxu0 %v714
  %v753 = vpop.f32.mrf.mxu0
  %v754 = vadd.f32 0.0, %v753
  %755 = vmatmul.f32.gmra.mxu0 %v716
  %v756 = vpop.f32.mrf.mxu0
  %v757 = vadd.f32 0.0, %v756
  %758 = vmatmul.f32.gmra.mxu0 %v718
  %v759 = vpop.f32.mrf.mxu0
  %v760 = vadd.f32 0.0, %v759
  %761 = vdwg.mxu0
  %v762 = vsel %vm115, %v748, -1e+09
  %v763 = vsel %vm116, %v751, -1e+09
  %v764 = vsel %vm117, %v754, -1e+09
  %v765 = vsel %vm118, %v757, -1e+09
  %v766 = vsel %vm119, %v760, -1e+09
  %v767 = vsel %vm378, %v762, -inf
  %768 = vmax.xlane.f32.xlu0 %v767
  %v769 = vpop.xlane.xlu0 %768
  %v770 = vsel %vm378, %v763, -inf
  %771 = vmax.xlane.f32.xlu0 %v770
  %v772 = vpop.xlane.xlu0 %771
  %v773 = vsel %vm378, %v764, -inf
  %774 = vmax.xlane.f32.xlu0 %v773
  %v775 = vpop.xlane.xlu0 %774
  %v776 = vsel %vm378, %v765, -inf
  %777 = vmax.xlane.f32.xlu0 %v776
  %v778 = vpop.xlane.xlu0 %777
  %v779 = vsel %vm378, %v766, -inf
  %780 = vmax.xlane.f32.xlu0 %v779
  %v781 = vpop.xlane.xlu0 %780
  %v782 = vsub.f32 %v762, %v769
  %v783 = vsub.f32 %v763, %v772
  %v784 = vsub.f32 %v764, %v775
  %v785 = vsub.f32 %v765, %v778
  %v786 = vsub.f32 %v766, %v781
  %v787 = vmul.f32 %v782, 1.442695
  %v788 = vpow.pop %v787
  %v789 = vmul.f32 %v783, 1.442695
  %v790 = vpow.pop %v789
  %v791 = vmul.f32 %v784, 1.442695
  %v792 = vpow.pop %v791
  %v793 = vmul.f32 %v785, 1.442695
  %v794 = vpow.pop %v793
  %v795 = vmul.f32 %v786, 1.442695
  %v796 = vpow.pop %v795
  %v797 = vsel %vm378, %v788, 0.0
  %798 = vadd.xlane.f32.xlu0 %v797
  %v799 = vpop.xlane.xlu0 %798
  %v800 = vsel %vm378, %v790, 0.0
  %801 = vadd.xlane.f32.xlu0 %v800
  %v802 = vpop.xlane.xlu0 %801
  %v803 = vsel %vm378, %v792, 0.0
  %804 = vadd.xlane.f32.xlu0 %v803
  %v805 = vpop.xlane.xlu0 %804
  %v806 = vsel %vm378, %v794, 0.0
  %807 = vadd.xlane.f32.xlu0 %v806
  %v808 = vpop.xlane.xlu0 %807
  %v809 = vsel %vm378, %v796, 0.0
  %810 = vadd.xlane.f32.xlu0 %v809
  %v811 = vpop.xlane.xlu0 %810
  %v812 = vrcp.pop %v799
  %v813 = vrcp.pop %v802
  %v814 = vrcp.pop %v805
  %v815 = vrcp.pop %v808
  %v816 = vrcp.pop %v811
  %v817 = vmul.f32 %v788, %v812
  %v818 = vmul.f32 %v790, %v813
  %v819 = vmul.f32 %v792, %v814
  %v820 = vmul.f32 %v794, %v815
  %v821 = vmul.f32 %v796, %v816
  %822 = vrot.lane.b32.xlu0 %v291, 48
  %v823 = vpop.permute.xlu0 %822
  %824 = vrot.lane.b32.xlu0 %v294, 48
  %v825 = vpop.permute.xlu0 %824
  %826 = vrot.lane.b32.xlu0 %v297, 48
  %v827 = vpop.permute.xlu0 %826
  %828 = vrot.lane.b32.xlu0 %v300, 48
  %v829 = vpop.permute.xlu0 %828
  %830 = vrot.lane.b32.xlu0 %v303, 48
  %v831 = vpop.permute.xlu0 %830
  %v838 = vsel %vm378, %v817, 0
  %v841 = vsel %vm378, %v818, 0
  %v844 = vsel %vm378, %v819, 0
  %v847 = vsel %vm378, %v820, 0
  %v850 = vsel %vm378, %v821, 0
  %852 = vmatpush.msra.mxu0 0.0
  %853 = vmatpush.msra.mxu0 0.0
  %854 = vmatpush.msra.mxu0 0.0
  %855 = vmatpush.msra.mxu0 0.0
  %856 = vmatpush.msra.mxu0 0.0
  %857 = vmatpush.msra.mxu0 0.0
  %858 = vmatpush.msra.mxu0 0.0
  %859 = vmatpush.msra.mxu0 0.0
  %860 = vmatpush.msra.mxu0 0.0
  %861 = vmatpush.msra.mxu0 0.0
  %862 = vmatpush.msra.mxu0 0.0
  %863 = vmatpush.msra.mxu0 %v831
  %864 = vmatpush.msra.mxu0 %v829
  %865 = vmatpush.msra.mxu0 %v827
  %866 = vmatpush.msra.mxu0 %v825
  %867 = vmatpush.msra.mxu0 %v823
  %868 = vmatmul.f32.gmra.mxu0 %v838
  %v869 = vpop.f32.mrf.mxu0
  %v870 = vadd.f32 0.0, %v869
  %871 = vmatmul.f32.gmra.mxu0 %v841
  %v872 = vpop.f32.mrf.mxu0
  %v873 = vadd.f32 0.0, %v872
  %874 = vmatmul.f32.gmra.mxu0 %v844
  %v875 = vpop.f32.mrf.mxu0
  %v876 = vadd.f32 0.0, %v875
  %877 = vmatmul.f32.gmra.mxu0 %v847
  %v878 = vpop.f32.mrf.mxu0
  %v879 = vadd.f32 0.0, %v878
  %880 = vmatmul.f32.gmra.mxu0 %v850
  %v881 = vpop.f32.mrf.mxu0
  %v882 = vadd.f32 0.0, %v881
  %883 = vdwg.mxu0
  %884 = vrot.lane.b32.xlu0 %v291, 104
  %v885 = vpop.permute.xlu0 %884
  %886 = vrot.lane.b32.xlu0 %v294, 104
  %v887 = vpop.permute.xlu0 %886
  %888 = vrot.lane.b32.xlu0 %v297, 104
  %v889 = vpop.permute.xlu0 %888
  %890 = vrot.lane.b32.xlu0 %v300, 104
  %v891 = vpop.permute.xlu0 %890
  %892 = vrot.lane.b32.xlu0 %v303, 104
  %v893 = vpop.permute.xlu0 %892
  %894 = vrot.lane.b32.xlu0 %v291, 72
  %v895 = vpop.permute.xlu0 %894
  %896 = vrot.lane.b32.xlu0 %v294, 72
  %v897 = vpop.permute.xlu0 %896
  %898 = vrot.lane.b32.xlu0 %v297, 72
  %v899 = vpop.permute.xlu0 %898
  %900 = vrot.lane.b32.xlu0 %v300, 72
  %v901 = vpop.permute.xlu0 %900
  %902 = vrot.lane.b32.xlu0 %v303, 72
  %v903 = vpop.permute.xlu0 %902
  %v904 = vsel %vm320, %v885, 0
  %v906 = vsel %vm320, %v887, 0
  %v908 = vsel %vm320, %v889, 0
  %v910 = vsel %vm320, %v891, 0
  %v912 = vsel %vm320, %v893, 0
  %v914 = vsel %vm320, %v895, 0
  %v916 = vsel %vm320, %v897, 0
  %v918 = vsel %vm320, %v899, 0
  %v920 = vsel %vm320, %v901, 0
  %v922 = vsel %vm320, %v903, 0
  %924 = vmatpush.xpose.msra.mxu0 0.0
  %925 = vmatpush.xpose.msra.mxu0 0.0
  %926 = vmatpush.xpose.msra.mxu0 0.0
  %927 = vmatpush.xpose.msra.mxu0 0.0
  %928 = vmatpush.xpose.msra.mxu0 0.0
  %929 = vmatpush.xpose.msra.mxu0 0.0
  %930 = vmatpush.xpose.msra.mxu0 0.0
  %931 = vmatpush.xpose.msra.mxu0 0.0
  %932 = vmatpush.xpose.msra.mxu0 0.0
  %933 = vmatpush.xpose.msra.mxu0 0.0
  %934 = vmatpush.xpose.msra.mxu0 0.0
  %935 = vmatpush.xpose.msra.mxu0 %v922
  %936 = vmatpush.xpose.msra.mxu0 %v920
  %937 = vmatpush.xpose.msra.mxu0 %v918
  %938 = vmatpush.xpose.msra.mxu0 %v916
  %939 = vmatpush.xpose.msra.mxu0 %v914
  %940 = vmatmul.f32.gmra.mxu0 %v904
  %v941 = vpop.f32.mrf.mxu0
  %v942 = vadd.f32 0.0, %v941
  %943 = vmatmul.f32.gmra.mxu0 %v906
  %v944 = vpop.f32.mrf.mxu0
  %v945 = vadd.f32 0.0, %v944
  %946 = vmatmul.f32.gmra.mxu0 %v908
  %v947 = vpop.f32.mrf.mxu0
  %v948 = vadd.f32 0.0, %v947
  %949 = vmatmul.f32.gmra.mxu0 %v910
  %v950 = vpop.f32.mrf.mxu0
  %v951 = vadd.f32 0.0, %v950
  %952 = vmatmul.f32.gmra.mxu0 %v912
  %v953 = vpop.f32.mrf.mxu0
  %v954 = vadd.f32 0.0, %v953
  %955 = vdwg.mxu0
  %v956 = vsel %vm115, %v942, -1e+09
  %v957 = vsel %vm116, %v945, -1e+09
  %v958 = vsel %vm117, %v948, -1e+09
  %v959 = vsel %vm118, %v951, -1e+09
  %v960 = vsel %vm119, %v954, -1e+09
  %v961 = vsel %vm378, %v956, -inf
  %962 = vmax.xlane.f32.xlu0 %v961
  %v963 = vpop.xlane.xlu0 %962
  %v964 = vsel %vm378, %v957, -inf
  %965 = vmax.xlane.f32.xlu0 %v964
  %v966 = vpop.xlane.xlu0 %965
  %v967 = vsel %vm378, %v958, -inf
  %968 = vmax.xlane.f32.xlu0 %v967
  %v969 = vpop.xlane.xlu0 %968
  %v970 = vsel %vm378, %v959, -inf
  %971 = vmax.xlane.f32.xlu0 %v970
  %v972 = vpop.xlane.xlu0 %971
  %v973 = vsel %vm378, %v960, -inf
  %974 = vmax.xlane.f32.xlu0 %v973
  %v975 = vpop.xlane.xlu0 %974
  %v976 = vsub.f32 %v956, %v963
  %v977 = vsub.f32 %v957, %v966
  %v978 = vsub.f32 %v958, %v969
  %v979 = vsub.f32 %v959, %v972
  %v980 = vsub.f32 %v960, %v975
  %v981 = vmul.f32 %v976, 1.442695
  %v982 = vpow.pop %v981
  %v983 = vmul.f32 %v977, 1.442695
  %v984 = vpow.pop %v983
  %v985 = vmul.f32 %v978, 1.442695
  %v986 = vpow.pop %v985
  %v987 = vmul.f32 %v979, 1.442695
  %v988 = vpow.pop %v987
  %v989 = vmul.f32 %v980, 1.442695
  %v990 = vpow.pop %v989
  %v991 = vsel %vm378, %v982, 0.0
  %992 = vadd.xlane.f32.xlu0 %v991
  %v993 = vpop.xlane.xlu0 %992
  %v994 = vsel %vm378, %v984, 0.0
  %995 = vadd.xlane.f32.xlu0 %v994
  %v996 = vpop.xlane.xlu0 %995
  %v997 = vsel %vm378, %v986, 0.0
  %998 = vadd.xlane.f32.xlu0 %v997
  %v999 = vpop.xlane.xlu0 %998
  %v1000 = vsel %vm378, %v988, 0.0
  %1001 = vadd.xlane.f32.xlu0 %v1000
  %v1002 = vpop.xlane.xlu0 %1001
  %v1003 = vsel %vm378, %v990, 0.0
  %1004 = vadd.xlane.f32.xlu0 %v1003
  %v1005 = vpop.xlane.xlu0 %1004
  %v1006 = vrcp.pop %v993
  %v1007 = vrcp.pop %v996
  %v1008 = vrcp.pop %v999
  %v1009 = vrcp.pop %v1002
  %v1010 = vrcp.pop %v1005
  %v1011 = vmul.f32 %v982, %v1006
  %v1012 = vmul.f32 %v984, %v1007
  %v1013 = vmul.f32 %v986, %v1008
  %v1014 = vmul.f32 %v988, %v1009
  %v1015 = vmul.f32 %v990, %v1010
  %1016 = vrot.lane.b32.xlu0 %v291, 40
  %v1017 = vpop.permute.xlu0 %1016
  %1018 = vrot.lane.b32.xlu0 %v294, 40
  %v1019 = vpop.permute.xlu0 %1018
  %1020 = vrot.lane.b32.xlu0 %v297, 40
  %v1021 = vpop.permute.xlu0 %1020
  %1022 = vrot.lane.b32.xlu0 %v300, 40
  %v1023 = vpop.permute.xlu0 %1022
  %1024 = vrot.lane.b32.xlu0 %v303, 40
  %v1025 = vpop.permute.xlu0 %1024
  %v1032 = vsel %vm378, %v1011, 0
  %v1035 = vsel %vm378, %v1012, 0
  %v1038 = vsel %vm378, %v1013, 0
  %v1041 = vsel %vm378, %v1014, 0
  %v1044 = vsel %vm378, %v1015, 0
  %1046 = vmatpush.msra.mxu0 0.0
  %1047 = vmatpush.msra.mxu0 0.0
  %1048 = vmatpush.msra.mxu0 0.0
  %1049 = vmatpush.msra.mxu0 0.0
  %1050 = vmatpush.msra.mxu0 0.0
  %1051 = vmatpush.msra.mxu0 0.0
  %1052 = vmatpush.msra.mxu0 0.0
  %1053 = vmatpush.msra.mxu0 0.0
  %1054 = vmatpush.msra.mxu0 0.0
  %1055 = vmatpush.msra.mxu0 0.0
  %1056 = vmatpush.msra.mxu0 0.0
  %1057 = vmatpush.msra.mxu0 %v1025
  %1058 = vmatpush.msra.mxu0 %v1023
  %1059 = vmatpush.msra.mxu0 %v1021
  %1060 = vmatpush.msra.mxu0 %v1019
  %1061 = vmatpush.msra.mxu0 %v1017
  %1062 = vmatmul.f32.gmra.mxu0 %v1032
  %v1063 = vpop.f32.mrf.mxu0
  %v1064 = vadd.f32 0.0, %v1063
  %1065 = vmatmul.f32.gmra.mxu0 %v1035
  %v1066 = vpop.f32.mrf.mxu0
  %v1067 = vadd.f32 0.0, %v1066
  %1068 = vmatmul.f32.gmra.mxu0 %v1038
  %v1069 = vpop.f32.mrf.mxu0
  %v1070 = vadd.f32 0.0, %v1069
  %1071 = vmatmul.f32.gmra.mxu0 %v1041
  %v1072 = vpop.f32.mrf.mxu0
  %v1073 = vadd.f32 0.0, %v1072
  %1074 = vmatmul.f32.gmra.mxu0 %v1044
  %v1075 = vpop.f32.mrf.mxu0
  %v1076 = vadd.f32 0.0, %v1075
  %1077 = vdwg.mxu0
  %1083 = vrot.lane.b32.xlu0 %v676, 8
  %v1084 = vpop.permute.xlu0 %1083
  %1085 = vrot.lane.b32.xlu0 %v679, 8
  %v1086 = vpop.permute.xlu0 %1085
  %1087 = vrot.lane.b32.xlu0 %v682, 8
  %v1088 = vpop.permute.xlu0 %1087
  %1089 = vrot.lane.b32.xlu0 %v685, 8
  %v1090 = vpop.permute.xlu0 %1089
  %1091 = vrot.lane.b32.xlu0 %v688, 8
  %v1092 = vpop.permute.xlu0 %1091
  %1103 = vrot.lane.b32.xlu0 %v870, 16
  %v1104 = vpop.permute.xlu0 %1103
  %1105 = vrot.lane.b32.xlu0 %v873, 16
  %v1106 = vpop.permute.xlu0 %1105
  %1107 = vrot.lane.b32.xlu0 %v876, 16
  %v1108 = vpop.permute.xlu0 %1107
  %1109 = vrot.lane.b32.xlu0 %v879, 16
  %v1110 = vpop.permute.xlu0 %1109
  %1111 = vrot.lane.b32.xlu0 %v882, 16
  %v1112 = vpop.permute.xlu0 %1111
  %1123 = vrot.lane.b32.xlu0 %v1064, 24
  %v1124 = vpop.permute.xlu0 %1123
  %1125 = vrot.lane.b32.xlu0 %v1067, 24
  %v1126 = vpop.permute.xlu0 %1125
  %1127 = vrot.lane.b32.xlu0 %v1070, 24
  %v1128 = vpop.permute.xlu0 %1127
  %1129 = vrot.lane.b32.xlu0 %v1073, 24
  %v1130 = vpop.permute.xlu0 %1129
  %1131 = vrot.lane.b32.xlu0 %v1076, 24
  %v1132 = vpop.permute.xlu0 %1131
  %v1138 = vsel %vm320, %v482, %v1084
  %v1139 = vsel %vm320, %v485, %v1086
  %v1140 = vsel %vm320, %v488, %v1088
  %v1141 = vsel %vm320, %v491, %v1090
  %v1142 = vsel %vm320, %v494, %v1092
  %vm1143 = vcmask 130048
  %v1144 = vsel %vm1143, %v1138, %v1104
  %v1145 = vsel %vm1143, %v1139, %v1106
  %v1146 = vsel %vm1143, %v1140, %v1108
  %v1147 = vsel %vm1143, %v1141, %v1110
  %v1148 = vsel %vm1143, %v1142, %v1112
  %vm1149 = vcmask 195584
  %v1150 = vsel %vm1149, %v1144, %v1124
  %v1151 = vsel %vm1149, %v1145, %v1126
  %v1152 = vsel %vm1149, %v1146, %v1128
  %v1153 = vsel %vm1149, %v1147, %v1130
  %v1154 = vsel %vm1149, %v1148, %v1132
  %v1155 = vld [vmem:[%s1 + $0x90] sm:$0xff]
  %v1156 = vld [vmem:[%s1 + $0x98] sm:$0xff]
  %v1157 = vld [vmem:[%s1 + $0xa0] sm:$0xff]
  %v1158 = vld [vmem:[%s1 + $0xa8] sm:$0xff]
  %v1160 = vsel %vm122, %v1150, 0
  %v1163 = vsel %vm122, %v1151, 0
  %v1166 = vsel %vm122, %v1152, 0
  %v1169 = vsel %vm122, %v1153, 0
  %v1172 = vsel %vm122, %v1154, 0
  %1174 = vmatpush.msra.mxu0 0.0
  %1175 = vmatpush.msra.mxu0 0.0
  %1176 = vmatpush.msra.mxu0 0.0
  %1177 = vmatpush.msra.mxu0 0.0
  %1178 = vmatpush.msra.mxu0 0.0
  %1179 = vmatpush.msra.mxu0 0.0
  %1180 = vmatpush.msra.mxu0 0.0
  %1181 = vmatpush.msra.mxu0 0.0
  %1182 = vmatpush.msra.mxu0 0.0
  %1183 = vmatpush.msra.mxu0 0.0
  %1184 = vmatpush.msra.mxu0 0.0
  %1185 = vmatpush.msra.mxu0 0.0
  %1186 = vmatpush.msra.mxu0 %v1158
  %1187 = vmatpush.msra.mxu0 %v1157
  %1188 = vmatpush.msra.mxu0 %v1156
  %1189 = vmatpush.msra.mxu0 %v1155
  %1190 = vmatmul.f32.gmra.mxu0 %v1160
  %v1191 = vpop.f32.mrf.mxu0
  %v1192 = vadd.f32 0.0, %v1191
  %1193 = vmatmul.f32.gmra.mxu0 %v1163
  %v1194 = vpop.f32.mrf.mxu0
  %v1195 = vadd.f32 0.0, %v1194
  %1196 = vmatmul.f32.gmra.mxu0 %v1166
  %v1197 = vpop.f32.mrf.mxu0
  %v1198 = vadd.f32 0.0, %v1197
  %1199 = vmatmul.f32.gmra.mxu0 %v1169
  %v1200 = vpop.f32.mrf.mxu0
  %v1201 = vadd.f32 0.0, %v1200
  %1202 = vmatmul.f32.gmra.mxu0 %v1172
  %v1203 = vpop.f32.mrf.mxu0
  %v1204 = vadd.f32 0.0, %v1203
  %1205 = vdwg.mxu0
  %v1206 = vadd.f32 %v63, %v1192
  %v1207 = vadd.f32 %v66, %v1195
  %v1208 = vadd.f32 %v69, %v1198
  %v1209 = vadd.f32 %v72, %v1201
  %v1210 = vadd.f32 %v75, %v1204
  %v1211 = vld [vmem:[%s1 + $0x6b] sm:$0x1]
  %v1212 = vperm.slane %v1211, 0
  %v1213 = vadd.f32 %v1206, %v1212
  %v1214 = vadd.f32 %v1207, %v1212
  %v1215 = vadd.f32 %v1208, %v1212
  %v1216 = vadd.f32 %v1209, %v1212
  %v1217 = vadd.f32 %v1210, %v1212
  %v1218 = vld [vmem:[%s1 + $0x6c] sm:$0x1]
  %v1219 = vld [vmem:[%s1 + $0x6d] sm:$0x1]
  %v1220 = vsel %vm122, %v1213, 0.0
  %1221 = vadd.xlane.f32.xlu0 %v1220
  %v1222 = vpop.xlane.xlu0 %1221
  %v1223 = vsel %vm122, %v1214, 0.0
  %1224 = vadd.xlane.f32.xlu0 %v1223
  %v1225 = vpop.xlane.xlu0 %1224
  %v1226 = vsel %vm122, %v1215, 0.0
  %1227 = vadd.xlane.f32.xlu0 %v1226
  %v1228 = vpop.xlane.xlu0 %1227
  %v1229 = vsel %vm122, %v1216, 0.0
  %1230 = vadd.xlane.f32.xlu0 %v1229
  %v1231 = vpop.xlane.xlu0 %1230
  %v1232 = vsel %vm122, %v1217, 0.0
  %1233 = vadd.xlane.f32.xlu0 %v1232
  %v1234 = vpop.xlane.xlu0 %1233
  %v1235 = vmul.f32 %v1222, %v144
  %v1236 = vmul.f32 %v1225, %v144
  %v1237 = vmul.f32 %v1228, %v144
  %v1238 = vmul.f32 %v1231, %v144
  %v1239 = vmul.f32 %v1234, %v144
  %v1240 = vsub.f32 %v1213, %v1235
  %v1241 = vsub.f32 %v1214, %v1236
  %v1242 = vsub.f32 %v1215, %v1237
  %v1243 = vsub.f32 %v1216, %v1238
  %v1244 = vsub.f32 %v1217, %v1239
  %v1245 = vmul.f32 %v1240, %v1240
  %v1246 = vmul.f32 %v1241, %v1241
  %v1247 = vmul.f32 %v1242, %v1242
  %v1248 = vmul.f32 %v1243, %v1243
  %v1249 = vmul.f32 %v1244, %v1244
  %v1250 = vsel %vm122, %v1245, 0.0
  %1251 = vadd.xlane.f32.xlu0 %v1250
  %v1252 = vpop.xlane.xlu0 %1251
  %v1253 = vsel %vm122, %v1246, 0.0
  %1254 = vadd.xlane.f32.xlu0 %v1253
  %v1255 = vpop.xlane.xlu0 %1254
  %v1256 = vsel %vm122, %v1247, 0.0
  %1257 = vadd.xlane.f32.xlu0 %v1256
  %v1258 = vpop.xlane.xlu0 %1257
  %v1259 = vsel %vm122, %v1248, 0.0
  %1260 = vadd.xlane.f32.xlu0 %v1259
  %v1261 = vpop.xlane.xlu0 %1260
  %v1262 = vsel %vm122, %v1249, 0.0
  %1263 = vadd.xlane.f32.xlu0 %v1262
  %v1264 = vpop.xlane.xlu0 %1263
  %v1265 = vmul.f32 %v1252, %v144
  %v1266 = vmul.f32 %v1255, %v144
  %v1267 = vmul.f32 %v1258, %v144
  %v1268 = vmul.f32 %v1261, %v144
  %v1269 = vmul.f32 %v1264, %v144
  %v1270 = vadd.f32 %v1265, 1e-12
  %v1271 = vadd.f32 %v1266, 1e-12
  %v1272 = vadd.f32 %v1267, 1e-12
  %v1273 = vadd.f32 %v1268, 1e-12
  %v1274 = vadd.f32 %v1269, 1e-12
  %v1275 = vrsqrt.pop %v1270
  %v1276 = vmul.f32 %v1275, %v1270
  %v1277 = vmul.f32 %v1276, %v1275
  %v1278 = vmul.f32 0.5, %v1277
  %v1279 = vsub.f32 1.5, %v1278
  %v1280 = vmul.f32 %v1275, %v1279
  %vm1281 = vweird.f32 %v1270
  %vm1282 = vweird.f32 %v1275
  %vm1283 = vmor %vm1281, %vm1282
  %v1284 = vsel %vm1283, %v1275, %v1280
  %v1285 = vrsqrt.pop %v1271
  %v1286 = vmul.f32 %v1285, %v1271
  %v1287 = vmul.f32 %v1286, %v1285
  %v1288 = vmul.f32 0.5, %v1287
  %v1289 = vsub.f32 1.5, %v1288
  %v1290 = vmul.f32 %v1285, %v1289
  %vm1291 = vweird.f32 %v1271
  %vm1292 = vweird.f32 %v1285
  %vm1293 = vmor %vm1291, %vm1292
  %v1294 = vsel %vm1293, %v1285, %v1290
  %v1295 = vrsqrt.pop %v1272
  %v1296 = vmul.f32 %v1295, %v1272
  %v1297 = vmul.f32 %v1296, %v1295
  %v1298 = vmul.f32 0.5, %v1297
  %v1299 = vsub.f32 1.5, %v1298
  %v1300 = vmul.f32 %v1295, %v1299
  %vm1301 = vweird.f32 %v1272
  %vm1302 = vweird.f32 %v1295
  %vm1303 = vmor %vm1301, %vm1302
  %v1304 = vsel %vm1303, %v1295, %v1300
  %v1305 = vrsqrt.pop %v1273
  %v1306 = vmul.f32 %v1305, %v1273
  %v1307 = vmul.f32 %v1306, %v1305
  %v1308 = vmul.f32 0.5, %v1307
  %v1309 = vsub.f32 1.5, %v1308
  %v1310 = vmul.f32 %v1305, %v1309
  %vm1311 = vweird.f32 %v1273
  %vm1312 = vweird.f32 %v1305
  %vm1313 = vmor %vm1311, %vm1312
  %v1314 = vsel %vm1313, %v1305, %v1310
  %v1315 = vrsqrt.pop %v1274
  %v1316 = vmul.f32 %v1315, %v1274
  %v1317 = vmul.f32 %v1316, %v1315
  %v1318 = vmul.f32 0.5, %v1317
  %v1319 = vsub.f32 1.5, %v1318
  %v1320 = vmul.f32 %v1315, %v1319
  %vm1321 = vweird.f32 %v1274
  %vm1322 = vweird.f32 %v1315
  %vm1323 = vmor %vm1321, %vm1322
  %v1324 = vsel %vm1323, %v1315, %v1320
  %v1325 = vmul.f32 %v1240, %v1284
  %v1326 = vmul.f32 %v1241, %v1294
  %v1327 = vmul.f32 %v1242, %v1304
  %v1328 = vmul.f32 %v1243, %v1314
  %v1329 = vmul.f32 %v1244, %v1324
  %v1330 = vperm.slane %v1218, 0
  %v1331 = vmul.f32 %v1325, %v1330
  %v1332 = vmul.f32 %v1326, %v1330
  %v1333 = vmul.f32 %v1327, %v1330
  %v1334 = vmul.f32 %v1328, %v1330
  %v1335 = vmul.f32 %v1329, %v1330
  %v1336 = vperm.slane %v1219, 0
  %v1337 = vadd.f32 %v1331, %v1336
  %v1338 = vadd.f32 %v1332, %v1336
  %v1339 = vadd.f32 %v1333, %v1336
  %v1340 = vadd.f32 %v1334, %v1336
  %v1341 = vadd.f32 %v1335, %v1336
  %v1342 = vld [vmem:[%s1 + $0xb0] sm:$0xff]
  %v1343 = vld [vmem:[%s1 + $0xb8] sm:$0xff]
  %v1344 = vld [vmem:[%s1 + $0xc0] sm:$0xff]
  %v1345 = vld [vmem:[%s1 + $0xc8] sm:$0xff]
  %v1346 = vld [vmem:[%s1 + $0x6e] sm:$0x1]
  %v1347 = vperm.slane %v1346, 0
  %v1349 = vsel %vm122, %v1337, 0
  %v1352 = vsel %vm122, %v1338, 0
  %v1355 = vsel %vm122, %v1339, 0
  %v1358 = vsel %vm122, %v1340, 0
  %v1361 = vsel %vm122, %v1341, 0
  %1363 = vmatpush.msra.mxu0 0.0
  %1364 = vmatpush.msra.mxu0 0.0
  %1365 = vmatpush.msra.mxu0 0.0
  %1366 = vmatpush.msra.mxu0 0.0
  %1367 = vmatpush.msra.mxu0 0.0
  %1368 = vmatpush.msra.mxu0 0.0
  %1369 = vmatpush.msra.mxu0 0.0
  %1370 = vmatpush.msra.mxu0 0.0
  %1371 = vmatpush.msra.mxu0 0.0
  %1372 = vmatpush.msra.mxu0 0.0
  %1373 = vmatpush.msra.mxu0 0.0
  %1374 = vmatpush.msra.mxu0 0.0
  %1375 = vmatpush.msra.mxu0 %v1345
  %1376 = vmatpush.msra.mxu0 %v1344
  %1377 = vmatpush.msra.mxu0 %v1343
  %1378 = vmatpush.msra.mxu0 %v1342
  %1379 = vmatmul.f32.gmra.mxu0 %v1349
  %v1380 = vpop.f32.mrf.mxu0
  %v1381 = vadd.f32 %v1347, %v1380
  %1382 = vmatmul.f32.gmra.mxu0 %v1352
  %v1383 = vpop.f32.mrf.mxu0
  %v1384 = vadd.f32 %v1347, %v1383
  %1385 = vmatmul.f32.gmra.mxu0 %v1355
  %v1386 = vpop.f32.mrf.mxu0
  %v1387 = vadd.f32 %v1347, %v1386
  %1388 = vmatmul.f32.gmra.mxu0 %v1358
  %v1389 = vpop.f32.mrf.mxu0
  %v1390 = vadd.f32 %v1347, %v1389
  %1391 = vmatmul.f32.gmra.mxu0 %v1361
  %v1392 = vpop.f32.mrf.mxu0
  %v1393 = vadd.f32 %v1347, %v1392
  %1394 = vdwg.mxu0
  %v1395 = vmul.f32 %v1381, %v1381
  %v1396 = vmul.f32 %v1384, %v1384
  %v1397 = vmul.f32 %v1387, %v1387
  %v1398 = vmul.f32 %v1390, %v1390
  %v1399 = vmul.f32 %v1393, %v1393
  %v1400 = vmul.f32 %v1381, %v1395
  %v1401 = vmul.f32 %v1384, %v1396
  %v1402 = vmul.f32 %v1387, %v1397
  %v1403 = vmul.f32 %v1390, %v1398
  %v1404 = vmul.f32 %v1393, %v1399
  %v1405 = vmul.f32 %v1400, 0.044715
  %v1406 = vmul.f32 %v1401, 0.044715
  %v1407 = vmul.f32 %v1402, 0.044715
  %v1408 = vmul.f32 %v1403, 0.044715
  %v1409 = vmul.f32 %v1404, 0.044715
  %v1410 = vadd.f32 %v1381, %v1405
  %v1411 = vadd.f32 %v1384, %v1406
  %v1412 = vadd.f32 %v1387, %v1407
  %v1413 = vadd.f32 %v1390, %v1408
  %v1414 = vadd.f32 %v1393, %v1409
  %v1415 = vmul.f32 %v1410, 0.7978846
  %v1416 = vmul.f32 %v1411, 0.7978846
  %v1417 = vmul.f32 %v1412, 0.7978846
  %v1418 = vmul.f32 %v1413, 0.7978846
  %v1419 = vmul.f32 %v1414, 0.7978846
  %v1420 = vtanh.pop %v1415
  %v1421 = vtanh.pop %v1416
  %v1422 = vtanh.pop %v1417
  %v1423 = vtanh.pop %v1418
  %v1424 = vtanh.pop %v1419
  %v1425 = vadd.f32 %v1420, 1.0
  %v1426 = vadd.f32 %v1421, 1.0
  %v1427 = vadd.f32 %v1422, 1.0
  %v1428 = vadd.f32 %v1423, 1.0
  %v1429 = vadd.f32 %v1424, 1.0
  %v1430 = vmul.f32 %v1425, 0.5
  %v1431 = vmul.f32 %v1426, 0.5
  %v1432 = vmul.f32 %v1427, 0.5
  %v1433 = vmul.f32 %v1428, 0.5
  %v1434 = vmul.f32 %v1429, 0.5
  %v1435 = vmul.f32 %v1381, %v1430
  %v1436 = vmul.f32 %v1384, %v1431
  %v1437 = vmul.f32 %v1387, %v1432
  %v1438 = vmul.f32 %v1390, %v1433
  %v1439 = vmul.f32 %v1393, %v1434
  %v1440 = vld [vmem:[%s1 + $0xd0] sm:$0xff]
  %v1441 = vld [vmem:[%s1 + $0xd8] sm:$0xff]
  %v1442 = vld [vmem:[%s1 + $0xe0] sm:$0xff]
  %v1443 = vld [vmem:[%s1 + $0xe8] sm:$0xff]
  %v1444 = vld [vmem:[%s1 + $0xf0] sm:$0xff]
  %v1445 = vld [vmem:[%s1 + $0xf8] sm:$0xff]
  %v1446 = vld [vmem:[%s1 + $0x100] sm:$0xff]
  %v1447 = vld [vmem:[%s1 + $0x108] sm:$0xff]
  %v1449 = vsel %vm29, %v1435, 0
  %v1452 = vsel %vm29, %v1436, 0
  %v1455 = vsel %vm29, %v1437, 0
  %v1458 = vsel %vm29, %v1438, 0
  %v1461 = vsel %vm29, %v1439, 0
  %1463 = vmatpush.msra.mxu0 0.0
  %1464 = vmatpush.msra.mxu0 0.0
  %1465 = vmatpush.msra.mxu0 0.0
  %1466 = vmatpush.msra.mxu0 0.0
  %1467 = vmatpush.msra.mxu0 0.0
  %1468 = vmatpush.msra.mxu0 0.0
  %1469 = vmatpush.msra.mxu0 0.0
  %1470 = vmatpush.msra.mxu0 0.0
  %1471 = vmatpush.msra.mxu0 %v1447
  %1472 = vmatpush.msra.mxu0 %v1446
  %1473 = vmatpush.msra.mxu0 %v1445
  %1474 = vmatpush.msra.mxu0 %v1444
  %1475 = vmatpush.msra.mxu0 %v1443
  %1476 = vmatpush.msra.mxu0 %v1442
  %1477 = vmatpush.msra.mxu0 %v1441
  %1478 = vmatpush.msra.mxu0 %v1440
  %1479 = vmatmul.f32.gmra.mxu0 %v1449
  %v1480 = vpop.f32.mrf.mxu0
  %v1481 = vadd.f32 0.0, %v1480
  %1482 = vmatmul.f32.gmra.mxu0 %v1452
  %v1483 = vpop.f32.mrf.mxu0
  %v1484 = vadd.f32 0.0, %v1483
  %1485 = vmatmul.f32.gmra.mxu0 %v1455
  %v1486 = vpop.f32.mrf.mxu0
  %v1487 = vadd.f32 0.0, %v1486
  %1488 = vmatmul.f32.gmra.mxu0 %v1458
  %v1489 = vpop.f32.mrf.mxu0
  %v1490 = vadd.f32 0.0, %v1489
  %1491 = vmatmul.f32.gmra.mxu0 %v1461
  %v1492 = vpop.f32.mrf.mxu0
  %v1493 = vadd.f32 0.0, %v1492
  %1494 = vdwg.mxu0
  %v1495 = vadd.f32 %v1213, %v1481
  %v1496 = vadd.f32 %v1214, %v1484
  %v1497 = vadd.f32 %v1215, %v1487
  %v1498 = vadd.f32 %v1216, %v1490
  %v1499 = vadd.f32 %v1217, %v1493
  %v1500 = vld [vmem:[%s1 + $0x6f] sm:$0x1]
  %v1501 = vperm.slane %v1500, 0
  %v1502 = vadd.f32 %v1495, %v1501
  %v1503 = vadd.f32 %v1496, %v1501
  %v1504 = vadd.f32 %v1497, %v1501
  %v1505 = vadd.f32 %v1498, %v1501
  %v1506 = vadd.f32 %v1499, %v1501
  %v1507 = vld [vmem:[%s1 + $0x110] sm:$0x1]
  %v1508 = vld [vmem:[%s1 + $0x111] sm:$0x1]
  %v1509 = vsel %vm122, %v1502, 0.0
  %1510 = vadd.xlane.f32.xlu0 %v1509
  %v1511 = vpop.xlane.xlu0 %1510
  %v1512 = vsel %vm122, %v1503, 0.0
  %1513 = vadd.xlane.f32.xlu0 %v1512
  %v1514 = vpop.xlane.xlu0 %1513
  %v1515 = vsel %vm122, %v1504, 0.0
  %1516 = vadd.xlane.f32.xlu0 %v1515
  %v1517 = vpop.xlane.xlu0 %1516
  %v1518 = vsel %vm122, %v1505, 0.0
  %1519 = vadd.xlane.f32.xlu0 %v1518
  %v1520 = vpop.xlane.xlu0 %1519
  %v1521 = vsel %vm122, %v1506, 0.0
  %1522 = vadd.xlane.f32.xlu0 %v1521
  %v1523 = vpop.xlane.xlu0 %1522
  %v1524 = vmul.f32 %v1511, %v144
  %v1525 = vmul.f32 %v1514, %v144
  %v1526 = vmul.f32 %v1517, %v144
  %v1527 = vmul.f32 %v1520, %v144
  %v1528 = vmul.f32 %v1523, %v144
  %v1529 = vsub.f32 %v1502, %v1524
  %v1530 = vsub.f32 %v1503, %v1525
  %v1531 = vsub.f32 %v1504, %v1526
  %v1532 = vsub.f32 %v1505, %v1527
  %v1533 = vsub.f32 %v1506, %v1528
  %v1534 = vmul.f32 %v1529, %v1529
  %v1535 = vmul.f32 %v1530, %v1530
  %v1536 = vmul.f32 %v1531, %v1531
  %v1537 = vmul.f32 %v1532, %v1532
  %v1538 = vmul.f32 %v1533, %v1533
  %v1539 = vsel %vm122, %v1534, 0.0
  %1540 = vadd.xlane.f32.xlu0 %v1539
  %v1541 = vpop.xlane.xlu0 %1540
  %v1542 = vsel %vm122, %v1535, 0.0
  %1543 = vadd.xlane.f32.xlu0 %v1542
  %v1544 = vpop.xlane.xlu0 %1543
  %v1545 = vsel %vm122, %v1536, 0.0
  %1546 = vadd.xlane.f32.xlu0 %v1545
  %v1547 = vpop.xlane.xlu0 %1546
  %v1548 = vsel %vm122, %v1537, 0.0
  %1549 = vadd.xlane.f32.xlu0 %v1548
  %v1550 = vpop.xlane.xlu0 %1549
  %v1551 = vsel %vm122, %v1538, 0.0
  %1552 = vadd.xlane.f32.xlu0 %v1551
  %v1553 = vpop.xlane.xlu0 %1552
  %v1554 = vmul.f32 %v1541, %v144
  %v1555 = vmul.f32 %v1544, %v144
  %v1556 = vmul.f32 %v1547, %v144
  %v1557 = vmul.f32 %v1550, %v144
  %v1558 = vmul.f32 %v1553, %v144
  %v1559 = vadd.f32 %v1554, 1e-12
  %v1560 = vadd.f32 %v1555, 1e-12
  %v1561 = vadd.f32 %v1556, 1e-12
  %v1562 = vadd.f32 %v1557, 1e-12
  %v1563 = vadd.f32 %v1558, 1e-12
  %v1564 = vrsqrt.pop %v1559
  %v1565 = vmul.f32 %v1564, %v1559
  %v1566 = vmul.f32 %v1565, %v1564
  %v1567 = vmul.f32 0.5, %v1566
  %v1568 = vsub.f32 1.5, %v1567
  %v1569 = vmul.f32 %v1564, %v1568
  %vm1570 = vweird.f32 %v1559
  %vm1571 = vweird.f32 %v1564
  %vm1572 = vmor %vm1570, %vm1571
  %v1573 = vsel %vm1572, %v1564, %v1569
  %v1574 = vrsqrt.pop %v1560
  %v1575 = vmul.f32 %v1574, %v1560
  %v1576 = vmul.f32 %v1575, %v1574
  %v1577 = vmul.f32 0.5, %v1576
  %v1578 = vsub.f32 1.5, %v1577
  %v1579 = vmul.f32 %v1574, %v1578
  %vm1580 = vweird.f32 %v1560
  %vm1581 = vweird.f32 %v1574
  %vm1582 = vmor %vm1580, %vm1581
  %v1583 = vsel %vm1582, %v1574, %v1579
  %v1584 = vrsqrt.pop %v1561
  %v1585 = vmul.f32 %v1584, %v1561
  %v1586 = vmul.f32 %v1585, %v1584
  %v1587 = vmul.f32 0.5, %v1586
  %v1588 = vsub.f32 1.5, %v1587
  %v1589 = vmul.f32 %v1584, %v1588
  %vm1590 = vweird.f32 %v1561
  %vm1591 = vweird.f32 %v1584
  %vm1592 = vmor %vm1590, %vm1591
  %v1593 = vsel %vm1592, %v1584, %v1589
  %v1594 = vrsqrt.pop %v1562
  %v1595 = vmul.f32 %v1594, %v1562
  %v1596 = vmul.f32 %v1595, %v1594
  %v1597 = vmul.f32 0.5, %v1596
  %v1598 = vsub.f32 1.5, %v1597
  %v1599 = vmul.f32 %v1594, %v1598
  %vm1600 = vweird.f32 %v1562
  %vm1601 = vweird.f32 %v1594
  %vm1602 = vmor %vm1600, %vm1601
  %v1603 = vsel %vm1602, %v1594, %v1599
  %v1604 = vrsqrt.pop %v1563
  %v1605 = vmul.f32 %v1604, %v1563
  %v1606 = vmul.f32 %v1605, %v1604
  %v1607 = vmul.f32 0.5, %v1606
  %v1608 = vsub.f32 1.5, %v1607
  %v1609 = vmul.f32 %v1604, %v1608
  %vm1610 = vweird.f32 %v1563
  %vm1611 = vweird.f32 %v1604
  %vm1612 = vmor %vm1610, %vm1611
  %v1613 = vsel %vm1612, %v1604, %v1609
  %v1614 = vmul.f32 %v1529, %v1573
  %v1615 = vmul.f32 %v1530, %v1583
  %v1616 = vmul.f32 %v1531, %v1593
  %v1617 = vmul.f32 %v1532, %v1603
  %v1618 = vmul.f32 %v1533, %v1613
  %v1619 = vperm.slane %v1507, 0
  %v1620 = vmul.f32 %v1614, %v1619
  %v1621 = vmul.f32 %v1615, %v1619
  %v1622 = vmul.f32 %v1616, %v1619
  %v1623 = vmul.f32 %v1617, %v1619
  %v1624 = vmul.f32 %v1618, %v1619
  %v1625 = vperm.slane %v1508, 0
  %v1626 = vadd.f32 %v1620, %v1625
  %v1627 = vadd.f32 %v1621, %v1625
  %v1628 = vadd.f32 %v1622, %v1625
  %v1629 = vadd.f32 %v1623, %v1625
  %v1630 = vadd.f32 %v1624, %v1625
  %v1631 = vld [vmem:[%s1 + $0x118] sm:$0xff]
  %v1632 = vld [vmem:[%s1 + $0x120] sm:$0xff]
  %v1633 = vld [vmem:[%s1 + $0x128] sm:$0xff]
  %v1634 = vld [vmem:[%s1 + $0x130] sm:$0xff]
  %v1635 = vld [vmem:[%s1 + $0x112] sm:$0x1]
  %v1636 = vperm.slane %v1635, 0
  %v1638 = vsel %vm122, %v1626, 0
  %v1641 = vsel %vm122, %v1627, 0
  %v1644 = vsel %vm122, %v1628, 0
  %v1647 = vsel %vm122, %v1629, 0
  %v1650 = vsel %vm122, %v1630, 0
  %1652 = vmatpush.msra.mxu0 0.0
  %1653 = vmatpush.msra.mxu0 0.0
  %1654 = vmatpush.msra.mxu0 0.0
  %1655 = vmatpush.msra.mxu0 0.0
  %1656 = vmatpush.msra.mxu0 0.0
  %1657 = vmatpush.msra.mxu0 0.0
  %1658 = vmatpush.msra.mxu0 0.0
  %1659 = vmatpush.msra.mxu0 0.0
  %1660 = vmatpush.msra.mxu0 0.0
  %1661 = vmatpush.msra.mxu0 0.0
  %1662 = vmatpush.msra.mxu0 0.0
  %1663 = vmatpush.msra.mxu0 0.0
  %1664 = vmatpush.msra.mxu0 %v1634
  %1665 = vmatpush.msra.mxu0 %v1633
  %1666 = vmatpush.msra.mxu0 %v1632
  %1667 = vmatpush.msra.mxu0 %v1631
  %1668 = vmatmul.f32.gmra.mxu0 %v1638
  %v1669 = vpop.f32.mrf.mxu0
  %v1670 = vadd.f32 %v1636, %v1669
  %1671 = vmatmul.f32.gmra.mxu0 %v1641
  %v1672 = vpop.f32.mrf.mxu0
  %v1673 = vadd.f32 %v1636, %v1672
  %1674 = vmatmul.f32.gmra.mxu0 %v1644
  %v1675 = vpop.f32.mrf.mxu0
  %v1676 = vadd.f32 %v1636, %v1675
  %1677 = vmatmul.f32.gmra.mxu0 %v1647
  %v1678 = vpop.f32.mrf.mxu0
  %v1679 = vadd.f32 %v1636, %v1678
  %1680 = vmatmul.f32.gmra.mxu0 %v1650
  %v1681 = vpop.f32.mrf.mxu0
  %v1682 = vadd.f32 %v1636, %v1681
  %1683 = vdwg.mxu0
  %1689 = vrot.lane.b32.xlu0 %v1670, 96
  %v1690 = vpop.permute.xlu0 %1689
  %1691 = vrot.lane.b32.xlu0 %v1673, 96
  %v1692 = vpop.permute.xlu0 %1691
  %1693 = vrot.lane.b32.xlu0 %v1676, 96
  %v1694 = vpop.permute.xlu0 %1693
  %1695 = vrot.lane.b32.xlu0 %v1679, 96
  %v1696 = vpop.permute.xlu0 %1695
  %1697 = vrot.lane.b32.xlu0 %v1682, 96
  %v1698 = vpop.permute.xlu0 %1697
  %v1699 = vsel %vm320, %v1670, 0
  %v1701 = vsel %vm320, %v1673, 0
  %v1703 = vsel %vm320, %v1676, 0
  %v1705 = vsel %vm320, %v1679, 0
  %v1707 = vsel %vm320, %v1682, 0
  %v1709 = vsel %vm320, %v1690, 0
  %v1711 = vsel %vm320, %v1692, 0
  %v1713 = vsel %vm320, %v1694, 0
  %v1715 = vsel %vm320, %v1696, 0
  %v1717 = vsel %vm320, %v1698, 0
  %1719 = vmatpush.xpose.msra.mxu0 0.0
  %1720 = vmatpush.xpose.msra.mxu0 0.0
  %1721 = vmatpush.xpose.msra.mxu0 0.0
  %1722 = vmatpush.xpose.msra.mxu0 0.0
  %1723 = vmatpush.xpose.msra.mxu0 0.0
  %1724 = vmatpush.xpose.msra.mxu0 0.0
  %1725 = vmatpush.xpose.msra.mxu0 0.0
  %1726 = vmatpush.xpose.msra.mxu0 0.0
  %1727 = vmatpush.xpose.msra.mxu0 0.0
  %1728 = vmatpush.xpose.msra.mxu0 0.0
  %1729 = vmatpush.xpose.msra.mxu0 0.0
  %1730 = vmatpush.xpose.msra.mxu0 %v1717
  %1731 = vmatpush.xpose.msra.mxu0 %v1715
  %1732 = vmatpush.xpose.msra.mxu0 %v1713
  %1733 = vmatpush.xpose.msra.mxu0 %v1711
  %1734 = vmatpush.xpose.msra.mxu0 %v1709
  %1735 = vmatmul.f32.gmra.mxu0 %v1699
  %v1736 = vpop.f32.mrf.mxu0
  %v1737 = vadd.f32 0.0, %v1736
  %1738 = vmatmul.f32.gmra.mxu0 %v1701
  %v1739 = vpop.f32.mrf.mxu0
  %v1740 = vadd.f32 0.0, %v1739
  %1741 = vmatmul.f32.gmra.mxu0 %v1703
  %v1742 = vpop.f32.mrf.mxu0
  %v1743 = vadd.f32 0.0, %v1742
  %1744 = vmatmul.f32.gmra.mxu0 %v1705
  %v1745 = vpop.f32.mrf.mxu0
  %v1746 = vadd.f32 0.0, %v1745
  %1747 = vmatmul.f32.gmra.mxu0 %v1707
  %v1748 = vpop.f32.mrf.mxu0
  %v1749 = vadd.f32 0.0, %v1748
  %1750 = vdwg.mxu0
  %v1751 = vsel %vm115, %v1737, -1e+09
  %v1752 = vsel %vm116, %v1740, -1e+09
  %v1753 = vsel %vm117, %v1743, -1e+09
  %v1754 = vsel %vm118, %v1746, -1e+09
  %v1755 = vsel %vm119, %v1749, -1e+09
  %v1756 = vsel %vm378, %v1751, -inf
  %1757 = vmax.xlane.f32.xlu0 %v1756
  %v1758 = vpop.xlane.xlu0 %1757
  %v1759 = vsel %vm378, %v1752, -inf
  %1760 = vmax.xlane.f32.xlu0 %v1759
  %v1761 = vpop.xlane.xlu0 %1760
  %v1762 = vsel %vm378, %v1753, -inf
  %1763 = vmax.xlane.f32.xlu0 %v1762
  %v1764 = vpop.xlane.xlu0 %1763
  %v1765 = vsel %vm378, %v1754, -inf
  %1766 = vmax.xlane.f32.xlu0 %v1765
  %v1767 = vpop.xlane.xlu0 %1766
  %v1768 = vsel %vm378, %v1755, -inf
  %1769 = vmax.xlane.f32.xlu0 %v1768
  %v1770 = vpop.xlane.xlu0 %1769
  %v1771 = vsub.f32 %v1751, %v1758
  %v1772 = vsub.f32 %v1752, %v1761
  %v1773 = vsub.f32 %v1753, %v1764
  %v1774 = vsub.f32 %v1754, %v1767
  %v1775 = vsub.f32 %v1755, %v1770
  %v1776 = vmul.f32 %v1771, 1.442695
  %v1777 = vpow.pop %v1776
  %v1778 = vmul.f32 %v1772, 1.442695
  %v1779 = vpow.pop %v1778
  %v1780 = vmul.f32 %v1773, 1.442695
  %v1781 = vpow.pop %v1780
  %v1782 = vmul.f32 %v1774, 1.442695
  %v1783 = vpow.pop %v1782
  %v1784 = vmul.f32 %v1775, 1.442695
  %v1785 = vpow.pop %v1784
  %v1786 = vsel %vm378, %v1777, 0.0
  %1787 = vadd.xlane.f32.xlu0 %v1786
  %v1788 = vpop.xlane.xlu0 %1787
  %v1789 = vsel %vm378, %v1779, 0.0
  %1790 = vadd.xlane.f32.xlu0 %v1789
  %v1791 = vpop.xlane.xlu0 %1790
  %v1792 = vsel %vm378, %v1781, 0.0
  %1793 = vadd.xlane.f32.xlu0 %v1792
  %v1794 = vpop.xlane.xlu0 %1793
  %v1795 = vsel %vm378, %v1783, 0.0
  %1796 = vadd.xlane.f32.xlu0 %v1795
  %v1797 = vpop.xlane.xlu0 %1796
  %v1798 = vsel %vm378, %v1785, 0.0
  %1799 = vadd.xlane.f32.xlu0 %v1798
  %v1800 = vpop.xlane.xlu0 %1799
  %v1801 = vrcp.pop %v1788
  %v1802 = vrcp.pop %v1791
  %v1803 = vrcp.pop %v1794
  %v1804 = vrcp.pop %v1797
  %v1805 = vrcp.pop %v1800
  %v1806 = vmul.f32 %v1777, %v1801
  %v1807 = vmul.f32 %v1779, %v1802
  %v1808 = vmul.f32 %v1781, %v1803
  %v1809 = vmul.f32 %v1783, %v1804
  %v1810 = vmul.f32 %v1785, %v1805
  %1811 = vrot.lane.b32.xlu0 %v1670, 64
  %v1812 = vpop.permute.xlu0 %1811
  %1813 = vrot.lane.b32.xlu0 %v1673, 64
  %v1814 = vpop.permute.xlu0 %1813
  %1815 = vrot.lane.b32.xlu0 %v1676, 64
  %v1816 = vpop.permute.xlu0 %1815
  %1817 = vrot.lane.b32.xlu0 %v1679, 64
  %v1818 = vpop.permute.xlu0 %1817
  %1819 = vrot.lane.b32.xlu0 %v1682, 64
  %v1820 = vpop.permute.xlu0 %1819
  %v1827 = vsel %vm378, %v1806, 0
  %v1830 = vsel %vm378, %v1807, 0
  %v1833 = vsel %vm378, %v1808, 0
  %v1836 = vsel %vm378, %v1809, 0
  %v1839 = vsel %vm378, %v1810, 0
  %1841 = vmatpush.msra.mxu0 0.0
  %1842 = vmatpush.msra.mxu0 0.0
  %1843 = vmatpush.msra.mxu0 0.0
  %1844 = vmatpush.msra.mxu0 0.0
  %1845 = vmatpush.msra.mxu0 0.0
  %1846 = vmatpush.msra.mxu0 0.0
  %1847 = vmatpush.msra.mxu0 0.0
  %1848 = vmatpush.msra.mxu0 0.0
  %1849 = vmatpush.msra.mxu0 0.0
  %1850 = vmatpush.msra.mxu0 0.0
  %1851 = vmatpush.msra.mxu0 0.0
  %1852 = vmatpush.msra.mxu0 %v1820
  %1853 = vmatpush.msra.mxu0 %v1818
  %1854 = vmatpush.msra.mxu0 %v1816
  %1855 = vmatpush.msra.mxu0 %v1814
  %1856 = vmatpush.msra.mxu0 %v1812
  %1857 = vmatmul.f32.gmra.mxu0 %v1827
  %v1858 = vpop.f32.mrf.mxu0
  %v1859 = vadd.f32 0.0, %v1858
  %1860 = vmatmul.f32.gmra.mxu0 %v1830
  %v1861 = vpop.f32.mrf.mxu0
  %v1862 = vadd.f32 0.0, %v1861
  %1863 = vmatmul.f32.gmra.mxu0 %v1833
  %v1864 = vpop.f32.mrf.mxu0
  %v1865 = vadd.f32 0.0, %v1864
  %1866 = vmatmul.f32.gmra.mxu0 %v1836
  %v1867 = vpop.f32.mrf.mxu0
  %v1868 = vadd.f32 0.0, %v1867
  %1869 = vmatmul.f32.gmra.mxu0 %v1839
  %v1870 = vpop.f32.mrf.mxu0
  %v1871 = vadd.f32 0.0, %v1870
  %1872 = vdwg.mxu0
  %1873 = vrot.lane.b32.xlu0 %v1670, 120
  %v1874 = vpop.permute.xlu0 %1873
  %1875 = vrot.lane.b32.xlu0 %v1673, 120
  %v1876 = vpop.permute.xlu0 %1875
  %1877 = vrot.lane.b32.xlu0 %v1676, 120
  %v1878 = vpop.permute.xlu0 %1877
  %1879 = vrot.lane.b32.xlu0 %v1679, 120
  %v1880 = vpop.permute.xlu0 %1879
  %1881 = vrot.lane.b32.xlu0 %v1682, 120
  %v1882 = vpop.permute.xlu0 %1881
  %1883 = vrot.lane.b32.xlu0 %v1670, 88
  %v1884 = vpop.permute.xlu0 %1883
  %1885 = vrot.lane.b32.xlu0 %v1673, 88
  %v1886 = vpop.permute.xlu0 %1885
  %1887 = vrot.lane.b32.xlu0 %v1676, 88
  %v1888 = vpop.permute.xlu0 %1887
  %1889 = vrot.lane.b32.xlu0 %v1679, 88
  %v1890 = vpop.permute.xlu0 %1889
  %1891 = vrot.lane.b32.xlu0 %v1682, 88
  %v1892 = vpop.permute.xlu0 %1891
  %v1893 = vsel %vm320, %v1874, 0
  %v1895 = vsel %vm320, %v1876, 0
  %v1897 = vsel %vm320, %v1878, 0
  %v1899 = vsel %vm320, %v1880, 0
  %v1901 = vsel %vm320, %v1882, 0
  %v1903 = vsel %vm320, %v1884, 0
  %v1905 = vsel %vm320, %v1886, 0
  %v1907 = vsel %vm320, %v1888, 0
  %v1909 = vsel %vm320, %v1890, 0
  %v1911 = vsel %vm320, %v1892, 0
  %1913 = vmatpush.xpose.msra.mxu0 0.0
  %1914 = vmatpush.xpose.msra.mxu0 0.0
  %1915 = vmatpush.xpose.msra.mxu0 0.0
  %1916 = vmatpush.xpose.msra.mxu0 0.0
  %1917 = vmatpush.xpose.msra.mxu0 0.0
  %1918 = vmatpush.xpose.msra.mxu0 0.0
  %1919 = vmatpush.xpose.msra.mxu0 0.0
  %1920 = vmatpush.xpose.msra.mxu0 0.0
  %1921 = vmatpush.xpose.msra.mxu0 0.0
  %1922 = vmatpush.xpose.msra.mxu0 0.0
  %1923 = vmatpush.xpose.msra.mxu0 0.0
  %1924 = vmatpush.xpose.msra.mxu0 %v1911
  %1925 = vmatpush.xpose.msra.mxu0 %v1909
  %1926 = vmatpush.xpose.msra.mxu0 %v1907
  %1927 = vmatpush.xpose.msra.mxu0 %v1905
  %1928 = vmatpush.xpose.msra.mxu0 %v1903
  %1929 = vmatmul.f32.gmra.mxu0 %v1893
  %v1930 = vpop.f32.mrf.mxu0
  %v1931 = vadd.f32 0.0, %v1930
  %1932 = vmatmul.f32.gmra.mxu0 %v1895
  %v1933 = vpop.f32.mrf.mxu0
  %v1934 = vadd.f32 0.0, %v1933
  %1935 = vmatmul.f32.gmra.mxu0 %v1897
  %v1936 = vpop.f32.mrf.mxu0
  %v1937 = vadd.f32 0.0, %v1936
  %1938 = vmatmul.f32.gmra.mxu0 %v1899
  %v1939 = vpop.f32.mrf.mxu0
  %v1940 = vadd.f32 0.0, %v1939
  %1941 = vmatmul.f32.gmra.mxu0 %v1901
  %v1942 = vpop.f32.mrf.mxu0
  %v1943 = vadd.f32 0.0, %v1942
  %1944 = vdwg.mxu0
  %v1945 = vsel %vm115, %v1931, -1e+09
  %v1946 = vsel %vm116, %v1934, -1e+09
  %v1947 = vsel %vm117, %v1937, -1e+09
  %v1948 = vsel %vm118, %v1940, -1e+09
  %v1949 = vsel %vm119, %v1943, -1e+09
  %v1950 = vsel %vm378, %v1945, -inf
  %1951 = vmax.xlane.f32.xlu0 %v1950
  %v1952 = vpop.xlane.xlu0 %1951
  %v1953 = vsel %vm378, %v1946, -inf
  %1954 = vmax.xlane.f32.xlu0 %v1953
  %v1955 = vpop.xlane.xlu0 %1954
  %v1956 = vsel %vm378, %v1947, -inf
  %1957 = vmax.xlane.f32.xlu0 %v1956
  %v1958 = vpop.xlane.xlu0 %1957
  %v1959 = vsel %vm378, %v1948, -inf
  %1960 = vmax.xlane.f32.xlu0 %v1959
  %v1961 = vpop.xlane.xlu0 %1960
  %v1962 = vsel %vm378, %v1949, -inf
  %1963 = vmax.xlane.f32.xlu0 %v1962
  %v1964 = vpop.xlane.xlu0 %1963
  %v1965 = vsub.f32 %v1945, %v1952
  %v1966 = vsub.f32 %v1946, %v1955
  %v1967 = vsub.f32 %v1947, %v1958
  %v1968 = vsub.f32 %v1948, %v1961
  %v1969 = vsub.f32 %v1949, %v1964
  %v1970 = vmul.f32 %v1965, 1.442695
  %v1971 = vpow.pop %v1970
  %v1972 = vmul.f32 %v1966, 1.442695
  %v1973 = vpow.pop %v1972
  %v1974 = vmul.f32 %v1967, 1.442695
  %v1975 = vpow.pop %v1974
  %v1976 = vmul.f32 %v1968, 1.442695
  %v1977 = vpow.pop %v1976
  %v1978 = vmul.f32 %v1969, 1.442695
  %v1979 = vpow.pop %v1978
  %v1980 = vsel %vm378, %v1971, 0.0
  %1981 = vadd.xlane.f32.xlu0 %v1980
  %v1982 = vpop.xlane.xlu0 %1981
  %v1983 = vsel %vm378, %v1973, 0.0
  %1984 = vadd.xlane.f32.xlu0 %v1983
  %v1985 = vpop.xlane.xlu0 %1984
  %v1986 = vsel %vm378, %v1975, 0.0
  %1987 = vadd.xlane.f32.xlu0 %v1986
  %v1988 = vpop.xlane.xlu0 %1987
  %v1989 = vsel %vm378, %v1977, 0.0
  %1990 = vadd.xlane.f32.xlu0 %v1989
  %v1991 = vpop.xlane.xlu0 %1990
  %v1992 = vsel %vm378, %v1979, 0.0
  %1993 = vadd.xlane.f32.xlu0 %v1992
  %v1994 = vpop.xlane.xlu0 %1993
  %v1995 = vrcp.pop %v1982
  %v1996 = vrcp.pop %v1985
  %v1997 = vrcp.pop %v1988
  %v1998 = vrcp.pop %v1991
  %v1999 = vrcp.pop %v1994
  %v2000 = vmul.f32 %v1971, %v1995
  %v2001 = vmul.f32 %v1973, %v1996
  %v2002 = vmul.f32 %v1975, %v1997
  %v2003 = vmul.f32 %v1977, %v1998
  %v2004 = vmul.f32 %v1979, %v1999
  %2005 = vrot.lane.b32.xlu0 %v1670, 56
  %v2006 = vpop.permute.xlu0 %2005
  %2007 = vrot.lane.b32.xlu0 %v1673, 56
  %v2008 = vpop.permute.xlu0 %2007
  %2009 = vrot.lane.b32.xlu0 %v1676, 56
  %v2010 = vpop.permute.xlu0 %2009
  %2011 = vrot.lane.b32.xlu0 %v1679, 56
  %v2012 = vpop.permute.xlu0 %2011
  %2013 = vrot.lane.b32.xlu0 %v1682, 56
  %v2014 = vpop.permute.xlu0 %2013
  %v2021 = vsel %vm378, %v2000, 0
  %v2024 = vsel %vm378, %v2001, 0
  %v2027 = vsel %vm378, %v2002, 0
  %v2030 = vsel %vm378, %v2003, 0
  %v2033 = vsel %vm378, %v2004, 0
  %2035 = vmatpush.msra.mxu0 0.0
  %2036 = vmatpush.msra.mxu0 0.0
  %2037 = vmatpush.msra.mxu0 0.0
  %2038 = vmatpush.msra.mxu0 0.0
  %2039 = vmatpush.msra.mxu0 0.0
  %2040 = vmatpush.msra.mxu0 0.0
  %2041 = vmatpush.msra.mxu0 0.0
  %2042 = vmatpush.msra.mxu0 0.0
  %2043 = vmatpush.msra.mxu0 0.0
  %2044 = vmatpush.msra.mxu0 0.0
  %2045 = vmatpush.msra.mxu0 0.0
  %2046 = vmatpush.msra.mxu0 %v2014
  %2047 = vmatpush.msra.mxu0 %v2012
  %2048 = vmatpush.msra.mxu0 %v2010
  %2049 = vmatpush.msra.mxu0 %v2008
  %2050 = vmatpush.msra.mxu0 %v2006
  %2051 = vmatmul.f32.gmra.mxu0 %v2021
  %v2052 = vpop.f32.mrf.mxu0
  %v2053 = vadd.f32 0.0, %v2052
  %2054 = vmatmul.f32.gmra.mxu0 %v2024
  %v2055 = vpop.f32.mrf.mxu0
  %v2056 = vadd.f32 0.0, %v2055
  %2057 = vmatmul.f32.gmra.mxu0 %v2027
  %v2058 = vpop.f32.mrf.mxu0
  %v2059 = vadd.f32 0.0, %v2058
  %2060 = vmatmul.f32.gmra.mxu0 %v2030
  %v2061 = vpop.f32.mrf.mxu0
  %v2062 = vadd.f32 0.0, %v2061
  %2063 = vmatmul.f32.gmra.mxu0 %v2033
  %v2064 = vpop.f32.mrf.mxu0
  %v2065 = vadd.f32 0.0, %v2064
  %2066 = vdwg.mxu0
  %2067 = vrot.lane.b32.xlu0 %v1670, 112
  %v2068 = vpop.permute.xlu0 %2067
  %2069 = vrot.lane.b32.xlu0 %v1673, 112
  %v2070 = vpop.permute.xlu0 %2069
  %2071 = vrot.lane.b32.xlu0 %v1676, 112
  %v2072 = vpop.permute.xlu0 %2071
  %2073 = vrot.lane.b32.xlu0 %v1679, 112
  %v2074 = vpop.permute.xlu0 %2073
  %2075 = vrot.lane.b32.xlu0 %v1682, 112
  %v2076 = vpop.permute.xlu0 %2075
  %2077 = vrot.lane.b32.xlu0 %v1670, 80
  %v2078 = vpop.permute.xlu0 %2077
  %2079 = vrot.lane.b32.xlu0 %v1673, 80
  %v2080 = vpop.permute.xlu0 %2079
  %2081 = vrot.lane.b32.xlu0 %v1676, 80
  %v2082 = vpop.permute.xlu0 %2081
  %2083 = vrot.lane.b32.xlu0 %v1679, 80
  %v2084 = vpop.permute.xlu0 %2083
  %2085 = vrot.lane.b32.xlu0 %v1682, 80
  %v2086 = vpop.permute.xlu0 %2085
  %v2087 = vsel %vm320, %v2068, 0
  %v2089 = vsel %vm320, %v2070, 0
  %v2091 = vsel %vm320, %v2072, 0
  %v2093 = vsel %vm320, %v2074, 0
  %v2095 = vsel %vm320, %v2076, 0
  %v2097 = vsel %vm320, %v2078, 0
  %v2099 = vsel %vm320, %v2080, 0
  %v2101 = vsel %vm320, %v2082, 0
  %v2103 = vsel %vm320, %v2084, 0
  %v2105 = vsel %vm320, %v2086, 0
  %2107 = vmatpush.xpose.msra.mxu0 0.0
  %2108 = vmatpush.xpose.msra.mxu0 0.0
  %2109 = vmatpush.xpose.msra.mxu0 0.0
  %2110 = vmatpush.xpose.msra.mxu0 0.0
  %2111 = vmatpush.xpose.msra.mxu0 0.0
  %2112 = vmatpush.xpose.msra.mxu0 0.0
  %2113 = vmatpush.xpose.msra.mxu0 0.0
  %2114 = vmatpush.xpose.msra.mxu0 0.0
  %2115 = vmatpush.xpose.msra.mxu0 0.0
  %2116 = vmatpush.xpose.msra.mxu0 0.0
  %2117 = vmatpush.xpose.msra.mxu0 0.0
  %2118 = vmatpush.xpose.msra.mxu0 %v2105
  %2119 = vmatpush.xpose.msra.mxu0 %v2103
  %2120 = vmatpush.xpose.msra.mxu0 %v2101
  %2121 = vmatpush.xpose.msra.mxu0 %v2099
  %2122 = vmatpush.xpose.msra.mxu0 %v2097
  %2123 = vmatmul.f32.gmra.mxu0 %v2087
  %v2124 = vpop.f32.mrf.mxu0
  %v2125 = vadd.f32 0.0, %v2124
  %2126 = vmatmul.f32.gmra.mxu0 %v2089
  %v2127 = vpop.f32.mrf.mxu0
  %v2128 = vadd.f32 0.0, %v2127
  %2129 = vmatmul.f32.gmra.mxu0 %v2091
  %v2130 = vpop.f32.mrf.mxu0
  %v2131 = vadd.f32 0.0, %v2130
  %2132 = vmatmul.f32.gmra.mxu0 %v2093
  %v2133 = vpop.f32.mrf.mxu0
  %v2134 = vadd.f32 0.0, %v2133
  %2135 = vmatmul.f32.gmra.mxu0 %v2095
  %v2136 = vpop.f32.mrf.mxu0
  %v2137 = vadd.f32 0.0, %v2136
  %2138 = vdwg.mxu0
  %v2139 = vsel %vm115, %v2125, -1e+09
  %v2140 = vsel %vm116, %v2128, -1e+09
  %v2141 = vsel %vm117, %v2131, -1e+09
  %v2142 = vsel %vm118, %v2134, -1e+09
  %v2143 = vsel %vm119, %v2137, -1e+09
  %v2144 = vsel %vm378, %v2139, -inf
  %2145 = vmax.xlane.f32.xlu0 %v2144
  %v2146 = vpop.xlane.xlu0 %2145
  %v2147 = vsel %vm378, %v2140, -inf
  %2148 = vmax.xlane.f32.xlu0 %v2147
  %v2149 = vpop.xlane.xlu0 %2148
  %v2150 = vsel %vm378, %v2141, -inf
  %2151 = vmax.xlane.f32.xlu0 %v2150
  %v2152 = vpop.xlane.xlu0 %2151
  %v2153 = vsel %vm378, %v2142, -inf
  %2154 = vmax.xlane.f32.xlu0 %v2153
  %v2155 = vpop.xlane.xlu0 %2154
  %v2156 = vsel %vm378, %v2143, -inf
  %2157 = vmax.xlane.f32.xlu0 %v2156
  %v2158 = vpop.xlane.xlu0 %2157
  %v2159 = vsub.f32 %v2139, %v2146
  %v2160 = vsub.f32 %v2140, %v2149
  %v2161 = vsub.f32 %v2141, %v2152
  %v2162 = vsub.f32 %v2142, %v2155
  %v2163 = vsub.f32 %v2143, %v2158
  %v2164 = vmul.f32 %v2159, 1.442695
  %v2165 = vpow.pop %v2164
  %v2166 = vmul.f32 %v2160, 1.442695
  %v2167 = vpow.pop %v2166
  %v2168 = vmul.f32 %v2161, 1.442695
  %v2169 = vpow.pop %v2168
  %v2170 = vmul.f32 %v2162, 1.442695
  %v2171 = vpow.pop %v2170
  %v2172 = vmul.f32 %v2163, 1.442695
  %v2173 = vpow.pop %v2172
  %v2174 = vsel %vm378, %v2165, 0.0
  %2175 = vadd.xlane.f32.xlu0 %v2174
  %v2176 = vpop.xlane.xlu0 %2175
  %v2177 = vsel %vm378, %v2167, 0.0
  %2178 = vadd.xlane.f32.xlu0 %v2177
  %v2179 = vpop.xlane.xlu0 %2178
  %v2180 = vsel %vm378, %v2169, 0.0
  %2181 = vadd.xlane.f32.xlu0 %v2180
  %v2182 = vpop.xlane.xlu0 %2181
  %v2183 = vsel %vm378, %v2171, 0.0
  %2184 = vadd.xlane.f32.xlu0 %v2183
  %v2185 = vpop.xlane.xlu0 %2184
  %v2186 = vsel %vm378, %v2173, 0.0
  %2187 = vadd.xlane.f32.xlu0 %v2186
  %v2188 = vpop.xlane.xlu0 %2187
  %v2189 = vrcp.pop %v2176
  %v2190 = vrcp.pop %v2179
  %v2191 = vrcp.pop %v2182
  %v2192 = vrcp.pop %v2185
  %v2193 = vrcp.pop %v2188
  %v2194 = vmul.f32 %v2165, %v2189
  %v2195 = vmul.f32 %v2167, %v2190
  %v2196 = vmul.f32 %v2169, %v2191
  %v2197 = vmul.f32 %v2171, %v2192
  %v2198 = vmul.f32 %v2173, %v2193
  %2199 = vrot.lane.b32.xlu0 %v1670, 48
  %v2200 = vpop.permute.xlu0 %2199
  %2201 = vrot.lane.b32.xlu0 %v1673, 48
  %v2202 = vpop.permute.xlu0 %2201
  %2203 = vrot.lane.b32.xlu0 %v1676, 48
  %v2204 = vpop.permute.xlu0 %2203
  %2205 = vrot.lane.b32.xlu0 %v1679, 48
  %v2206 = vpop.permute.xlu0 %2205
  %2207 = vrot.lane.b32.xlu0 %v1682, 48
  %v2208 = vpop.permute.xlu0 %2207
  %v2215 = vsel %vm378, %v2194, 0
  %v2218 = vsel %vm378, %v2195, 0
  %v2221 = vsel %vm378, %v2196, 0
  %v2224 = vsel %vm378, %v2197, 0
  %v2227 = vsel %vm378, %v2198, 0
  %2229 = vmatpush.msra.mxu0 0.0
  %2230 = vmatpush.msra.mxu0 0.0
  %2231 = vmatpush.msra.mxu0 0.0
  %2232 = vmatpush.msra.mxu0 0.0
  %2233 = vmatpush.msra.mxu0 0.0
  %2234 = vmatpush.msra.mxu0 0.0
  %2235 = vmatpush.msra.mxu0 0.0
  %2236 = vmatpush.msra.mxu0 0.0
  %2237 = vmatpush.msra.mxu0 0.0
  %2238 = vmatpush.msra.mxu0 0.0
  %2239 = vmatpush.msra.mxu0 0.0
  %2240 = vmatpush.msra.mxu0 %v2208
  %2241 = vmatpush.msra.mxu0 %v2206
  %2242 = vmatpush.msra.mxu0 %v2204
  %2243 = vmatpush.msra.mxu0 %v2202
  %2244 = vmatpush.msra.mxu0 %v2200
  %2245 = vmatmul.f32.gmra.mxu0 %v2215
  %v2246 = vpop.f32.mrf.mxu0
  %v2247 = vadd.f32 0.0, %v2246
  %2248 = vmatmul.f32.gmra.mxu0 %v2218
  %v2249 = vpop.f32.mrf.mxu0
  %v2250 = vadd.f32 0.0, %v2249
  %2251 = vmatmul.f32.gmra.mxu0 %v2221
  %v2252 = vpop.f32.mrf.mxu0
  %v2253 = vadd.f32 0.0, %v2252
  %2254 = vmatmul.f32.gmra.mxu0 %v2224
  %v2255 = vpop.f32.mrf.mxu0
  %v2256 = vadd.f32 0.0, %v2255
  %2257 = vmatmul.f32.gmra.mxu0 %v2227
  %v2258 = vpop.f32.mrf.mxu0
  %v2259 = vadd.f32 0.0, %v2258
  %2260 = vdwg.mxu0
  %2261 = vrot.lane.b32.xlu0 %v1670, 104
  %v2262 = vpop.permute.xlu0 %2261
  %2263 = vrot.lane.b32.xlu0 %v1673, 104
  %v2264 = vpop.permute.xlu0 %2263
  %2265 = vrot.lane.b32.xlu0 %v1676, 104
  %v2266 = vpop.permute.xlu0 %2265
  %2267 = vrot.lane.b32.xlu0 %v1679, 104
  %v2268 = vpop.permute.xlu0 %2267
  %2269 = vrot.lane.b32.xlu0 %v1682, 104
  %v2270 = vpop.permute.xlu0 %2269
  %2271 = vrot.lane.b32.xlu0 %v1670, 72
  %v2272 = vpop.permute.xlu0 %2271
  %2273 = vrot.lane.b32.xlu0 %v1673, 72
  %v2274 = vpop.permute.xlu0 %2273
  %2275 = vrot.lane.b32.xlu0 %v1676, 72
  %v2276 = vpop.permute.xlu0 %2275
  %2277 = vrot.lane.b32.xlu0 %v1679, 72
  %v2278 = vpop.permute.xlu0 %2277
  %2279 = vrot.lane.b32.xlu0 %v1682, 72
  %v2280 = vpop.permute.xlu0 %2279
  %v2281 = vsel %vm320, %v2262, 0
  %v2283 = vsel %vm320, %v2264, 0
  %v2285 = vsel %vm320, %v2266, 0
  %v2287 = vsel %vm320, %v2268, 0
  %v2289 = vsel %vm320, %v2270, 0
  %v2291 = vsel %vm320, %v2272, 0
  %v2293 = vsel %vm320, %v2274, 0
  %v2295 = vsel %vm320, %v2276, 0
  %v2297 = vsel %vm320, %v2278, 0
  %v2299 = vsel %vm320, %v2280, 0
  %2301 = vmatpush.xpose.msra.mxu0 0.0
  %2302 = vmatpush.xpose.msra.mxu0 0.0
  %2303 = vmatpush.xpose.msra.mxu0 0.0
  %2304 = vmatpush.xpose.msra.mxu0 0.0
  %2305 = vmatpush.xpose.msra.mxu0 0.0
  %2306 = vmatpush.xpose.msra.mxu0 0.0
  %2307 = vmatpush.xpose.msra.mxu0 0.0
  %2308 = vmatpush.xpose.msra.mxu0 0.0
  %2309 = vmatpush.xpose.msra.mxu0 0.0
  %2310 = vmatpush.xpose.msra.mxu0 0.0
  %2311 = vmatpush.xpose.msra.mxu0 0.0
  %2312 = vmatpush.xpose.msra.mxu0 %v2299
  %2313 = vmatpush.xpose.msra.mxu0 %v2297
  %2314 = vmatpush.xpose.msra.mxu0 %v2295
  %2315 = vmatpush.xpose.msra.mxu0 %v2293
  %2316 = vmatpush.xpose.msra.mxu0 %v2291
  %2317 = vmatmul.f32.gmra.mxu0 %v2281
  %v2318 = vpop.f32.mrf.mxu0
  %v2319 = vadd.f32 0.0, %v2318
  %2320 = vmatmul.f32.gmra.mxu0 %v2283
  %v2321 = vpop.f32.mrf.mxu0
  %v2322 = vadd.f32 0.0, %v2321
  %2323 = vmatmul.f32.gmra.mxu0 %v2285
  %v2324 = vpop.f32.mrf.mxu0
  %v2325 = vadd.f32 0.0, %v2324
  %2326 = vmatmul.f32.gmra.mxu0 %v2287
  %v2327 = vpop.f32.mrf.mxu0
  %v2328 = vadd.f32 0.0, %v2327
  %2329 = vmatmul.f32.gmra.mxu0 %v2289
  %v2330 = vpop.f32.mrf.mxu0
  %v2331 = vadd.f32 0.0, %v2330
  %2332 = vdwg.mxu0
  %v2333 = vsel %vm115, %v2319, -1e+09
  %v2334 = vsel %vm116, %v2322, -1e+09
  %v2335 = vsel %vm117, %v2325, -1e+09
  %v2336 = vsel %vm118, %v2328, -1e+09
  %v2337 = vsel %vm119, %v2331, -1e+09
  %v2338 = vsel %vm378, %v2333, -inf
  %2339 = vmax.xlane.f32.xlu0 %v2338
  %v2340 = vpop.xlane.xlu0 %2339
  %v2341 = vsel %vm378, %v2334, -inf
  %2342 = vmax.xlane.f32.xlu0 %v2341
  %v2343 = vpop.xlane.xlu0 %2342
  %v2344 = vsel %vm378, %v2335, -inf
  %2345 = vmax.xlane.f32.xlu0 %v2344
  %v2346 = vpop.xlane.xlu0 %2345
  %v2347 = vsel %vm378, %v2336, -inf
  %2348 = vmax.xlane.f32.xlu0 %v2347
  %v2349 = vpop.xlane.xlu0 %2348
  %v2350 = vsel %vm378, %v2337, -inf
  %2351 = vmax.xlane.f32.xlu0 %v2350
  %v2352 = vpop.xlane.xlu0 %2351
  %v2353 = vsub.f32 %v2333, %v2340
  %v2354 = vsub.f32 %v2334, %v2343
  %v2355 = vsub.f32 %v2335, %v2346
  %v2356 = vsub.f32 %v2336, %v2349
  %v2357 = vsub.f32 %v2337, %v2352
  %v2358 = vmul.f32 %v2353, 1.442695
  %v2359 = vpow.pop %v2358
  %v2360 = vmul.f32 %v2354, 1.442695
  %v2361 = vpow.pop %v2360
  %v2362 = vmul.f32 %v2355, 1.442695
  %v2363 = vpow.pop %v2362
  %v2364 = vmul.f32 %v2356, 1.442695
  %v2365 = vpow.pop %v2364
  %v2366 = vmul.f32 %v2357, 1.442695
  %v2367 = vpow.pop %v2366
  %v2368 = vsel %vm378, %v2359, 0.0
  %2369 = vadd.xlane.f32.xlu0 %v2368
  %v2370 = vpop.xlane.xlu0 %2369
  %v2371 = vsel %vm378, %v2361, 0.0
  %2372 = vadd.xlane.f32.xlu0 %v2371
  %v2373 = vpop.xlane.xlu0 %2372
  %v2374 = vsel %vm378, %v2363, 0.0
  %2375 = vadd.xlane.f32.xlu0 %v2374
  %v2376 = vpop.xlane.xlu0 %2375
  %v2377 = vsel %vm378, %v2365, 0.0
  %2378 = vadd.xlane.f32.xlu0 %v2377
  %v2379 = vpop.xlane.xlu0 %2378
  %v2380 = vsel %vm378, %v2367, 0.0
  %2381 = vadd.xlane.f32.xlu0 %v2380
  %v2382 = vpop.xlane.xlu0 %2381
  %v2383 = vrcp.pop %v2370
  %v2384 = vrcp.pop %v2373
  %v2385 = vrcp.pop %v2376
  %v2386 = vrcp.pop %v2379
  %v2387 = vrcp.pop %v2382
  %v2388 = vmul.f32 %v2359, %v2383
  %v2389 = vmul.f32 %v2361, %v2384
  %v2390 = vmul.f32 %v2363, %v2385
  %v2391 = vmul.f32 %v2365, %v2386
  %v2392 = vmul.f32 %v2367, %v2387
  %2393 = vrot.lane.b32.xlu0 %v1670, 40
  %v2394 = vpop.permute.xlu0 %2393
  %2395 = vrot.lane.b32.xlu0 %v1673, 40
  %v2396 = vpop.permute.xlu0 %2395
  %2397 = vrot.lane.b32.xlu0 %v1676, 40
  %v2398 = vpop.permute.xlu0 %2397
  %2399 = vrot.lane.b32.xlu0 %v1679, 40
  %v2400 = vpop.permute.xlu0 %2399
  %2401 = vrot.lane.b32.xlu0 %v1682, 40
  %v2402 = vpop.permute.xlu0 %2401
  %v2409 = vsel %vm378, %v2388, 0
  %v2412 = vsel %vm378, %v2389, 0
  %v2415 = vsel %vm378, %v2390, 0
  %v2418 = vsel %vm378, %v2391, 0
  %v2421 = vsel %vm378, %v2392, 0
  %2423 = vmatpush.msra.mxu0 0.0
  %2424 = vmatpush.msra.mxu0 0.0
  %2425 = vmatpush.msra.mxu0 0.0
  %2426 = vmatpush.msra.mxu0 0.0
  %2427 = vmatpush.msra.mxu0 0.0
  %2428 = vmatpush.msra.mxu0 0.0
  %2429 = vmatpush.msra.mxu0 0.0
  %2430 = vmatpush.msra.mxu0 0.0
  %2431 = vmatpush.msra.mxu0 0.0
  %2432 = vmatpush.msra.mxu0 0.0
  %2433 = vmatpush.msra.mxu0 0.0
  %2434 = vmatpush.msra.mxu0 %v2402
  %2435 = vmatpush.msra.mxu0 %v2400
  %2436 = vmatpush.msra.mxu0 %v2398
  %2437 = vmatpush.msra.mxu0 %v2396
  %2438 = vmatpush.msra.mxu0 %v2394
  %2439 = vmatmul.f32.gmra.mxu0 %v2409
  %v2440 = vpop.f32.mrf.mxu0
  %v2441 = vadd.f32 0.0, %v2440
  %2442 = vmatmul.f32.gmra.mxu0 %v2412
  %v2443 = vpop.f32.mrf.mxu0
  %v2444 = vadd.f32 0.0, %v2443
  %2445 = vmatmul.f32.gmra.mxu0 %v2415
  %v2446 = vpop.f32.mrf.mxu0
  %v2447 = vadd.f32 0.0, %v2446
  %2448 = vmatmul.f32.gmra.mxu0 %v2418
  %v2449 = vpop.f32.mrf.mxu0
  %v2450 = vadd.f32 0.0, %v2449
  %2451 = vmatmul.f32.gmra.mxu0 %v2421
  %v2452 = vpop.f32.mrf.mxu0
  %v2453 = vadd.f32 0.0, %v2452
  %2454 = vdwg.mxu0
  %2460 = vrot.lane.b32.xlu0 %v2053, 8
  %v2461 = vpop.permute.xlu0 %2460
  %2462 = vrot.lane.b32.xlu0 %v2056, 8
  %v2463 = vpop.permute.xlu0 %2462
  %2464 = vrot.lane.b32.xlu0 %v2059, 8
  %v2465 = vpop.permute.xlu0 %2464
  %2466 = vrot.lane.b32.xlu0 %v2062, 8
  %v2467 = vpop.permute.xlu0 %2466
  %2468 = vrot.lane.b32.xlu0 %v2065, 8
  %v2469 = vpop.permute.xlu0 %2468
  %2480 = vrot.lane.b32.xlu0 %v2247, 16
  %v2481 = vpop.permute.xlu0 %2480
  %2482 = vrot.lane.b32.xlu0 %v2250, 16
  %v2483 = vpop.permute.xlu0 %2482
  %2484 = vrot.lane.b32.xlu0 %v2253, 16
  %v2485 = vpop.permute.xlu0 %2484
  %2486 = vrot.lane.b32.xlu0 %v2256, 16
  %v2487 = vpop.permute.xlu0 %2486
  %2488 = vrot.lane.b32.xlu0 %v2259, 16
  %v2489 = vpop.permute.xlu0 %2488
  %2500 = vrot.lane.b32.xlu0 %v2441, 24
  %v2501 = vpop.permute.xlu0 %2500
  %2502 = vrot.lane.b32.xlu0 %v2444, 24
  %v2503 = vpop.permute.xlu0 %2502
  %2504 = vrot.lane.b32.xlu0 %v2447, 24
  %v2505 = vpop.permute.xlu0 %2504
  %2506 = vrot.lane.b32.xlu0 %v2450, 24
  %v2507 = vpop.permute.xlu0 %2506
  %2508 = vrot.lane.b32.xlu0 %v2453, 24
  %v2509 = vpop.permute.xlu0 %2508
  %v2515 = vsel %vm320, %v1859, %v2461
  %v2516 = vsel %vm320, %v1862, %v2463
  %v2517 = vsel %vm320, %v1865, %v2465
  %v2518 = vsel %vm320, %v1868, %v2467
  %v2519 = vsel %vm320, %v1871, %v2469
  %v2520 = vsel %vm1143, %v2515, %v2481
  %v2521 = vsel %vm1143, %v2516, %v2483
  %v2522 = vsel %vm1143, %v2517, %v2485
  %v2523 = vsel %vm1143, %v2518, %v2487
  %v2524 = vsel %vm1143, %v2519, %v2489
  %v2525 = vsel %vm1149, %v2520, %v2501
  %v2526 = vsel %vm1149, %v2521, %v2503
  %v2527 = vsel %vm1149, %v2522, %v2505
  %v2528 = vsel %vm1149, %v2523, %v2507
  %v2529 = vsel %vm1149, %v2524, %v2509
  %v2530 = vld [vmem:[%s1 + $0x138] sm:$0xff]
  %v2531 = vld [vmem:[%s1 + $0x140] sm:$0xff]
  %v2532 = vld [vmem:[%s1 + $0x148] sm:$0xff]
  %v2533 = vld [vmem:[%s1 + $0x150] sm:$0xff]
  %v2535 = vsel %vm122, %v2525, 0
  %v2538 = vsel %vm122, %v2526, 0
  %v2541 = vsel %vm122, %v2527, 0
  %v2544 = vsel %vm122, %v2528, 0
  %v2547 = vsel %vm122, %v2529, 0
  %2549 = vmatpush.msra.mxu0 0.0
  %2550 = vmatpush.msra.mxu0 0.0
  %2551 = vmatpush.msra.mxu0 0.0
  %2552 = vmatpush.msra.mxu0 0.0
  %2553 = vmatpush.msra.mxu0 0.0
  %2554 = vmatpush.msra.mxu0 0.0
  %2555 = vmatpush.msra.mxu0 0.0
  %2556 = vmatpush.msra.mxu0 0.0
  %2557 = vmatpush.msra.mxu0 0.0
  %2558 = vmatpush.msra.mxu0 0.0
  %2559 = vmatpush.msra.mxu0 0.0
  %2560 = vmatpush.msra.mxu0 0.0
  %2561 = vmatpush.msra.mxu0 %v2533
  %2562 = vmatpush.msra.mxu0 %v2532
  %2563 = vmatpush.msra.mxu0 %v2531
  %2564 = vmatpush.msra.mxu0 %v2530
  %2565 = vmatmul.f32.gmra.mxu0 %v2535
  %v2566 = vpop.f32.mrf.mxu0
  %v2567 = vadd.f32 0.0, %v2566
  %2568 = vmatmul.f32.gmra.mxu0 %v2538
  %v2569 = vpop.f32.mrf.mxu0
  %v2570 = vadd.f32 0.0, %v2569
  %2571 = vmatmul.f32.gmra.mxu0 %v2541
  %v2572 = vpop.f32.mrf.mxu0
  %v2573 = vadd.f32 0.0, %v2572
  %2574 = vmatmul.f32.gmra.mxu0 %v2544
  %v2575 = vpop.f32.mrf.mxu0
  %v2576 = vadd.f32 0.0, %v2575
  %2577 = vmatmul.f32.gmra.mxu0 %v2547
  %v2578 = vpop.f32.mrf.mxu0
  %v2579 = vadd.f32 0.0, %v2578
  %2580 = vdwg.mxu0
  %v2581 = vadd.f32 %v1502, %v2567
  %v2582 = vadd.f32 %v1503, %v2570
  %v2583 = vadd.f32 %v1504, %v2573
  %v2584 = vadd.f32 %v1505, %v2576
  %v2585 = vadd.f32 %v1506, %v2579
  %v2586 = vld [vmem:[%s1 + $0x113] sm:$0x1]
  %v2587 = vperm.slane %v2586, 0
  %v2588 = vadd.f32 %v2581, %v2587
  %v2589 = vadd.f32 %v2582, %v2587
  %v2590 = vadd.f32 %v2583, %v2587
  %v2591 = vadd.f32 %v2584, %v2587
  %v2592 = vadd.f32 %v2585, %v2587
  %v2593 = vld [vmem:[%s1 + $0x114] sm:$0x1]
  %v2594 = vld [vmem:[%s1 + $0x115] sm:$0x1]
  %v2595 = vsel %vm122, %v2588, 0.0
  %2596 = vadd.xlane.f32.xlu0 %v2595
  %v2597 = vpop.xlane.xlu0 %2596
  %v2598 = vsel %vm122, %v2589, 0.0
  %2599 = vadd.xlane.f32.xlu0 %v2598
  %v2600 = vpop.xlane.xlu0 %2599
  %v2601 = vsel %vm122, %v2590, 0.0
  %2602 = vadd.xlane.f32.xlu0 %v2601
  %v2603 = vpop.xlane.xlu0 %2602
  %v2604 = vsel %vm122, %v2591, 0.0
  %2605 = vadd.xlane.f32.xlu0 %v2604
  %v2606 = vpop.xlane.xlu0 %2605
  %v2607 = vsel %vm122, %v2592, 0.0
  %2608 = vadd.xlane.f32.xlu0 %v2607
  %v2609 = vpop.xlane.xlu0 %2608
  %v2610 = vmul.f32 %v2597, %v144
  %v2611 = vmul.f32 %v2600, %v144
  %v2612 = vmul.f32 %v2603, %v144
  %v2613 = vmul.f32 %v2606, %v144
  %v2614 = vmul.f32 %v2609, %v144
  %v2615 = vsub.f32 %v2588, %v2610
  %v2616 = vsub.f32 %v2589, %v2611
  %v2617 = vsub.f32 %v2590, %v2612
  %v2618 = vsub.f32 %v2591, %v2613
  %v2619 = vsub.f32 %v2592, %v2614
  %v2620 = vmul.f32 %v2615, %v2615
  %v2621 = vmul.f32 %v2616, %v2616
  %v2622 = vmul.f32 %v2617, %v2617
  %v2623 = vmul.f32 %v2618, %v2618
  %v2624 = vmul.f32 %v2619, %v2619
  %v2625 = vsel %vm122, %v2620, 0.0
  %2626 = vadd.xlane.f32.xlu0 %v2625
  %v2627 = vpop.xlane.xlu0 %2626
  %v2628 = vsel %vm122, %v2621, 0.0
  %2629 = vadd.xlane.f32.xlu0 %v2628
  %v2630 = vpop.xlane.xlu0 %2629
  %v2631 = vsel %vm122, %v2622, 0.0
  %2632 = vadd.xlane.f32.xlu0 %v2631
  %v2633 = vpop.xlane.xlu0 %2632
  %v2634 = vsel %vm122, %v2623, 0.0
  %2635 = vadd.xlane.f32.xlu0 %v2634
  %v2636 = vpop.xlane.xlu0 %2635
  %v2637 = vsel %vm122, %v2624, 0.0
  %2638 = vadd.xlane.f32.xlu0 %v2637
  %v2639 = vpop.xlane.xlu0 %2638
  %v2640 = vmul.f32 %v2627, %v144
  %v2641 = vmul.f32 %v2630, %v144
  %v2642 = vmul.f32 %v2633, %v144
  %v2643 = vmul.f32 %v2636, %v144
  %v2644 = vmul.f32 %v2639, %v144
  %v2645 = vadd.f32 %v2640, 1e-12
  %v2646 = vadd.f32 %v2641, 1e-12
  %v2647 = vadd.f32 %v2642, 1e-12
  %v2648 = vadd.f32 %v2643, 1e-12
  %v2649 = vadd.f32 %v2644, 1e-12
  %v2650 = vrsqrt.pop %v2645
  %v2651 = vmul.f32 %v2650, %v2645
  %v2652 = vmul.f32 %v2651, %v2650
  %v2653 = vmul.f32 0.5, %v2652
  %v2654 = vsub.f32 1.5, %v2653
  %v2655 = vmul.f32 %v2650, %v2654
  %vm2656 = vweird.f32 %v2645
  %vm2657 = vweird.f32 %v2650
  %vm2658 = vmor %vm2656, %vm2657
  %v2659 = vsel %vm2658, %v2650, %v2655
  %v2660 = vrsqrt.pop %v2646
  %v2661 = vmul.f32 %v2660, %v2646
  %v2662 = vmul.f32 %v2661, %v2660
  %v2663 = vmul.f32 0.5, %v2662
  %v2664 = vsub.f32 1.5, %v2663
  %v2665 = vmul.f32 %v2660, %v2664
  %vm2666 = vweird.f32 %v2646
  %vm2667 = vweird.f32 %v2660
  %vm2668 = vmor %vm2666, %vm2667
  %v2669 = vsel %vm2668, %v2660, %v2665
  %v2670 = vrsqrt.pop %v2647
  %v2671 = vmul.f32 %v2670, %v2647
  %v2672 = vmul.f32 %v2671, %v2670
  %v2673 = vmul.f32 0.5, %v2672
  %v2674 = vsub.f32 1.5, %v2673
  %v2675 = vmul.f32 %v2670, %v2674
  %vm2676 = vweird.f32 %v2647
  %vm2677 = vweird.f32 %v2670
  %vm2678 = vmor %vm2676, %vm2677
  %v2679 = vsel %vm2678, %v2670, %v2675
  %v2680 = vrsqrt.pop %v2648
  %v2681 = vmul.f32 %v2680, %v2648
  %v2682 = vmul.f32 %v2681, %v2680
  %v2683 = vmul.f32 0.5, %v2682
  %v2684 = vsub.f32 1.5, %v2683
  %v2685 = vmul.f32 %v2680, %v2684
  %vm2686 = vweird.f32 %v2648
  %vm2687 = vweird.f32 %v2680
  %vm2688 = vmor %vm2686, %vm2687
  %v2689 = vsel %vm2688, %v2680, %v2685
  %v2690 = vrsqrt.pop %v2649
  %v2691 = vmul.f32 %v2690, %v2649
  %v2692 = vmul.f32 %v2691, %v2690
  %v2693 = vmul.f32 0.5, %v2692
  %v2694 = vsub.f32 1.5, %v2693
  %v2695 = vmul.f32 %v2690, %v2694
  %vm2696 = vweird.f32 %v2649
  %vm2697 = vweird.f32 %v2690
  %vm2698 = vmor %vm2696, %vm2697
  %v2699 = vsel %vm2698, %v2690, %v2695
  %v2700 = vmul.f32 %v2615, %v2659
  %v2701 = vmul.f32 %v2616, %v2669
  %v2702 = vmul.f32 %v2617, %v2679
  %v2703 = vmul.f32 %v2618, %v2689
  %v2704 = vmul.f32 %v2619, %v2699
  %v2705 = vperm.slane %v2593, 0
  %v2706 = vmul.f32 %v2700, %v2705
  %v2707 = vmul.f32 %v2701, %v2705
  %v2708 = vmul.f32 %v2702, %v2705
  %v2709 = vmul.f32 %v2703, %v2705
  %v2710 = vmul.f32 %v2704, %v2705
  %v2711 = vperm.slane %v2594, 0
  %v2712 = vadd.f32 %v2706, %v2711
  %v2713 = vadd.f32 %v2707, %v2711
  %v2714 = vadd.f32 %v2708, %v2711
  %v2715 = vadd.f32 %v2709, %v2711
  %v2716 = vadd.f32 %v2710, %v2711
  %v2717 = vld [vmem:[%s1 + $0x158] sm:$0xff]
  %v2718 = vld [vmem:[%s1 + $0x160] sm:$0xff]
  %v2719 = vld [vmem:[%s1 + $0x168] sm:$0xff]
  %v2720 = vld [vmem:[%s1 + $0x170] sm:$0xff]
  %v2721 = vld [vmem:[%s1 + $0x116] sm:$0x1]
  %v2722 = vperm.slane %v2721, 0
  %v2724 = vsel %vm122, %v2712, 0
  %v2727 = vsel %vm122, %v2713, 0
  %v2730 = vsel %vm122, %v2714, 0
  %v2733 = vsel %vm122, %v2715, 0
  %v2736 = vsel %vm122, %v2716, 0
  %2738 = vmatpush.msra.mxu0 0.0
  %2739 = vmatpush.msra.mxu0 0.0
  %2740 = vmatpush.msra.mxu0 0.0
  %2741 = vmatpush.msra.mxu0 0.0
  %2742 = vmatpush.msra.mxu0 0.0
  %2743 = vmatpush.msra.mxu0 0.0
  %2744 = vmatpush.msra.mxu0 0.0
  %2745 = vmatpush.msra.mxu0 0.0
  %2746 = vmatpush.msra.mxu0 0.0
  %2747 = vmatpush.msra.mxu0 0.0
  %2748 = vmatpush.msra.mxu0 0.0
  %2749 = vmatpush.msra.mxu0 0.0
  %2750 = vmatpush.msra.mxu0 %v2720
  %2751 = vmatpush.msra.mxu0 %v2719
  %2752 = vmatpush.msra.mxu0 %v2718
  %2753 = vmatpush.msra.mxu0 %v2717
  %2754 = vmatmul.f32.gmra.mxu0 %v2724
  %v2755 = vpop.f32.mrf.mxu0
  %v2756 = vadd.f32 %v2722, %v2755
  %2757 = vmatmul.f32.gmra.mxu0 %v2727
  %v2758 = vpop.f32.mrf.mxu0
  %v2759 = vadd.f32 %v2722, %v2758
  %2760 = vmatmul.f32.gmra.mxu0 %v2730
  %v2761 = vpop.f32.mrf.mxu0
  %v2762 = vadd.f32 %v2722, %v2761
  %2763 = vmatmul.f32.gmra.mxu0 %v2733
  %v2764 = vpop.f32.mrf.mxu0
  %v2765 = vadd.f32 %v2722, %v2764
  %2766 = vmatmul.f32.gmra.mxu0 %v2736
  %v2767 = vpop.f32.mrf.mxu0
  %v2768 = vadd.f32 %v2722, %v2767
  %2769 = vdwg.mxu0
  %v2770 = vmul.f32 %v2756, %v2756
  %v2771 = vmul.f32 %v2759, %v2759
  %v2772 = vmul.f32 %v2762, %v2762
  %v2773 = vmul.f32 %v2765, %v2765
  %v2774 = vmul.f32 %v2768, %v2768
  %v2775 = vmul.f32 %v2756, %v2770
  %v2776 = vmul.f32 %v2759, %v2771
  %v2777 = vmul.f32 %v2762, %v2772
  %v2778 = vmul.f32 %v2765, %v2773
  %v2779 = vmul.f32 %v2768, %v2774
  %v2780 = vmul.f32 %v2775, 0.044715
  %v2781 = vmul.f32 %v2776, 0.044715
  %v2782 = vmul.f32 %v2777, 0.044715
  %v2783 = vmul.f32 %v2778, 0.044715
  %v2784 = vmul.f32 %v2779, 0.044715
  %v2785 = vadd.f32 %v2756, %v2780
  %v2786 = vadd.f32 %v2759, %v2781
  %v2787 = vadd.f32 %v2762, %v2782
  %v2788 = vadd.f32 %v2765, %v2783
  %v2789 = vadd.f32 %v2768, %v2784
  %v2790 = vmul.f32 %v2785, 0.7978846
  %v2791 = vmul.f32 %v2786, 0.7978846
  %v2792 = vmul.f32 %v2787, 0.7978846
  %v2793 = vmul.f32 %v2788, 0.7978846
  %v2794 = vmul.f32 %v2789, 0.7978846
  %v2795 = vtanh.pop %v2790
  %v2796 = vtanh.pop %v2791
  %v2797 = vtanh.pop %v2792
  %v2798 = vtanh.pop %v2793
  %v2799 = vtanh.pop %v2794
  %v2800 = vadd.f32 %v2795, 1.0
  %v2801 = vadd.f32 %v2796, 1.0
  %v2802 = vadd.f32 %v2797, 1.0
  %v2803 = vadd.f32 %v2798, 1.0
  %v2804 = vadd.f32 %v2799, 1.0
  %v2805 = vmul.f32 %v2800, 0.5
  %v2806 = vmul.f32 %v2801, 0.5
  %v2807 = vmul.f32 %v2802, 0.5
  %v2808 = vmul.f32 %v2803, 0.5
  %v2809 = vmul.f32 %v2804, 0.5
  %v2810 = vmul.f32 %v2756, %v2805
  %v2811 = vmul.f32 %v2759, %v2806
  %v2812 = vmul.f32 %v2762, %v2807
  %v2813 = vmul.f32 %v2765, %v2808
  %v2814 = vmul.f32 %v2768, %v2809
  %v2815 = vld [vmem:[%s1 + $0x178] sm:$0xff]
  %v2816 = vld [vmem:[%s1 + $0x180] sm:$0xff]
  %v2817 = vld [vmem:[%s1 + $0x188] sm:$0xff]
  %v2818 = vld [vmem:[%s1 + $0x190] sm:$0xff]
  %v2819 = vld [vmem:[%s1 + $0x198] sm:$0xff]
  %v2820 = vld [vmem:[%s1 + $0x1a0] sm:$0xff]
  %v2821 = vld [vmem:[%s1 + $0x1a8] sm:$0xff]
  %v2822 = vld [vmem:[%s1 + $0x1b0] sm:$0xff]
  %v2824 = vsel %vm29, %v2810, 0
  %v2827 = vsel %vm29, %v2811, 0
  %v2830 = vsel %vm29, %v2812, 0
  %v2833 = vsel %vm29, %v2813, 0
  %v2836 = vsel %vm29, %v2814, 0
  %2838 = vmatpush.msra.mxu0 0.0
  %2839 = vmatpush.msra.mxu0 0.0
  %2840 = vmatpush.msra.mxu0 0.0
  %2841 = vmatpush.msra.mxu0 0.0
  %2842 = vmatpush.msra.mxu0 0.0
  %2843 = vmatpush.msra.mxu0 0.0
  %2844 = vmatpush.msra.mxu0 0.0
  %2845 = vmatpush.msra.mxu0 0.0
  %2846 = vmatpush.msra.mxu0 %v2822
  %2847 = vmatpush.msra.mxu0 %v2821
  %2848 = vmatpush.msra.mxu0 %v2820
  %2849 = vmatpush.msra.mxu0 %v2819
  %2850 = vmatpush.msra.mxu0 %v2818
  %2851 = vmatpush.msra.mxu0 %v2817
  %2852 = vmatpush.msra.mxu0 %v2816
  %2853 = vmatpush.msra.mxu0 %v2815
  %2854 = vmatmul.f32.gmra.mxu0 %v2824
  %v2855 = vpop.f32.mrf.mxu0
  %v2856 = vadd.f32 0.0, %v2855
  %2857 = vmatmul.f32.gmra.mxu0 %v2827
  %v2858 = vpop.f32.mrf.mxu0
  %v2859 = vadd.f32 0.0, %v2858
  %2860 = vmatmul.f32.gmra.mxu0 %v2830
  %v2861 = vpop.f32.mrf.mxu0
  %v2862 = vadd.f32 0.0, %v2861
  %2863 = vmatmul.f32.gmra.mxu0 %v2833
  %v2864 = vpop.f32.mrf.mxu0
  %v2865 = vadd.f32 0.0, %v2864
  %2866 = vmatmul.f32.gmra.mxu0 %v2836
  %v2867 = vpop.f32.mrf.mxu0
  %v2868 = vadd.f32 0.0, %v2867
  %2869 = vdwg.mxu0
  %v2870 = vadd.f32 %v2588, %v2856
  %v2871 = vadd.f32 %v2589, %v2859
  %v2872 = vadd.f32 %v2590, %v2862
  %v2873 = vadd.f32 %v2591, %v2865
  %v2874 = vadd.f32 %v2592, %v2868
  %v2875 = vld [vmem:[%s1 + $0x117] sm:$0x1]
  %v2876 = vperm.slane %v2875, 0
  %v2877 = vadd.f32 %v2870, %v2876
  %v2878 = vadd.f32 %v2871, %v2876
  %v2879 = vadd.f32 %v2872, %v2876
  %v2880 = vadd.f32 %v2873, %v2876
  %v2881 = vadd.f32 %v2874, %v2876
  %v2882 = vld [vmem:[%s1 + $0x1b8] sm:$0x1]
  %v2883 = vld [vmem:[%s1 + $0x1b9] sm:$0x1]
  %v2884 = vsel %vm122, %v2877, 0.0
  %2885 = vadd.xlane.f32.xlu0 %v2884
  %v2886 = vpop.xlane.xlu0 %2885
  %v2887 = vsel %vm122, %v2878, 0.0
  %2888 = vadd.xlane.f32.xlu0 %v2887
  %v2889 = vpop.xlane.xlu0 %2888
  %v2890 = vsel %vm122, %v2879, 0.0
  %2891 = vadd.xlane.f32.xlu0 %v2890
  %v2892 = vpop.xlane.xlu0 %2891
  %v2893 = vsel %vm122, %v2880, 0.0
  %2894 = vadd.xlane.f32.xlu0 %v2893
  %v2895 = vpop.xlane.xlu0 %2894
  %v2896 = vsel %vm122, %v2881, 0.0
  %2897 = vadd.xlane.f32.xlu0 %v2896
  %v2898 = vpop.xlane.xlu0 %2897
  %v2899 = vmul.f32 %v2886, %v144
  %v2900 = vmul.f32 %v2889, %v144
  %v2901 = vmul.f32 %v2892, %v144
  %v2902 = vmul.f32 %v2895, %v144
  %v2903 = vmul.f32 %v2898, %v144
  %v2904 = vsub.f32 %v2877, %v2899
  %v2905 = vsub.f32 %v2878, %v2900
  %v2906 = vsub.f32 %v2879, %v2901
  %v2907 = vsub.f32 %v2880, %v2902
  %v2908 = vsub.f32 %v2881, %v2903
  %v2909 = vmul.f32 %v2904, %v2904
  %v2910 = vmul.f32 %v2905, %v2905
  %v2911 = vmul.f32 %v2906, %v2906
  %v2912 = vmul.f32 %v2907, %v2907
  %v2913 = vmul.f32 %v2908, %v2908
  %v2914 = vsel %vm122, %v2909, 0.0
  %2915 = vadd.xlane.f32.xlu0 %v2914
  %v2916 = vpop.xlane.xlu0 %2915
  %v2917 = vsel %vm122, %v2910, 0.0
  %2918 = vadd.xlane.f32.xlu0 %v2917
  %v2919 = vpop.xlane.xlu0 %2918
  %v2920 = vsel %vm122, %v2911, 0.0
  %2921 = vadd.xlane.f32.xlu0 %v2920
  %v2922 = vpop.xlane.xlu0 %2921
  %v2923 = vsel %vm122, %v2912, 0.0
  %2924 = vadd.xlane.f32.xlu0 %v2923
  %v2925 = vpop.xlane.xlu0 %2924
  %v2926 = vsel %vm122, %v2913, 0.0
  %2927 = vadd.xlane.f32.xlu0 %v2926
  %v2928 = vpop.xlane.xlu0 %2927
  %v2929 = vmul.f32 %v2916, %v144
  %v2930 = vmul.f32 %v2919, %v144
  %v2931 = vmul.f32 %v2922, %v144
  %v2932 = vmul.f32 %v2925, %v144
  %v2933 = vmul.f32 %v2928, %v144
  %v2934 = vadd.f32 %v2929, 1e-12
  %v2935 = vadd.f32 %v2930, 1e-12
  %v2936 = vadd.f32 %v2931, 1e-12
  %v2937 = vadd.f32 %v2932, 1e-12
  %v2938 = vadd.f32 %v2933, 1e-12
  %v2939 = vrsqrt.pop %v2934
  %v2940 = vmul.f32 %v2939, %v2934
  %v2941 = vmul.f32 %v2940, %v2939
  %v2942 = vmul.f32 0.5, %v2941
  %v2943 = vsub.f32 1.5, %v2942
  %v2944 = vmul.f32 %v2939, %v2943
  %vm2945 = vweird.f32 %v2934
  %vm2946 = vweird.f32 %v2939
  %vm2947 = vmor %vm2945, %vm2946
  %v2948 = vsel %vm2947, %v2939, %v2944
  %v2949 = vrsqrt.pop %v2935
  %v2950 = vmul.f32 %v2949, %v2935
  %v2951 = vmul.f32 %v2950, %v2949
  %v2952 = vmul.f32 0.5, %v2951
  %v2953 = vsub.f32 1.5, %v2952
  %v2954 = vmul.f32 %v2949, %v2953
  %vm2955 = vweird.f32 %v2935
  %vm2956 = vweird.f32 %v2949
  %vm2957 = vmor %vm2955, %vm2956
  %v2958 = vsel %vm2957, %v2949, %v2954
  %v2959 = vrsqrt.pop %v2936
  %v2960 = vmul.f32 %v2959, %v2936
  %v2961 = vmul.f32 %v2960, %v2959
  %v2962 = vmul.f32 0.5, %v2961
  %v2963 = vsub.f32 1.5, %v2962
  %v2964 = vmul.f32 %v2959, %v2963
  %vm2965 = vweird.f32 %v2936
  %vm2966 = vweird.f32 %v2959
  %vm2967 = vmor %vm2965, %vm2966
  %v2968 = vsel %vm2967, %v2959, %v2964
  %v2969 = vrsqrt.pop %v2937
  %v2970 = vmul.f32 %v2969, %v2937
  %v2971 = vmul.f32 %v2970, %v2969
  %v2972 = vmul.f32 0.5, %v2971
  %v2973 = vsub.f32 1.5, %v2972
  %v2974 = vmul.f32 %v2969, %v2973
  %vm2975 = vweird.f32 %v2937
  %vm2976 = vweird.f32 %v2969
  %vm2977 = vmor %vm2975, %vm2976
  %v2978 = vsel %vm2977, %v2969, %v2974
  %v2979 = vrsqrt.pop %v2938
  %v2980 = vmul.f32 %v2979, %v2938
  %v2981 = vmul.f32 %v2980, %v2979
  %v2982 = vmul.f32 0.5, %v2981
  %v2983 = vsub.f32 1.5, %v2982
  %v2984 = vmul.f32 %v2979, %v2983
  %vm2985 = vweird.f32 %v2938
  %vm2986 = vweird.f32 %v2979
  %vm2987 = vmor %vm2985, %vm2986
  %v2988 = vsel %vm2987, %v2979, %v2984
  %v2989 = vmul.f32 %v2904, %v2948
  %v2990 = vmul.f32 %v2905, %v2958
  %v2991 = vmul.f32 %v2906, %v2968
  %v2992 = vmul.f32 %v2907, %v2978
  %v2993 = vmul.f32 %v2908, %v2988
  %v2994 = vperm.slane %v2882, 0
  %v2995 = vmul.f32 %v2989, %v2994
  %v2996 = vmul.f32 %v2990, %v2994
  %v2997 = vmul.f32 %v2991, %v2994
  %v2998 = vmul.f32 %v2992, %v2994
  %v2999 = vmul.f32 %v2993, %v2994
  %v3000 = vperm.slane %v2883, 0
  %v3001 = vadd.f32 %v2995, %v3000
  %v3002 = vadd.f32 %v2996, %v3000
  %v3003 = vadd.f32 %v2997, %v3000
  %v3004 = vadd.f32 %v2998, %v3000
  %v3005 = vadd.f32 %v2999, %v3000
  %v3006 = vld [vmem:[%s1 + $0x1c0] sm:$0xff]
  %v3007 = vld [vmem:[%s1 + $0x1c8] sm:$0xff]
  %v3008 = vld [vmem:[%s1 + $0x1d0] sm:$0xff]
  %v3009 = vld [vmem:[%s1 + $0x1d8] sm:$0xff]
  %v3010 = vld [vmem:[%s1 + $0x1ba] sm:$0x1]
  %v3011 = vperm.slane %v3010, 0
  %v3013 = vsel %vm122, %v3001, 0
  %v3016 = vsel %vm122, %v3002, 0
  %v3019 = vsel %vm122, %v3003, 0
  %v3022 = vsel %vm122, %v3004, 0
  %v3025 = vsel %vm122, %v3005, 0
  %3027 = vmatpush.msra.mxu0 0.0
  %3028 = vmatpush.msra.mxu0 0.0
  %3029 = vmatpush.msra.mxu0 0.0
  %3030 = vmatpush.msra.mxu0 0.0
  %3031 = vmatpush.msra.mxu0 0.0
  %3032 = vmatpush.msra.mxu0 0.0
  %3033 = vmatpush.msra.mxu0 0.0
  %3034 = vmatpush.msra.mxu0 0.0
  %3035 = vmatpush.msra.mxu0 0.0
  %3036 = vmatpush.msra.mxu0 0.0
  %3037 = vmatpush.msra.mxu0 0.0
  %3038 = vmatpush.msra.mxu0 0.0
  %3039 = vmatpush.msra.mxu0 %v3009
  %3040 = vmatpush.msra.mxu0 %v3008
  %3041 = vmatpush.msra.mxu0 %v3007
  %3042 = vmatpush.msra.mxu0 %v3006
  %3043 = vmatmul.f32.gmra.mxu0 %v3013
  %v3044 = vpop.f32.mrf.mxu0
  %v3045 = vadd.f32 %v3011, %v3044
  %3046 = vmatmul.f32.gmra.mxu0 %v3016
  %v3047 = vpop.f32.mrf.mxu0
  %v3048 = vadd.f32 %v3011, %v3047
  %3049 = vmatmul.f32.gmra.mxu0 %v3019
  %v3050 = vpop.f32.mrf.mxu0
  %v3051 = vadd.f32 %v3011, %v3050
  %3052 = vmatmul.f32.gmra.mxu0 %v3022
  %v3053 = vpop.f32.mrf.mxu0
  %v3054 = vadd.f32 %v3011, %v3053
  %3055 = vmatmul.f32.gmra.mxu0 %v3025
  %v3056 = vpop.f32.mrf.mxu0
  %v3057 = vadd.f32 %v3011, %v3056
  %3058 = vdwg.mxu0
  %3059 = vst [vmem:[%s2] sm:$0xff] %v3045
  %3060 = vst [vmem:[%s2 + $0x8] sm:$0xff] %v3048
  %3061 = vst [vmem:[%s2 + $0x10] sm:$0xff] %v3051
  %3062 = vst [vmem:[%s2 + $0x18] sm:$0xff] %v3054
  %3063 = vst [vmem:[%s2 + $0x20] sm:$0xff] %v3057
  // Predicated region
  $region10: #{deepspeed_vit_forward.1} parent=0 // pred_check
    _
  $region11: #{deepspeed_vit_forward.1} parent=0 // pred_check_branch
    %3065 = sbr.rel (0) target = $region13
  $region12: #{deepspeed_vit_forward.1} parent=0 // pred_region
    _
  $region13: #{deepspeed_vit_forward.1} parent=0 // pred_fallthru
    _
  // Predicated region
  $region14: #{deepspeed_vit_forward.1} parent=0 // pred_check
    _
  $region15: #{deepspeed_vit_forward.1} parent=0 // pred_check_branch
    %3067 = sbr.rel (0) target = $region17
  $region16: #{deepspeed_vit_forward.1} parent=0 // pred_region
    _
  $region17: #{deepspeed_vit_forward.1} parent=0 // pred_fallthru
    _

</llo_original>
